<compile_context>
chip_gen: v7x
topology: tpu7x:2x2x1
jax: 0.10.0
libtpu: 0.0.40
codegen_flags: <defaults>
</compile_context>

<pallas_src>
import functools

import jax
import jax.numpy as jnp
from jax import lax
from jax.experimental import pallas as pl
from jax.experimental.pallas import tpu as pltpu


def _round_up(x, m):
    return (x + m - 1) // m * m


# ----------------------------------------------------------------------------
# Pallas kernel: fused bidirectional LSTM recurrence + deferred projection for
# one batch block of B_blk rows (all T timesteps).
#
# Gate column layout (width 8*Hp): [ i_f f_f g_f o_f | i_b f_b g_b o_b ]
# Hidden-state column layout (width 2*Hp): [ h_f | h_b ]
# ----------------------------------------------------------------------------
def _bilstm_kernel(x_ref,        # [T*Bblk, D]       bf16   time-major input block
                   wih_ref,      # [D, 8*Hp]         bf16   dense input->gates (fwd|bwd)
                   whhf_ref,     # [Hp, 4*Hp]        bf16   forward hidden->gates
                   whhb_ref,     # [Hp, 4*Hp]        bf16   backward hidden->gates
                   bg_ref,       # [1, 8*Hp]         f32    fused gate bias (b_ih + b_hh)
                   wlin_ref,     # [2*Hp, O_pad]     bf16   output projection
                   blin_ref,     # [1, O_pad]        f32    output bias
                   out_ref,      # [T*Bblk, O_pad]   f32
                   xp_ref,       # scratch [T*Bblk, 8*Hp]  bf16  hoisted x projection
                   hall_ref,     # scratch [T*Bblk, 2*Hp]  bf16  staged hidden states
                   *, T, B_blk):
    Hp = whhf_ref.shape[0]

    # (1) Hoisted input projection: one MXU matmul for all timesteps and both
    #     directions; gate biases folded in; staged in bf16.
    xp_ref[...] = (jnp.dot(x_ref[...], wih_ref[...],
                           preferred_element_type=jnp.float32)
                   + bg_ref[...]).astype(xp_ref.dtype)

    whh_f = whhf_ref[...]                         # resident [Hp, 4Hp] bf16
    whh_b = whhb_ref[...]

    def sigmoid(v):
        # One EUP push (tanh) instead of exp + reciprocal.
        return 0.5 * jnp.tanh(0.5 * v) + 0.5

    def lstm_cell(gates, c):
        i = sigmoid(gates[:, 0 * Hp:1 * Hp])
        f = sigmoid(gates[:, 1 * Hp:2 * Hp])
        g = jnp.tanh(gates[:, 2 * Hp:3 * Hp])
        o = sigmoid(gates[:, 3 * Hp:4 * Hp])
        c_new = f * c + i * g
        h_new = o * jnp.tanh(c_new)
        return h_new, c_new

    # (2) Fused recurrence: step s advances the forward direction at time s and
    #     the backward direction at time T-1-s. Two independent per-direction
    #     matmuls (no block-diagonal zero MACs).
    def step(s, carry):
        h_f, c_f, h_b, c_b = carry
        row_f = pl.multiple_of(s * B_blk, B_blk)              # forward: time s
        row_b = pl.multiple_of((T - 1 - s) * B_blk, B_blk)    # backward: time T-1-s
        g_f = xp_ref[pl.ds(row_f, B_blk), 0:4 * Hp] + jnp.dot(
            h_f.astype(whh_f.dtype), whh_f, preferred_element_type=jnp.float32)
        g_b = xp_ref[pl.ds(row_b, B_blk), 4 * Hp:8 * Hp] + jnp.dot(
            h_b.astype(whh_b.dtype), whh_b, preferred_element_type=jnp.float32)
        h_f, c_f = lstm_cell(g_f, c_f)
        h_b, c_b = lstm_cell(g_b, c_b)
        # (3) Defer the output projection: stage hidden states (bf16) in VMEM.
        hall_ref[pl.ds(row_f, B_blk), 0:Hp] = h_f.astype(hall_ref.dtype)
        hall_ref[pl.ds(row_b, B_blk), Hp:2 * Hp] = h_b.astype(hall_ref.dtype)
        return (h_f, c_f, h_b, c_b)

    z = jnp.zeros((B_blk, Hp), jnp.float32)
    lax.fori_loop(0, T, step, (z, z, z, z), unroll=True if T <= 32 else 4)

    # (4) Deferred output projection: one matmul + one lane-dense bulk store.
    out_ref[...] = (jnp.dot(hall_ref[...], wlin_ref[...],
                            preferred_element_type=jnp.float32)
                    + blin_ref[...])


# ----------------------------------------------------------------------------
# Wrapper: batch-first in / batch-first out, PyTorch-shaped parameters.
# ----------------------------------------------------------------------------
def bidirectional_lstm(x, params, *, batch_block=16):
    """x: [B, T, D] float32. Returns [B, T, O] float32."""
    B, T, D = x.shape
    H = params["whh_f"].shape[1]          # weight_hh: [4H, H]
    O = params["w_lin"].shape[0]          # linear weight: [O, 2H]

    B_blk = batch_block                   # full bf16 sublane tile per step
    B_pad = _round_up(max(B, B_blk), B_blk)
    n_blocks = B_pad // B_blk
    H_pad = _round_up(H, 128)             # lane-aligned gate / hidden slices
    O_pad = _round_up(O, 128)             # lane-dense bulk output store
    f32, bf16 = jnp.float32, jnp.bfloat16

    # Dense fused input->gate weights [D, 8*Hp]; columns [i_f f_f g_f o_f | i_b f_b g_b o_b].
    wih = jnp.zeros((D, 2, 4, H_pad), f32)
    wih = wih.at[:, 0, :, :H].set(params["wih_f"].T.reshape(D, 4, H))
    wih = wih.at[:, 1, :, :H].set(params["wih_b"].T.reshape(D, 4, H))
    wih = wih.reshape(D, 8 * H_pad)

    # Per-direction hidden->gate weights [Hp, 4*Hp] (no zero off-diagonal blocks).
    def make_whh(w):
        m = jnp.zeros((H_pad, 4, H_pad), f32)
        m = m.at[:H, :, :H].set(w.T.reshape(H, 4, H))
        return m.reshape(H_pad, 4 * H_pad)

    whh_f = make_whh(params["whh_f"])
    whh_b = make_whh(params["whh_b"])

    # Fused gate bias (b_ih + b_hh per direction); padded lanes stay zero so the
    # padded hidden units remain identically zero through the recurrence.
    bg = jnp.zeros((2, 4, H_pad), f32)
    bg = bg.at[0, :, :H].set((params["bih_f"] + params["bhh_f"]).reshape(4, H))
    bg = bg.at[1, :, :H].set((params["bih_b"] + params["bhh_b"]).reshape(4, H))
    bg = bg.reshape(1, 8 * H_pad)

    # Output projection [2*Hp, O_pad]; row layout [h_f | h_b].
    wlin = jnp.zeros((2, H_pad, O_pad), f32)
    wlin = wlin.at[0, :H, :O].set(params["w_lin"][:, :H].T)
    wlin = wlin.at[1, :H, :O].set(params["w_lin"][:, H:].T)
    wlin = wlin.reshape(2 * H_pad, O_pad)
    blin = jnp.zeros((1, O_pad), f32).at[0, :O].set(params["b_lin"])

    # Input laid out per batch block, time-major inside a block: [nb, T*Bblk, D].
    x_p = jnp.pad(x.astype(f32), ((0, B_pad - B), (0, 0), (0, 0)))   # [Bp, T, D]
    x_blk = (x_p.reshape(n_blocks, B_blk, T, D)
                 .transpose(0, 2, 1, 3)                              # [nb, T, Bblk, D]
                 .reshape(n_blocks, T * B_blk, D)
                 .astype(bf16))

    # VMEM budget: double-buffered blocks + weights + per-block scratch.
    blk = T * B_blk
    vmem_need = (2 * 2 * (wih.size + whh_f.size + whh_b.size + wlin.size)
                 + 2 * 4 * (bg.size + blin.size)
                 + 2 * 2 * blk * D               # x block (2 bufs, bf16)
                 + 2 * 4 * blk * O_pad           # out block (2 bufs, f32)
                 + 2 * blk * 8 * H_pad           # xp scratch (bf16)
                 + 2 * blk * 2 * H_pad)          # hall scratch (bf16)
    vmem_limit = int(min(64 * 2**20, max(32 * 2**20, 2 * vmem_need)))

    out_blk = pl.pallas_call(
        functools.partial(_bilstm_kernel, T=T, B_blk=B_blk),
        out_shape=jax.ShapeDtypeStruct((n_blocks, T * B_blk, O_pad), jnp.float32),
        grid=(n_blocks,),
        in_specs=[
            pl.BlockSpec((None, T * B_blk, D), lambda b: (b, 0, 0)),      # x block
            pl.BlockSpec((D, 8 * H_pad), lambda b: (0, 0)),               # wih
            pl.BlockSpec((H_pad, 4 * H_pad), lambda b: (0, 0)),           # whh_f
            pl.BlockSpec((H_pad, 4 * H_pad), lambda b: (0, 0)),           # whh_b
            pl.BlockSpec((1, 8 * H_pad), lambda b: (0, 0)),               # gate bias
            pl.BlockSpec((2 * H_pad, O_pad), lambda b: (0, 0)),           # wlin
            pl.BlockSpec((1, O_pad), lambda b: (0, 0)),                   # blin
        ],
        out_specs=pl.BlockSpec((None, T * B_blk, O_pad), lambda b: (b, 0, 0)),
        scratch_shapes=[
            pltpu.VMEM((T * B_blk, 8 * H_pad), jnp.bfloat16),   # hoisted x projection
            pltpu.VMEM((T * B_blk, 2 * H_pad), jnp.bfloat16),   # staged h_f | h_b
        ],
        compiler_params=pltpu.CompilerParams(
            dimension_semantics=("parallel",),
            vmem_limit_bytes=vmem_limit,
        ),
    )(x_blk, wih.astype(bf16), whh_f.astype(bf16), whh_b.astype(bf16), bg,
      wlin.astype(bf16), blin)

    out = (out_blk.reshape(n_blocks, T, B_blk, O_pad)
                  .transpose(0, 2, 1, 3)                 # [nb, Bblk, T, O_pad]
                  .reshape(B_pad, T, O_pad)[:B, :, :O])  # un-pad -> [B, T, O]
    return out


# ----------------------------------------------------------------------------
# Pure-JAX reference (mirrors torch.nn.LSTM bidirectional + nn.Linear), f32.
# ----------------------------------------------------------------------------
def _lstm_direction_ref(x, wih, whh, bih, bhh, reverse):
    B, T, D = x.shape
    H = whh.shape[1]
    xs = jnp.transpose(x, (1, 0, 2))
    if reverse:
        xs = xs[::-1]

    def step(carry, x_t):
        h, c = carry
        gates = x_t @ wih.T + h @ whh.T + bih + bhh
        i = jax.nn.sigmoid(gates[:, 0 * H:1 * H])
        f = jax.nn.sigmoid(gates[:, 1 * H:2 * H])
        g = jnp.tanh(gates[:, 2 * H:3 * H])
        o = jax.nn.sigmoid(gates[:, 3 * H:4 * H])
        c = f * c + i * g
        h = o * jnp.tanh(c)
        return (h, c), h

    init = (jnp.zeros((B, H), jnp.float32), jnp.zeros((B, H), jnp.float32))
    _, hs = lax.scan(step, init, xs)
    if reverse:
        hs = hs[::-1]
    return jnp.transpose(hs, (1, 0, 2))


def bidirectional_lstm_ref(x, params):
    h_f = _lstm_direction_ref(x, params["wih_f"], params["whh_f"],
                              params["bih_f"], params["bhh_f"], reverse=False)
    h_b = _lstm_direction_ref(x, params["wih_b"], params["whh_b"],
                              params["bih_b"], params["bhh_b"], reverse=True)
    recurrent = jnp.concatenate([h_f, h_b], axis=-1)
    return recurrent @ params["w_lin"].T + params["b_lin"]


# ----------------------------------------------------------------------------
def make_params(key, input_size, hidden_size, output_size):
    """Deterministic synthetic parameters in PyTorch layouts."""
    keys = jax.random.split(key, 10)
    H, D, O = hidden_size, input_size, output_size
    s = 1.0 / jnp.sqrt(jnp.float32(H))
    u = lambda k, shape: jax.random.uniform(k, shape, jnp.float32, -s, s)
    return {
        "wih_f": u(keys[0], (4 * H, D)),
        "whh_f": u(keys[1], (4 * H, H)),
        "bih_f": u(keys[2], (4 * H,)),
        "bhh_f": u(keys[3], (4 * H,)),
        "wih_b": u(keys[4], (4 * H, D)),
        "whh_b": u(keys[5], (4 * H, H)),
        "bih_b": u(keys[6], (4 * H,)),
        "bhh_b": u(keys[7], (4 * H,)),
        "w_lin": u(keys[8], (O, 2 * H)),
        "b_lin": u(keys[9], (O,)),
    }


if __name__ == "__main__":
    B, T, input_size, hidden_size, output_size = 2, 8, 32, 32, 32

    key = jax.random.PRNGKey(0)
    k_x, k_p = jax.random.split(key)
    x = jax.random.normal(k_x, (B, T, input_size), jnp.float32)
    params = make_params(k_p, input_size, hidden_size, output_size)

    out = jax.block_until_ready(bidirectional_lstm(x, params))
    ref = jax.block_until_ready(bidirectional_lstm_ref(x, params))

    assert out.shape == (B, T, output_size), out.shape
    # bf16 MXU operands + bf16 staging buffers with f32 accumulation/state ->
    # loosened tolerance vs the f32 reference.
    max_err = float(jnp.max(jnp.abs(out - ref)))
    assert max_err < 7.5e-2, max_err
    print("KERNEL_OK")
</pallas_src>

<mosaic_0001>
module attributes {stable_mosaic.version = 11 : i64} {
  func.func @_bilstm_kernel(%arg0: i32, %arg1: memref<1x128x32xbf16, #tpu.memory_space<vmem>>, %arg2: memref<32x1024xbf16, #tpu.memory_space<vmem>>, %arg3: memref<128x512xbf16, #tpu.memory_space<vmem>>, %arg4: memref<128x512xbf16, #tpu.memory_space<vmem>>, %arg5: memref<1x1024xf32, #tpu.memory_space<vmem>>, %arg6: memref<256x128xbf16, #tpu.memory_space<vmem>>, %arg7: memref<1x128xf32, #tpu.memory_space<vmem>>, %arg8: memref<1x128x128xf32, #tpu.memory_space<vmem>>, %arg9: memref<128x1024xbf16, #tpu.memory_space<vmem>>, %arg10: memref<128x256xbf16, #tpu.memory_space<vmem>>) attributes {dimension_semantics = [#tpu.dimension_semantics<parallel>], iteration_bounds = array<i64: 1>, scalar_prefetch = 0 : i64, scratch_operands = 2 : i64, tpu.core_type = #tpu.core_type<tc>, window_params = [{transform_indices = @transform_0, window_bounds = array<i64: 1, 128, 32>}, {pipeline_mode = #tpu.pipeline_mode<synchronous>, transform_indices = @transform_1, window_bounds = array<i64: 32, 1024>}, {pipeline_mode = #tpu.pipeline_mode<synchronous>, transform_indices = @transform_2, window_bounds = array<i64: 128, 512>}, {pipeline_mode = #tpu.pipeline_mode<synchronous>, transform_indices = @transform_3, window_bounds = array<i64: 128, 512>}, {pipeline_mode = #tpu.pipeline_mode<synchronous>, transform_indices = @transform_4, window_bounds = array<i64: 1, 1024>}, {pipeline_mode = #tpu.pipeline_mode<synchronous>, transform_indices = @transform_5, window_bounds = array<i64: 256, 128>}, {pipeline_mode = #tpu.pipeline_mode<synchronous>, transform_indices = @transform_6, window_bounds = array<i64: 1, 128>}, {transform_indices = @transform_7, window_bounds = array<i64: 1, 128, 128>}]} {
    %c0 = arith.constant 0 : index
    %c0_0 = arith.constant 0 : index
    %c0_1 = arith.constant 0 : index
    %0 = vector.load %arg1[%c0, %c0_0, %c0_1] : memref<1x128x32xbf16, #tpu.memory_space<vmem>>, vector<1x128x32xbf16>
    %1 = vector.shape_cast %0 : vector<1x128x32xbf16> to vector<128x32xbf16>
    %c0_2 = arith.constant 0 : index
    %c0_3 = arith.constant 0 : index
    %2 = vector.load %arg2[%c0_2, %c0_3] : memref<32x1024xbf16, #tpu.memory_space<vmem>>, vector<32x1024xbf16>
    %cst = arith.constant dense<0.000000e+00> : vector<128x1024xf32>
    %3 = tpu.matmul %1, %2, %cst {dimension_numbers = #tpu.dot_dimension_numbers<[1], [0], [0], [1], [0, 0, 1, 1], [], []>} : vector<128x32xbf16>, vector<32x1024xbf16>, vector<128x1024xf32> -> vector<128x1024xf32>
    %c0_4 = arith.constant 0 : index
    %c0_5 = arith.constant 0 : index
    %4 = vector.load %arg5[%c0_4, %c0_5] : memref<1x1024xf32, #tpu.memory_space<vmem>>, vector<1x1024xf32>
    %5 = vector.broadcast %4 : vector<1x1024xf32> to vector<128x1024xf32>
    %6 = arith.addf %3, %5 : vector<128x1024xf32>
    %7 = arith.truncf %6 : vector<128x1024xf32> to vector<128x1024xbf16>
    %c0_6 = arith.constant 0 : index
    %c0_7 = arith.constant 0 : index
    %8 = vector.load %arg9[%c0_6, %c0_7] : memref<128x1024xbf16, #tpu.memory_space<vmem>>, vector<128x1024xbf16>
    tpu.vector_store %arg9[%c0_6, %c0_7], %7 {strides = array<i32>} : memref<128x1024xbf16, #tpu.memory_space<vmem>>, vector<128x1024xbf16>,
    %c0_8 = arith.constant 0 : index
    %c0_9 = arith.constant 0 : index
    %9 = vector.load %arg3[%c0_8, %c0_9] : memref<128x512xbf16, #tpu.memory_space<vmem>>, vector<128x512xbf16>
    %c0_10 = arith.constant 0 : index
    %c0_11 = arith.constant 0 : index
    %10 = vector.load %arg4[%c0_10, %c0_11] : memref<128x512xbf16, #tpu.memory_space<vmem>>, vector<128x512xbf16>
    %cst_12 = arith.constant 0.000000e+00 : f32
    %11 = vector.broadcast %cst_12 : f32 to vector<16x128xf32>
    %c0_i32 = arith.constant 0 : i32
    %c16_i32 = arith.constant 16 : i32
    %12 = arith.muli %c0_i32, %c16_i32 : i32
    %13 = tpu.assume_multiple %12, 16 : i32
    %c7_i32 = arith.constant 7 : i32
    %14 = arith.subi %c7_i32, %c0_i32 : i32
    %c16_i32_13 = arith.constant 16 : i32
    %15 = arith.muli %14, %c16_i32_13 : i32
    %16 = tpu.assume_multiple %15, 16 : i32
    %17 = arith.index_cast %13 : i32 to index
    %c0_14 = arith.constant 0 : index
    %18 = vector.load %arg9[%17, %c0_14] : memref<128x1024xbf16, #tpu.memory_space<vmem>>, vector<16x512xbf16>
    %19 = arith.truncf %11 : vector<16x128xf32> to vector<16x128xbf16>
    %cst_15 = arith.constant dense<0.000000e+00> : vector<16x512xf32>
    %20 = tpu.matmul %19, %9, %cst_15 {dimension_numbers = #tpu.dot_dimension_numbers<[1], [0], [0], [1], [0, 0, 1, 1], [], []>} : vector<16x128xbf16>, vector<128x512xbf16>, vector<16x512xf32> -> vector<16x512xf32>
    %21 = arith.extf %18 : vector<16x512xbf16> to vector<16x512xf32>
    %22 = arith.addf %21, %20 : vector<16x512xf32>
    %23 = arith.index_cast %16 : i32 to index
    %c512 = arith.constant 512 : index
    %24 = vector.load %arg9[%23, %c512] : memref<128x1024xbf16, #tpu.memory_space<vmem>>, vector<16x512xbf16>
    %25 = arith.truncf %11 : vector<16x128xf32> to vector<16x128xbf16>
    %cst_16 = arith.constant dense<0.000000e+00> : vector<16x512xf32>
    %26 = tpu.matmul %25, %10, %cst_16 {dimension_numbers = #tpu.dot_dimension_numbers<[1], [0], [0], [1], [0, 0, 1, 1], [], []>} : vector<16x128xbf16>, vector<128x512xbf16>, vector<16x512xf32> -> vector<16x512xf32>
    %27 = arith.extf %24 : vector<16x512xbf16> to vector<16x512xf32>
    %28 = arith.addf %27, %26 : vector<16x512xf32>
    %29 = vector.extract_strided_slice %22 {offsets = [0, 0], sizes = [16, 128], strides = [1, 1]} : vector<16x512xf32> to vector<16x128xf32>
    %cst_17 = arith.constant 5.000000e-01 : f32
    %30 = vector.broadcast %cst_17 : f32 to vector<16x128xf32>
    %31 = arith.mulf %30, %29 : vector<16x128xf32>
    %32 = math.tanh %31 : vector<16x128xf32>
    %cst_18 = arith.constant 5.000000e-01 : f32
    %33 = vector.broadcast %cst_18 : f32 to vector<16x128xf32>
    %34 = arith.mulf %33, %32 : vector<16x128xf32>
    %cst_19 = arith.constant 5.000000e-01 : f32
    %35 = vector.broadcast %cst_19 : f32 to vector<16x128xf32>
    %36 = arith.addf %34, %35 : vector<16x128xf32>
    %37 = vector.extract_strided_slice %22 {offsets = [0, 128], sizes = [16, 128], strides = [1, 1]} : vector<16x512xf32> to vector<16x128xf32>
    %cst_20 = arith.constant 5.000000e-01 : f32
    %38 = vector.broadcast %cst_20 : f32 to vector<16x128xf32>
    %39 = arith.mulf %38, %37 : vector<16x128xf32>
    %40 = math.tanh %39 : vector<16x128xf32>
    %cst_21 = arith.constant 5.000000e-01 : f32
    %41 = vector.broadcast %cst_21 : f32 to vector<16x128xf32>
    %42 = arith.mulf %41, %40 : vector<16x128xf32>
    %cst_22 = arith.constant 5.000000e-01 : f32
    %43 = vector.broadcast %cst_22 : f32 to vector<16x128xf32>
    %44 = arith.addf %42, %43 : vector<16x128xf32>
    %45 = vector.extract_strided_slice %22 {offsets = [0, 256], sizes = [16, 128], strides = [1, 1]} : vector<16x512xf32> to vector<16x128xf32>
    %46 = math.tanh %45 : vector<16x128xf32>
    %47 = vector.extract_strided_slice %22 {offsets = [0, 384], sizes = [16, 128], strides = [1, 1]} : vector<16x512xf32> to vector<16x128xf32>
    %cst_23 = arith.constant 5.000000e-01 : f32
    %48 = vector.broadcast %cst_23 : f32 to vector<16x128xf32>
    %49 = arith.mulf %48, %47 : vector<16x128xf32>
    %50 = math.tanh %49 : vector<16x128xf32>
    %cst_24 = arith.constant 5.000000e-01 : f32
    %51 = vector.broadcast %cst_24 : f32 to vector<16x128xf32>
    %52 = arith.mulf %51, %50 : vector<16x128xf32>
    %cst_25 = arith.constant 5.000000e-01 : f32
    %53 = vector.broadcast %cst_25 : f32 to vector<16x128xf32>
    %54 = arith.addf %52, %53 : vector<16x128xf32>
    %55 = arith.mulf %44, %11 : vector<16x128xf32>
    %56 = arith.mulf %36, %46 : vector<16x128xf32>
    %57 = arith.addf %55, %56 : vector<16x128xf32>
    %58 = math.tanh %57 : vector<16x128xf32>
    %59 = arith.mulf %54, %58 : vector<16x128xf32>
    %60 = vector.extract_strided_slice %28 {offsets = [0, 0], sizes = [16, 128], strides = [1, 1]} : vector<16x512xf32> to vector<16x128xf32>
    %cst_26 = arith.constant 5.000000e-01 : f32
    %61 = vector.broadcast %cst_26 : f32 to vector<16x128xf32>
    %62 = arith.mulf %61, %60 : vector<16x128xf32>
    %63 = math.tanh %62 : vector<16x128xf32>
    %cst_27 = arith.constant 5.000000e-01 : f32
    %64 = vector.broadcast %cst_27 : f32 to vector<16x128xf32>
    %65 = arith.mulf %64, %63 : vector<16x128xf32>
    %cst_28 = arith.constant 5.000000e-01 : f32
    %66 = vector.broadcast %cst_28 : f32 to vector<16x128xf32>
    %67 = arith.addf %65, %66 : vector<16x128xf32>
    %68 = vector.extract_strided_slice %28 {offsets = [0, 128], sizes = [16, 128], strides = [1, 1]} : vector<16x512xf32> to vector<16x128xf32>
    %cst_29 = arith.constant 5.000000e-01 : f32
    %69 = vector.broadcast %cst_29 : f32 to vector<16x128xf32>
    %70 = arith.mulf %69, %68 : vector<16x128xf32>
    %71 = math.tanh %70 : vector<16x128xf32>
    %cst_30 = arith.constant 5.000000e-01 : f32
    %72 = vector.broadcast %cst_30 : f32 to vector<16x128xf32>
    %73 = arith.mulf %72, %71 : vector<16x128xf32>
    %cst_31 = arith.constant 5.000000e-01 : f32
    %74 = vector.broadcast %cst_31 : f32 to vector<16x128xf32>
    %75 = arith.addf %73, %74 : vector<16x128xf32>
    %76 = vector.extract_strided_slice %28 {offsets = [0, 256], sizes = [16, 128], strides = [1, 1]} : vector<16x512xf32> to vector<16x128xf32>
    %77 = math.tanh %76 : vector<16x128xf32>
    %78 = vector.extract_strided_slice %28 {offsets = [0, 384], sizes = [16, 128], strides = [1, 1]} : vector<16x512xf32> to vector<16x128xf32>
    %cst_32 = arith.constant 5.000000e-01 : f32
    %79 = vector.broadcast %cst_32 : f32 to vector<16x128xf32>
    %80 = arith.mulf %79, %78 : vector<16x128xf32>
    %81 = math.tanh %80 : vector<16x128xf32>
    %cst_33 = arith.constant 5.000000e-01 : f32
    %82 = vector.broadcast %cst_33 : f32 to vector<16x128xf32>
    %83 = arith.mulf %82, %81 : vector<16x128xf32>
    %cst_34 = arith.constant 5.000000e-01 : f32
    %84 = vector.broadcast %cst_34 : f32 to vector<16x128xf32>
    %85 = arith.addf %83, %84 : vector<16x128xf32>
    %86 = arith.mulf %75, %11 : vector<16x128xf32>
    %87 = arith.mulf %67, %77 : vector<16x128xf32>
    %88 = arith.addf %86, %87 : vector<16x128xf32>
    %89 = math.tanh %88 : vector<16x128xf32>
    %90 = arith.mulf %85, %89 : vector<16x128xf32>
    %91 = arith.truncf %59 : vector<16x128xf32> to vector<16x128xbf16>
    %92 = arith.index_cast %13 : i32 to index
    %c0_35 = arith.constant 0 : index
    %93 = vector.load %arg10[%92, %c0_35] : memref<128x256xbf16, #tpu.memory_space<vmem>>, vector<16x128xbf16>
    tpu.vector_store %arg10[%92, %c0_35], %91 {strides = array<i32>} : memref<128x256xbf16, #tpu.memory_space<vmem>>, vector<16x128xbf16>,
    %94 = arith.truncf %90 : vector<16x128xf32> to vector<16x128xbf16>
    %95 = arith.index_cast %16 : i32 to index
    %c128 = arith.constant 128 : index
    %96 = vector.load %arg10[%95, %c128] : memref<128x256xbf16, #tpu.memory_space<vmem>>, vector<16x128xbf16>
    tpu.vector_store %arg10[%95, %c128], %94 {strides = array<i32>} : memref<128x256xbf16, #tpu.memory_space<vmem>>, vector<16x128xbf16>,
    %c1_i32 = arith.constant 1 : i32
    %c16_i32_36 = arith.constant 16 : i32
    %97 = arith.muli %c1_i32, %c16_i32_36 : i32
    %98 = tpu.assume_multiple %97, 16 : i32
    %c7_i32_37 = arith.constant 7 : i32
    %99 = arith.subi %c7_i32_37, %c1_i32 : i32
    %c16_i32_38 = arith.constant 16 : i32
    %100 = arith.muli %99, %c16_i32_38 : i32
    %101 = tpu.assume_multiple %100, 16 : i32
    %102 = arith.index_cast %98 : i32 to index
    %c0_39 = arith.constant 0 : index
    %103 = vector.load %arg9[%102, %c0_39] : memref<128x1024xbf16, #tpu.memory_space<vmem>>, vector<16x512xbf16>
    %104 = arith.truncf %59 : vector<16x128xf32> to vector<16x128xbf16>
    %cst_40 = arith.constant dense<0.000000e+00> : vector<16x512xf32>
    %105 = tpu.matmul %104, %9, %cst_40 {dimension_numbers = #tpu.dot_dimension_numbers<[1], [0], [0], [1], [0, 0, 1, 1], [], []>} : vector<16x128xbf16>, vector<128x512xbf16>, vector<16x512xf32> -> vector<16x512xf32>
    %106 = arith.extf %103 : vector<16x512xbf16> to vector<16x512xf32>
    %107 = arith.addf %106, %105 : vector<16x512xf32>
    %108 = arith.index_cast %101 : i32 to index
    %c512_41 = arith.constant 512 : index
    %109 = vector.load %arg9[%108, %c512_41] : memref<128x1024xbf16, #tpu.memory_space<vmem>>, vector<16x512xbf16>
    %110 = arith.truncf %90 : vector<16x128xf32> to vector<16x128xbf16>
    %cst_42 = arith.constant dense<0.000000e+00> : vector<16x512xf32>
    %111 = tpu.matmul %110, %10, %cst_42 {dimension_numbers = #tpu.dot_dimension_numbers<[1], [0], [0], [1], [0, 0, 1, 1], [], []>} : vector<16x128xbf16>, vector<128x512xbf16>, vector<16x512xf32> -> vector<16x512xf32>
    %112 = arith.extf %109 : vector<16x512xbf16> to vector<16x512xf32>
    %113 = arith.addf %112, %111 : vector<16x512xf32>
    %114 = vector.extract_strided_slice %107 {offsets = [0, 0], sizes = [16, 128], strides = [1, 1]} : vector<16x512xf32> to vector<16x128xf32>
    %cst_43 = arith.constant 5.000000e-01 : f32
    %115 = vector.broadcast %cst_43 : f32 to vector<16x128xf32>
    %116 = arith.mulf %115, %114 : vector<16x128xf32>
    %117 = math.tanh %116 : vector<16x128xf32>
    %cst_44 = arith.constant 5.000000e-01 : f32
    %118 = vector.broadcast %cst_44 : f32 to vector<16x128xf32>
    %119 = arith.mulf %118, %117 : vector<16x128xf32>
    %cst_45 = arith.constant 5.000000e-01 : f32
    %120 = vector.broadcast %cst_45 : f32 to vector<16x128xf32>
    %121 = arith.addf %119, %120 : vector<16x128xf32>
    %122 = vector.extract_strided_slice %107 {offsets = [0, 128], sizes = [16, 128], strides = [1, 1]} : vector<16x512xf32> to vector<16x128xf32>
    %cst_46 = arith.constant 5.000000e-01 : f32
    %123 = vector.broadcast %cst_46 : f32 to vector<16x128xf32>
    %124 = arith.mulf %123, %122 : vector<16x128xf32>
    %125 = math.tanh %124 : vector<16x128xf32>
    %cst_47 = arith.constant 5.000000e-01 : f32
    %126 = vector.broadcast %cst_47 : f32 to vector<16x128xf32>
    %127 = arith.mulf %126, %125 : vector<16x128xf32>
    %cst_48 = arith.constant 5.000000e-01 : f32
    %128 = vector.broadcast %cst_48 : f32 to vector<16x128xf32>
    %129 = arith.addf %127, %128 : vector<16x128xf32>
    %130 = vector.extract_strided_slice %107 {offsets = [0, 256], sizes = [16, 128], strides = [1, 1]} : vector<16x512xf32> to vector<16x128xf32>
    %131 = math.tanh %130 : vector<16x128xf32>
    %132 = vector.extract_strided_slice %107 {offsets = [0, 384], sizes = [16, 128], strides = [1, 1]} : vector<16x512xf32> to vector<16x128xf32>
    %cst_49 = arith.constant 5.000000e-01 : f32
    %133 = vector.broadcast %cst_49 : f32 to vector<16x128xf32>
    %134 = arith.mulf %133, %132 : vector<16x128xf32>
    %135 = math.tanh %134 : vector<16x128xf32>
    %cst_50 = arith.constant 5.000000e-01 : f32
    %136 = vector.broadcast %cst_50 : f32 to vector<16x128xf32>
    %137 = arith.mulf %136, %135 : vector<16x128xf32>
    %cst_51 = arith.constant 5.000000e-01 : f32
    %138 = vector.broadcast %cst_51 : f32 to vector<16x128xf32>
    %139 = arith.addf %137, %138 : vector<16x128xf32>
    %140 = arith.mulf %129, %57 : vector<16x128xf32>
    %141 = arith.mulf %121, %131 : vector<16x128xf32>
    %142 = arith.addf %140, %141 : vector<16x128xf32>
    %143 = math.tanh %142 : vector<16x128xf32>
    %144 = arith.mulf %139, %143 : vector<16x128xf32>
    %145 = vector.extract_strided_slice %113 {offsets = [0, 0], sizes = [16, 128], strides = [1, 1]} : vector<16x512xf32> to vector<16x128xf32>
    %cst_52 = arith.constant 5.000000e-01 : f32
    %146 = vector.broadcast %cst_52 : f32 to vector<16x128xf32>
    %147 = arith.mulf %146, %145 : vector<16x128xf32>
    %148 = math.tanh %147 : vector<16x128xf32>
    %cst_53 = arith.constant 5.000000e-01 : f32
    %149 = vector.broadcast %cst_53 : f32 to vector<16x128xf32>
    %150 = arith.mulf %149, %148 : vector<16x128xf32>
    %cst_54 = arith.constant 5.000000e-01 : f32
    %151 = vector.broadcast %cst_54 : f32 to vector<16x128xf32>
    %152 = arith.addf %150, %151 : vector<16x128xf32>
    %153 = vector.extract_strided_slice %113 {offsets = [0, 128], sizes = [16, 128], strides = [1, 1]} : vector<16x512xf32> to vector<16x128xf32>
    %cst_55 = arith.constant 5.000000e-01 : f32
    %154 = vector.broadcast %cst_55 : f32 to vector<16x128xf32>
    %155 = arith.mulf %154, %153 : vector<16x128xf32>
    %156 = math.tanh %155 : vector<16x128xf32>
    %cst_56 = arith.constant 5.000000e-01 : f32
    %157 = vector.broadcast %cst_56 : f32 to vector<16x128xf32>
    %158 = arith.mulf %157, %156 : vector<16x128xf32>
    %cst_57 = arith.constant 5.000000e-01 : f32
    %159 = vector.broadcast %cst_57 : f32 to vector<16x128xf32>
    %160 = arith.addf %158, %159 : vector<16x128xf32>
    %161 = vector.extract_strided_slice %113 {offsets = [0, 256], sizes = [16, 128], strides = [1, 1]} : vector<16x512xf32> to vector<16x128xf32>
    %162 = math.tanh %161 : vector<16x128xf32>
    %163 = vector.extract_strided_slice %113 {offsets = [0, 384], sizes = [16, 128], strides = [1, 1]} : vector<16x512xf32> to vector<16x128xf32>
    %cst_58 = arith.constant 5.000000e-01 : f32
    %164 = vector.broadcast %cst_58 : f32 to vector<16x128xf32>
    %165 = arith.mulf %164, %163 : vector<16x128xf32>
    %166 = math.tanh %165 : vector<16x128xf32>
    %cst_59 = arith.constant 5.000000e-01 : f32
    %167 = vector.broadcast %cst_59 : f32 to vector<16x128xf32>
    %168 = arith.mulf %167, %166 : vector<16x128xf32>
    %cst_60 = arith.constant 5.000000e-01 : f32
    %169 = vector.broadcast %cst_60 : f32 to vector<16x128xf32>
    %170 = arith.addf %168, %169 : vector<16x128xf32>
    %171 = arith.mulf %160, %88 : vector<16x128xf32>
    %172 = arith.mulf %152, %162 : vector<16x128xf32>
    %173 = arith.addf %171, %172 : vector<16x128xf32>
    %174 = math.tanh %173 : vector<16x128xf32>
    %175 = arith.mulf %170, %174 : vector<16x128xf32>
    %176 = arith.truncf %144 : vector<16x128xf32> to vector<16x128xbf16>
    %177 = arith.index_cast %98 : i32 to index
    %c0_61 = arith.constant 0 : index
    %178 = vector.load %arg10[%177, %c0_61] : memref<128x256xbf16, #tpu.memory_space<vmem>>, vector<16x128xbf16>
    tpu.vector_store %arg10[%177, %c0_61], %176 {strides = array<i32>} : memref<128x256xbf16, #tpu.memory_space<vmem>>, vector<16x128xbf16>,
    %179 = arith.truncf %175 : vector<16x128xf32> to vector<16x128xbf16>
    %180 = arith.index_cast %101 : i32 to index
    %c128_62 = arith.constant 128 : index
    %181 = vector.load %arg10[%180, %c128_62] : memref<128x256xbf16, #tpu.memory_space<vmem>>, vector<16x128xbf16>
    tpu.vector_store %arg10[%180, %c128_62], %179 {strides = array<i32>} : memref<128x256xbf16, #tpu.memory_space<vmem>>, vector<16x128xbf16>,
    %c2_i32 = arith.constant 2 : i32
    %c16_i32_63 = arith.constant 16 : i32
    %182 = arith.muli %c2_i32, %c16_i32_63 : i32
    %183 = tpu.assume_multiple %182, 16 : i32
    %c7_i32_64 = arith.constant 7 : i32
    %184 = arith.subi %c7_i32_64, %c2_i32 : i32
    %c16_i32_65 = arith.constant 16 : i32
    %185 = arith.muli %184, %c16_i32_65 : i32
    %186 = tpu.assume_multiple %185, 16 : i32
    %187 = arith.index_cast %183 : i32 to index
    %c0_66 = arith.constant 0 : index
    %188 = vector.load %arg9[%187, %c0_66] : memref<128x1024xbf16, #tpu.memory_space<vmem>>, vector<16x512xbf16>
    %189 = arith.truncf %144 : vector<16x128xf32> to vector<16x128xbf16>
    %cst_67 = arith.constant dense<0.000000e+00> : vector<16x512xf32>
    %190 = tpu.matmul %189, %9, %cst_67 {dimension_numbers = #tpu.dot_dimension_numbers<[1], [0], [0], [1], [0, 0, 1, 1], [], []>} : vector<16x128xbf16>, vector<128x512xbf16>, vector<16x512xf32> -> vector<16x512xf32>
    %191 = arith.extf %188 : vector<16x512xbf16> to vector<16x512xf32>
    %192 = arith.addf %191, %190 : vector<16x512xf32>
    %193 = arith.index_cast %186 : i32 to index
    %c512_68 = arith.constant 512 : index
    %194 = vector.load %arg9[%193, %c512_68] : memref<128x1024xbf16, #tpu.memory_space<vmem>>, vector<16x512xbf16>
    %195 = arith.truncf %175 : vector<16x128xf32> to vector<16x128xbf16>
    %cst_69 = arith.constant dense<0.000000e+00> : vector<16x512xf32>
    %196 = tpu.matmul %195, %10, %cst_69 {dimension_numbers = #tpu.dot_dimension_numbers<[1], [0], [0], [1], [0, 0, 1, 1], [], []>} : vector<16x128xbf16>, vector<128x512xbf16>, vector<16x512xf32> -> vector<16x512xf32>
    %197 = arith.extf %194 : vector<16x512xbf16> to vector<16x512xf32>
    %198 = arith.addf %197, %196 : vector<16x512xf32>
    %199 = vector.extract_strided_slice %192 {offsets = [0, 0], sizes = [16, 128], strides = [1, 1]} : vector<16x512xf32> to vector<16x128xf32>
    %cst_70 = arith.constant 5.000000e-01 : f32
    %200 = vector.broadcast %cst_70 : f32 to vector<16x128xf32>
    %201 = arith.mulf %200, %199 : vector<16x128xf32>
    %202 = math.tanh %201 : vector<16x128xf32>
    %cst_71 = arith.constant 5.000000e-01 : f32
    %203 = vector.broadcast %cst_71 : f32 to vector<16x128xf32>
    %204 = arith.mulf %203, %202 : vector<16x128xf32>
    %cst_72 = arith.constant 5.000000e-01 : f32
    %205 = vector.broadcast %cst_72 : f32 to vector<16x128xf32>
    %206 = arith.addf %204, %205 : vector<16x128xf32>
    %207 = vector.extract_strided_slice %192 {offsets = [0, 128], sizes = [16, 128], strides = [1, 1]} : vector<16x512xf32> to vector<16x128xf32>
    %cst_73 = arith.constant 5.000000e-01 : f32
    %208 = vector.broadcast %cst_73 : f32 to vector<16x128xf32>
    %209 = arith.mulf %208, %207 : vector<16x128xf32>
    %210 = math.tanh %209 : vector<16x128xf32>
    %cst_74 = arith.constant 5.000000e-01 : f32
    %211 = vector.broadcast %cst_74 : f32 to vector<16x128xf32>
    %212 = arith.mulf %211, %210 : vector<16x128xf32>
    %cst_75 = arith.constant 5.000000e-01 : f32
    %213 = vector.broadcast %cst_75 : f32 to vector<16x128xf32>
    %214 = arith.addf %212, %213 : vector<16x128xf32>
    %215 = vector.extract_strided_slice %192 {offsets = [0, 256], sizes = [16, 128], strides = [1, 1]} : vector<16x512xf32> to vector<16x128xf32>
    %216 = math.tanh %215 : vector<16x128xf32>
    %217 = vector.extract_strided_slice %192 {offsets = [0, 384], sizes = [16, 128], strides = [1, 1]} : vector<16x512xf32> to vector<16x128xf32>
    %cst_76 = arith.constant 5.000000e-01 : f32
    %218 = vector.broadcast %cst_76 : f32 to vector<16x128xf32>
    %219 = arith.mulf %218, %217 : vector<16x128xf32>
    %220 = math.tanh %219 : vector<16x128xf32>
    %cst_77 = arith.constant 5.000000e-01 : f32
    %221 = vector.broadcast %cst_77 : f32 to vector<16x128xf32>
    %222 = arith.mulf %221, %220 : vector<16x128xf32>
    %cst_78 = arith.constant 5.000000e-01 : f32
    %223 = vector.broadcast %cst_78 : f32 to vector<16x128xf32>
    %224 = arith.addf %222, %223 : vector<16x128xf32>
    %225 = arith.mulf %214, %142 : vector<16x128xf32>
    %226 = arith.mulf %206, %216 : vector<16x128xf32>
    %227 = arith.addf %225, %226 : vector<16x128xf32>
    %228 = math.tanh %227 : vector<16x128xf32>
    %229 = arith.mulf %224, %228 : vector<16x128xf32>
    %230 = vector.extract_strided_slice %198 {offsets = [0, 0], sizes = [16, 128], strides = [1, 1]} : vector<16x512xf32> to vector<16x128xf32>
    %cst_79 = arith.constant 5.000000e-01 : f32
    %231 = vector.broadcast %cst_79 : f32 to vector<16x128xf32>
    %232 = arith.mulf %231, %230 : vector<16x128xf32>
    %233 = math.tanh %232 : vector<16x128xf32>
    %cst_80 = arith.constant 5.000000e-01 : f32
    %234 = vector.broadcast %cst_80 : f32 to vector<16x128xf32>
    %235 = arith.mulf %234, %233 : vector<16x128xf32>
    %cst_81 = arith.constant 5.000000e-01 : f32
    %236 = vector.broadcast %cst_81 : f32 to vector<16x128xf32>
    %237 = arith.addf %235, %236 : vector<16x128xf32>
    %238 = vector.extract_strided_slice %198 {offsets = [0, 128], sizes = [16, 128], strides = [1, 1]} : vector<16x512xf32> to vector<16x128xf32>
    %cst_82 = arith.constant 5.000000e-01 : f32
    %239 = vector.broadcast %cst_82 : f32 to vector<16x128xf32>
    %240 = arith.mulf %239, %238 : vector<16x128xf32>
    %241 = math.tanh %240 : vector<16x128xf32>
    %cst_83 = arith.constant 5.000000e-01 : f32
    %242 = vector.broadcast %cst_83 : f32 to vector<16x128xf32>
    %243 = arith.mulf %242, %241 : vector<16x128xf32>
    %cst_84 = arith.constant 5.000000e-01 : f32
    %244 = vector.broadcast %cst_84 : f32 to vector<16x128xf32>
    %245 = arith.addf %243, %244 : vector<16x128xf32>
    %246 = vector.extract_strided_slice %198 {offsets = [0, 256], sizes = [16, 128], strides = [1, 1]} : vector<16x512xf32> to vector<16x128xf32>
    %247 = math.tanh %246 : vector<16x128xf32>
    %248 = vector.extract_strided_slice %198 {offsets = [0, 384], sizes = [16, 128], strides = [1, 1]} : vector<16x512xf32> to vector<16x128xf32>
    %cst_85 = arith.constant 5.000000e-01 : f32
    %249 = vector.broadcast %cst_85 : f32 to vector<16x128xf32>
    %250 = arith.mulf %249, %248 : vector<16x128xf32>
    %251 = math.tanh %250 : vector<16x128xf32>
    %cst_86 = arith.constant 5.000000e-01 : f32
    %252 = vector.broadcast %cst_86 : f32 to vector<16x128xf32>
    %253 = arith.mulf %252, %251 : vector<16x128xf32>
    %cst_87 = arith.constant 5.000000e-01 : f32
    %254 = vector.broadcast %cst_87 : f32 to vector<16x128xf32>
    %255 = arith.addf %253, %254 : vector<16x128xf32>
    %256 = arith.mulf %245, %173 : vector<16x128xf32>
    %257 = arith.mulf %237, %247 : vector<16x128xf32>
    %258 = arith.addf %256, %257 : vector<16x128xf32>
    %259 = math.tanh %258 : vector<16x128xf32>
    %260 = arith.mulf %255, %259 : vector<16x128xf32>
    %261 = arith.truncf %229 : vector<16x128xf32> to vector<16x128xbf16>
    %262 = arith.index_cast %183 : i32 to index
    %c0_88 = arith.constant 0 : index
    %263 = vector.load %arg10[%262, %c0_88] : memref<128x256xbf16, #tpu.memory_space<vmem>>, vector<16x128xbf16>
    tpu.vector_store %arg10[%262, %c0_88], %261 {strides = array<i32>} : memref<128x256xbf16, #tpu.memory_space<vmem>>, vector<16x128xbf16>,
    %264 = arith.truncf %260 : vector<16x128xf32> to vector<16x128xbf16>
    %265 = arith.index_cast %186 : i32 to index
    %c128_89 = arith.constant 128 : index
    %266 = vector.load %arg10[%265, %c128_89] : memref<128x256xbf16, #tpu.memory_space<vmem>>, vector<16x128xbf16>
    tpu.vector_store %arg10[%265, %c128_89], %264 {strides = array<i32>} : memref<128x256xbf16, #tpu.memory_space<vmem>>, vector<16x128xbf16>,
    %c3_i32 = arith.constant 3 : i32
    %c16_i32_90 = arith.constant 16 : i32
    %267 = arith.muli %c3_i32, %c16_i32_90 : i32
    %268 = tpu.assume_multiple %267, 16 : i32
    %c7_i32_91 = arith.constant 7 : i32
    %269 = arith.subi %c7_i32_91, %c3_i32 : i32
    %c16_i32_92 = arith.constant 16 : i32
    %270 = arith.muli %269, %c16_i32_92 : i32
    %271 = tpu.assume_multiple %270, 16 : i32
    %272 = arith.index_cast %268 : i32 to index
    %c0_93 = arith.constant 0 : index
    %273 = vector.load %arg9[%272, %c0_93] : memref<128x1024xbf16, #tpu.memory_space<vmem>>, vector<16x512xbf16>
    %274 = arith.truncf %229 : vector<16x128xf32> to vector<16x128xbf16>
    %cst_94 = arith.constant dense<0.000000e+00> : vector<16x512xf32>
    %275 = tpu.matmul %274, %9, %cst_94 {dimension_numbers = #tpu.dot_dimension_numbers<[1], [0], [0], [1], [0, 0, 1, 1], [], []>} : vector<16x128xbf16>, vector<128x512xbf16>, vector<16x512xf32> -> vector<16x512xf32>
    %276 = arith.extf %273 : vector<16x512xbf16> to vector<16x512xf32>
    %277 = arith.addf %276, %275 : vector<16x512xf32>
    %278 = arith.index_cast %271 : i32 to index
    %c512_95 = arith.constant 512 : index
    %279 = vector.load %arg9[%278, %c512_95] : memref<128x1024xbf16, #tpu.memory_space<vmem>>, vector<16x512xbf16>
    %280 = arith.truncf %260 : vector<16x128xf32> to vector<16x128xbf16>
    %cst_96 = arith.constant dense<0.000000e+00> : vector<16x512xf32>
    %281 = tpu.matmul %280, %10, %cst_96 {dimension_numbers = #tpu.dot_dimension_numbers<[1], [0], [0], [1], [0, 0, 1, 1], [], []>} : vector<16x128xbf16>, vector<128x512xbf16>, vector<16x512xf32> -> vector<16x512xf32>
    %282 = arith.extf %279 : vector<16x512xbf16> to vector<16x512xf32>
    %283 = arith.addf %282, %281 : vector<16x512xf32>
    %284 = vector.extract_strided_slice %277 {offsets = [0, 0], sizes = [16, 128], strides = [1, 1]} : vector<16x512xf32> to vector<16x128xf32>
    %cst_97 = arith.constant 5.000000e-01 : f32
    %285 = vector.broadcast %cst_97 : f32 to vector<16x128xf32>
    %286 = arith.mulf %285, %284 : vector<16x128xf32>
    %287 = math.tanh %286 : vector<16x128xf32>
    %cst_98 = arith.constant 5.000000e-01 : f32
    %288 = vector.broadcast %cst_98 : f32 to vector<16x128xf32>
    %289 = arith.mulf %288, %287 : vector<16x128xf32>
    %cst_99 = arith.constant 5.000000e-01 : f32
    %290 = vector.broadcast %cst_99 : f32 to vector<16x128xf32>
    %291 = arith.addf %289, %290 : vector<16x128xf32>
    %292 = vector.extract_strided_slice %277 {offsets = [0, 128], sizes = [16, 128], strides = [1, 1]} : vector<16x512xf32> to vector<16x128xf32>
    %cst_100 = arith.constant 5.000000e-01 : f32
    %293 = vector.broadcast %cst_100 : f32 to vector<16x128xf32>
    %294 = arith.mulf %293, %292 : vector<16x128xf32>
    %295 = math.tanh %294 : vector<16x128xf32>
    %cst_101 = arith.constant 5.000000e-01 : f32
    %296 = vector.broadcast %cst_101 : f32 to vector<16x128xf32>
    %297 = arith.mulf %296, %295 : vector<16x128xf32>
    %cst_102 = arith.constant 5.000000e-01 : f32
    %298 = vector.broadcast %cst_102 : f32 to vector<16x128xf32>
    %299 = arith.addf %297, %298 : vector<16x128xf32>
    %300 = vector.extract_strided_slice %277 {offsets = [0, 256], sizes = [16, 128], strides = [1, 1]} : vector<16x512xf32> to vector<16x128xf32>
    %301 = math.tanh %300 : vector<16x128xf32>
    %302 = vector.extract_strided_slice %277 {offsets = [0, 384], sizes = [16, 128], strides = [1, 1]} : vector<16x512xf32> to vector<16x128xf32>
    %cst_103 = arith.constant 5.000000e-01 : f32
    %303 = vector.broadcast %cst_103 : f32 to vector<16x128xf32>
    %304 = arith.mulf %303, %302 : vector<16x128xf32>
    %305 = math.tanh %304 : vector<16x128xf32>
    %cst_104 = arith.constant 5.000000e-01 : f32
    %306 = vector.broadcast %cst_104 : f32 to vector<16x128xf32>
    %307 = arith.mulf %306, %305 : vector<16x128xf32>
    %cst_105 = arith.constant 5.000000e-01 : f32
    %308 = vector.broadcast %cst_105 : f32 to vector<16x128xf32>
    %309 = arith.addf %307, %308 : vector<16x128xf32>
    %310 = arith.mulf %299, %227 : vector<16x128xf32>
    %311 = arith.mulf %291, %301 : vector<16x128xf32>
    %312 = arith.addf %310, %311 : vector<16x128xf32>
    %313 = math.tanh %312 : vector<16x128xf32>
    %314 = arith.mulf %309, %313 : vector<16x128xf32>
    %315 = vector.extract_strided_slice %283 {offsets = [0, 0], sizes = [16, 128], strides = [1, 1]} : vector<16x512xf32> to vector<16x128xf32>
    %cst_106 = arith.constant 5.000000e-01 : f32
    %316 = vector.broadcast %cst_106 : f32 to vector<16x128xf32>
    %317 = arith.mulf %316, %315 : vector<16x128xf32>
    %318 = math.tanh %317 : vector<16x128xf32>
    %cst_107 = arith.constant 5.000000e-01 : f32
    %319 = vector.broadcast %cst_107 : f32 to vector<16x128xf32>
    %320 = arith.mulf %319, %318 : vector<16x128xf32>
    %cst_108 = arith.constant 5.000000e-01 : f32
    %321 = vector.broadcast %cst_108 : f32 to vector<16x128xf32>
    %322 = arith.addf %320, %321 : vector<16x128xf32>
    %323 = vector.extract_strided_slice %283 {offsets = [0, 128], sizes = [16, 128], strides = [1, 1]} : vector<16x512xf32> to vector<16x128xf32>
    %cst_109 = arith.constant 5.000000e-01 : f32
    %324 = vector.broadcast %cst_109 : f32 to vector<16x128xf32>
    %325 = arith.mulf %324, %323 : vector<16x128xf32>
    %326 = math.tanh %325 : vector<16x128xf32>
    %cst_110 = arith.constant 5.000000e-01 : f32
    %327 = vector.broadcast %cst_110 : f32 to vector<16x128xf32>
    %328 = arith.mulf %327, %326 : vector<16x128xf32>
    %cst_111 = arith.constant 5.000000e-01 : f32
    %329 = vector.broadcast %cst_111 : f32 to vector<16x128xf32>
    %330 = arith.addf %328, %329 : vector<16x128xf32>
    %331 = vector.extract_strided_slice %283 {offsets = [0, 256], sizes = [16, 128], strides = [1, 1]} : vector<16x512xf32> to vector<16x128xf32>
    %332 = math.tanh %331 : vector<16x128xf32>
    %333 = vector.extract_strided_slice %283 {offsets = [0, 384], sizes = [16, 128], strides = [1, 1]} : vector<16x512xf32> to vector<16x128xf32>
    %cst_112 = arith.constant 5.000000e-01 : f32
    %334 = vector.broadcast %cst_112 : f32 to vector<16x128xf32>
    %335 = arith.mulf %334, %333 : vector<16x128xf32>
    %336 = math.tanh %335 : vector<16x128xf32>
    %cst_113 = arith.constant 5.000000e-01 : f32
    %337 = vector.broadcast %cst_113 : f32 to vector<16x128xf32>
    %338 = arith.mulf %337, %336 : vector<16x128xf32>
    %cst_114 = arith.constant 5.000000e-01 : f32
    %339 = vector.broadcast %cst_114 : f32 to vector<16x128xf32>
    %340 = arith.addf %338, %339 : vector<16x128xf32>
    %341 = arith.mulf %330, %258 : vector<16x128xf32>
    %342 = arith.mulf %322, %332 : vector<16x128xf32>
    %343 = arith.addf %341, %342 : vector<16x128xf32>
    %344 = math.tanh %343 : vector<16x128xf32>
    %345 = arith.mulf %340, %344 : vector<16x128xf32>
    %346 = arith.truncf %314 : vector<16x128xf32> to vector<16x128xbf16>
    %347 = arith.index_cast %268 : i32 to index
    %c0_115 = arith.constant 0 : index
    %348 = vector.load %arg10[%347, %c0_115] : memref<128x256xbf16, #tpu.memory_space<vmem>>, vector<16x128xbf16>
    tpu.vector_store %arg10[%347, %c0_115], %346 {strides = array<i32>} : memref<128x256xbf16, #tpu.memory_space<vmem>>, vector<16x128xbf16>,
    %349 = arith.truncf %345 : vector<16x128xf32> to vector<16x128xbf16>
    %350 = arith.index_cast %271 : i32 to index
    %c128_116 = arith.constant 128 : index
    %351 = vector.load %arg10[%350, %c128_116] : memref<128x256xbf16, #tpu.memory_space<vmem>>, vector<16x128xbf16>
    tpu.vector_store %arg10[%350, %c128_116], %349 {strides = array<i32>} : memref<128x256xbf16, #tpu.memory_space<vmem>>, vector<16x128xbf16>,
    %c4_i32 = arith.constant 4 : i32
    %c16_i32_117 = arith.constant 16 : i32
    %352 = arith.muli %c4_i32, %c16_i32_117 : i32
    %353 = tpu.assume_multiple %352, 16 : i32
    %c7_i32_118 = arith.constant 7 : i32
    %354 = arith.subi %c7_i32_118, %c4_i32 : i32
    %c16_i32_119 = arith.constant 16 : i32
    %355 = arith.muli %354, %c16_i32_119 : i32
    %356 = tpu.assume_multiple %355, 16 : i32
    %357 = arith.index_cast %353 : i32 to index
    %c0_120 = arith.constant 0 : index
    %358 = vector.load %arg9[%357, %c0_120] : memref<128x1024xbf16, #tpu.memory_space<vmem>>, vector<16x512xbf16>
    %359 = arith.truncf %314 : vector<16x128xf32> to vector<16x128xbf16>
    %cst_121 = arith.constant dense<0.000000e+00> : vector<16x512xf32>
    %360 = tpu.matmul %359, %9, %cst_121 {dimension_numbers = #tpu.dot_dimension_numbers<[1], [0], [0], [1], [0, 0, 1, 1], [], []>} : vector<16x128xbf16>, vector<128x512xbf16>, vector<16x512xf32> -> vector<16x512xf32>
    %361 = arith.extf %358 : vector<16x512xbf16> to vector<16x512xf32>
    %362 = arith.addf %361, %360 : vector<16x512xf32>
    %363 = arith.index_cast %356 : i32 to index
    %c512_122 = arith.constant 512 : index
    %364 = vector.load %arg9[%363, %c512_122] : memref<128x1024xbf16, #tpu.memory_space<vmem>>, vector<16x512xbf16>
    %365 = arith.truncf %345 : vector<16x128xf32> to vector<16x128xbf16>
    %cst_123 = arith.constant dense<0.000000e+00> : vector<16x512xf32>
    %366 = tpu.matmul %365, %10, %cst_123 {dimension_numbers = #tpu.dot_dimension_numbers<[1], [0], [0], [1], [0, 0, 1, 1], [], []>} : vector<16x128xbf16>, vector<128x512xbf16>, vector<16x512xf32> -> vector<16x512xf32>
    %367 = arith.extf %364 : vector<16x512xbf16> to vector<16x512xf32>
    %368 = arith.addf %367, %366 : vector<16x512xf32>
    %369 = vector.extract_strided_slice %362 {offsets = [0, 0], sizes = [16, 128], strides = [1, 1]} : vector<16x512xf32> to vector<16x128xf32>
    %cst_124 = arith.constant 5.000000e-01 : f32
    %370 = vector.broadcast %cst_124 : f32 to vector<16x128xf32>
    %371 = arith.mulf %370, %369 : vector<16x128xf32>
    %372 = math.tanh %371 : vector<16x128xf32>
    %cst_125 = arith.constant 5.000000e-01 : f32
    %373 = vector.broadcast %cst_125 : f32 to vector<16x128xf32>
    %374 = arith.mulf %373, %372 : vector<16x128xf32>
    %cst_126 = arith.constant 5.000000e-01 : f32
    %375 = vector.broadcast %cst_126 : f32 to vector<16x128xf32>
    %376 = arith.addf %374, %375 : vector<16x128xf32>
    %377 = vector.extract_strided_slice %362 {offsets = [0, 128], sizes = [16, 128], strides = [1, 1]} : vector<16x512xf32> to vector<16x128xf32>
    %cst_127 = arith.constant 5.000000e-01 : f32
    %378 = vector.broadcast %cst_127 : f32 to vector<16x128xf32>
    %379 = arith.mulf %378, %377 : vector<16x128xf32>
    %380 = math.tanh %379 : vector<16x128xf32>
    %cst_128 = arith.constant 5.000000e-01 : f32
    %381 = vector.broadcast %cst_128 : f32 to vector<16x128xf32>
    %382 = arith.mulf %381, %380 : vector<16x128xf32>
    %cst_129 = arith.constant 5.000000e-01 : f32
    %383 = vector.broadcast %cst_129 : f32 to vector<16x128xf32>
    %384 = arith.addf %382, %383 : vector<16x128xf32>
    %385 = vector.extract_strided_slice %362 {offsets = [0, 256], sizes = [16, 128], strides = [1, 1]} : vector<16x512xf32> to vector<16x128xf32>
    %386 = math.tanh %385 : vector<16x128xf32>
    %387 = vector.extract_strided_slice %362 {offsets = [0, 384], sizes = [16, 128], strides = [1, 1]} : vector<16x512xf32> to vector<16x128xf32>
    %cst_130 = arith.constant 5.000000e-01 : f32
    %388 = vector.broadcast %cst_130 : f32 to vector<16x128xf32>
    %389 = arith.mulf %388, %387 : vector<16x128xf32>
    %390 = math.tanh %389 : vector<16x128xf32>
    %cst_131 = arith.constant 5.000000e-01 : f32
    %391 = vector.broadcast %cst_131 : f32 to vector<16x128xf32>
    %392 = arith.mulf %391, %390 : vector<16x128xf32>
    %cst_132 = arith.constant 5.000000e-01 : f32
    %393 = vector.broadcast %cst_132 : f32 to vector<16x128xf32>
    %394 = arith.addf %392, %393 : vector<16x128xf32>
    %395 = arith.mulf %384, %312 : vector<16x128xf32>
    %396 = arith.mulf %376, %386 : vector<16x128xf32>
    %397 = arith.addf %395, %396 : vector<16x128xf32>
    %398 = math.tanh %397 : vector<16x128xf32>
    %399 = arith.mulf %394, %398 : vector<16x128xf32>
    %400 = vector.extract_strided_slice %368 {offsets = [0, 0], sizes = [16, 128], strides = [1, 1]} : vector<16x512xf32> to vector<16x128xf32>
    %cst_133 = arith.constant 5.000000e-01 : f32
    %401 = vector.broadcast %cst_133 : f32 to vector<16x128xf32>
    %402 = arith.mulf %401, %400 : vector<16x128xf32>
    %403 = math.tanh %402 : vector<16x128xf32>
    %cst_134 = arith.constant 5.000000e-01 : f32
    %404 = vector.broadcast %cst_134 : f32 to vector<16x128xf32>
    %405 = arith.mulf %404, %403 : vector<16x128xf32>
    %cst_135 = arith.constant 5.000000e-01 : f32
    %406 = vector.broadcast %cst_135 : f32 to vector<16x128xf32>
    %407 = arith.addf %405, %406 : vector<16x128xf32>
    %408 = vector.extract_strided_slice %368 {offsets = [0, 128], sizes = [16, 128], strides = [1, 1]} : vector<16x512xf32> to vector<16x128xf32>
    %cst_136 = arith.constant 5.000000e-01 : f32
    %409 = vector.broadcast %cst_136 : f32 to vector<16x128xf32>
    %410 = arith.mulf %409, %408 : vector<16x128xf32>
    %411 = math.tanh %410 : vector<16x128xf32>
    %cst_137 = arith.constant 5.000000e-01 : f32
    %412 = vector.broadcast %cst_137 : f32 to vector<16x128xf32>
    %413 = arith.mulf %412, %411 : vector<16x128xf32>
    %cst_138 = arith.constant 5.000000e-01 : f32
    %414 = vector.broadcast %cst_138 : f32 to vector<16x128xf32>
    %415 = arith.addf %413, %414 : vector<16x128xf32>
    %416 = vector.extract_strided_slice %368 {offsets = [0, 256], sizes = [16, 128], strides = [1, 1]} : vector<16x512xf32> to vector<16x128xf32>
    %417 = math.tanh %416 : vector<16x128xf32>
    %418 = vector.extract_strided_slice %368 {offsets = [0, 384], sizes = [16, 128], strides = [1, 1]} : vector<16x512xf32> to vector<16x128xf32>
    %cst_139 = arith.constant 5.000000e-01 : f32
    %419 = vector.broadcast %cst_139 : f32 to vector<16x128xf32>
    %420 = arith.mulf %419, %418 : vector<16x128xf32>
    %421 = math.tanh %420 : vector<16x128xf32>
    %cst_140 = arith.constant 5.000000e-01 : f32
    %422 = vector.broadcast %cst_140 : f32 to vector<16x128xf32>
    %423 = arith.mulf %422, %421 : vector<16x128xf32>
    %cst_141 = arith.constant 5.000000e-01 : f32
    %424 = vector.broadcast %cst_141 : f32 to vector<16x128xf32>
    %425 = arith.addf %423, %424 : vector<16x128xf32>
    %426 = arith.mulf %415, %343 : vector<16x128xf32>
    %427 = arith.mulf %407, %417 : vector<16x128xf32>
    %428 = arith.addf %426, %427 : vector<16x128xf32>
    %429 = math.tanh %428 : vector<16x128xf32>
    %430 = arith.mulf %425, %429 : vector<16x128xf32>
    %431 = arith.truncf %399 : vector<16x128xf32> to vector<16x128xbf16>
    %432 = arith.index_cast %353 : i32 to index
    %c0_142 = arith.constant 0 : index
    %433 = vector.load %arg10[%432, %c0_142] : memref<128x256xbf16, #tpu.memory_space<vmem>>, vector<16x128xbf16>
    tpu.vector_store %arg10[%432, %c0_142], %431 {strides = array<i32>} : memref<128x256xbf16, #tpu.memory_space<vmem>>, vector<16x128xbf16>,
    %434 = arith.truncf %430 : vector<16x128xf32> to vector<16x128xbf16>
    %435 = arith.index_cast %356 : i32 to index
    %c128_143 = arith.constant 128 : index
    %436 = vector.load %arg10[%435, %c128_143] : memref<128x256xbf16, #tpu.memory_space<vmem>>, vector<16x128xbf16>
    tpu.vector_store %arg10[%435, %c128_143], %434 {strides = array<i32>} : memref<128x256xbf16, #tpu.memory_space<vmem>>, vector<16x128xbf16>,
    %c5_i32 = arith.constant 5 : i32
    %c16_i32_144 = arith.constant 16 : i32
    %437 = arith.muli %c5_i32, %c16_i32_144 : i32
    %438 = tpu.assume_multiple %437, 16 : i32
    %c7_i32_145 = arith.constant 7 : i32
    %439 = arith.subi %c7_i32_145, %c5_i32 : i32
    %c16_i32_146 = arith.constant 16 : i32
    %440 = arith.muli %439, %c16_i32_146 : i32
    %441 = tpu.assume_multiple %440, 16 : i32
    %442 = arith.index_cast %438 : i32 to index
    %c0_147 = arith.constant 0 : index
    %443 = vector.load %arg9[%442, %c0_147] : memref<128x1024xbf16, #tpu.memory_space<vmem>>, vector<16x512xbf16>
    %444 = arith.truncf %399 : vector<16x128xf32> to vector<16x128xbf16>
    %cst_148 = arith.constant dense<0.000000e+00> : vector<16x512xf32>
    %445 = tpu.matmul %444, %9, %cst_148 {dimension_numbers = #tpu.dot_dimension_numbers<[1], [0], [0], [1], [0, 0, 1, 1], [], []>} : vector<16x128xbf16>, vector<128x512xbf16>, vector<16x512xf32> -> vector<16x512xf32>
    %446 = arith.extf %443 : vector<16x512xbf16> to vector<16x512xf32>
    %447 = arith.addf %446, %445 : vector<16x512xf32>
    %448 = arith.index_cast %441 : i32 to index
    %c512_149 = arith.constant 512 : index
    %449 = vector.load %arg9[%448, %c512_149] : memref<128x1024xbf16, #tpu.memory_space<vmem>>, vector<16x512xbf16>
    %450 = arith.truncf %430 : vector<16x128xf32> to vector<16x128xbf16>
    %cst_150 = arith.constant dense<0.000000e+00> : vector<16x512xf32>
    %451 = tpu.matmul %450, %10, %cst_150 {dimension_numbers = #tpu.dot_dimension_numbers<[1], [0], [0], [1], [0, 0, 1, 1], [], []>} : vector<16x128xbf16>, vector<128x512xbf16>, vector<16x512xf32> -> vector<16x512xf32>
    %452 = arith.extf %449 : vector<16x512xbf16> to vector<16x512xf32>
    %453 = arith.addf %452, %451 : vector<16x512xf32>
    %454 = vector.extract_strided_slice %447 {offsets = [0, 0], sizes = [16, 128], strides = [1, 1]} : vector<16x512xf32> to vector<16x128xf32>
    %cst_151 = arith.constant 5.000000e-01 : f32
    %455 = vector.broadcast %cst_151 : f32 to vector<16x128xf32>
    %456 = arith.mulf %455, %454 : vector<16x128xf32>
    %457 = math.tanh %456 : vector<16x128xf32>
    %cst_152 = arith.constant 5.000000e-01 : f32
    %458 = vector.broadcast %cst_152 : f32 to vector<16x128xf32>
    %459 = arith.mulf %458, %457 : vector<16x128xf32>
    %cst_153 = arith.constant 5.000000e-01 : f32
    %460 = vector.broadcast %cst_153 : f32 to vector<16x128xf32>
    %461 = arith.addf %459, %460 : vector<16x128xf32>
    %462 = vector.extract_strided_slice %447 {offsets = [0, 128], sizes = [16, 128], strides = [1, 1]} : vector<16x512xf32> to vector<16x128xf32>
    %cst_154 = arith.constant 5.000000e-01 : f32
    %463 = vector.broadcast %cst_154 : f32 to vector<16x128xf32>
    %464 = arith.mulf %463, %462 : vector<16x128xf32>
    %465 = math.tanh %464 : vector<16x128xf32>
    %cst_155 = arith.constant 5.000000e-01 : f32
    %466 = vector.broadcast %cst_155 : f32 to vector<16x128xf32>
    %467 = arith.mulf %466, %465 : vector<16x128xf32>
    %cst_156 = arith.constant 5.000000e-01 : f32
    %468 = vector.broadcast %cst_156 : f32 to vector<16x128xf32>
    %469 = arith.addf %467, %468 : vector<16x128xf32>
    %470 = vector.extract_strided_slice %447 {offsets = [0, 256], sizes = [16, 128], strides = [1, 1]} : vector<16x512xf32> to vector<16x128xf32>
    %471 = math.tanh %470 : vector<16x128xf32>
    %472 = vector.extract_strided_slice %447 {offsets = [0, 384], sizes = [16, 128], strides = [1, 1]} : vector<16x512xf32> to vector<16x128xf32>
    %cst_157 = arith.constant 5.000000e-01 : f32
    %473 = vector.broadcast %cst_157 : f32 to vector<16x128xf32>
    %474 = arith.mulf %473, %472 : vector<16x128xf32>
    %475 = math.tanh %474 : vector<16x128xf32>
    %cst_158 = arith.constant 5.000000e-01 : f32
    %476 = vector.broadcast %cst_158 : f32 to vector<16x128xf32>
    %477 = arith.mulf %476, %475 : vector<16x128xf32>
    %cst_159 = arith.constant 5.000000e-01 : f32
    %478 = vector.broadcast %cst_159 : f32 to vector<16x128xf32>
    %479 = arith.addf %477, %478 : vector<16x128xf32>
    %480 = arith.mulf %469, %397 : vector<16x128xf32>
    %481 = arith.mulf %461, %471 : vector<16x128xf32>
    %482 = arith.addf %480, %481 : vector<16x128xf32>
    %483 = math.tanh %482 : vector<16x128xf32>
    %484 = arith.mulf %479, %483 : vector<16x128xf32>
    %485 = vector.extract_strided_slice %453 {offsets = [0, 0], sizes = [16, 128], strides = [1, 1]} : vector<16x512xf32> to vector<16x128xf32>
    %cst_160 = arith.constant 5.000000e-01 : f32
    %486 = vector.broadcast %cst_160 : f32 to vector<16x128xf32>
    %487 = arith.mulf %486, %485 : vector<16x128xf32>
    %488 = math.tanh %487 : vector<16x128xf32>
    %cst_161 = arith.constant 5.000000e-01 : f32
    %489 = vector.broadcast %cst_161 : f32 to vector<16x128xf32>
    %490 = arith.mulf %489, %488 : vector<16x128xf32>
    %cst_162 = arith.constant 5.000000e-01 : f32
    %491 = vector.broadcast %cst_162 : f32 to vector<16x128xf32>
    %492 = arith.addf %490, %491 : vector<16x128xf32>
    %493 = vector.extract_strided_slice %453 {offsets = [0, 128], sizes = [16, 128], strides = [1, 1]} : vector<16x512xf32> to vector<16x128xf32>
    %cst_163 = arith.constant 5.000000e-01 : f32
    %494 = vector.broadcast %cst_163 : f32 to vector<16x128xf32>
    %495 = arith.mulf %494, %493 : vector<16x128xf32>
    %496 = math.tanh %495 : vector<16x128xf32>
    %cst_164 = arith.constant 5.000000e-01 : f32
    %497 = vector.broadcast %cst_164 : f32 to vector<16x128xf32>
    %498 = arith.mulf %497, %496 : vector<16x128xf32>
    %cst_165 = arith.constant 5.000000e-01 : f32
    %499 = vector.broadcast %cst_165 : f32 to vector<16x128xf32>
    %500 = arith.addf %498, %499 : vector<16x128xf32>
    %501 = vector.extract_strided_slice %453 {offsets = [0, 256], sizes = [16, 128], strides = [1, 1]} : vector<16x512xf32> to vector<16x128xf32>
    %502 = math.tanh %501 : vector<16x128xf32>
    %503 = vector.extract_strided_slice %453 {offsets = [0, 384], sizes = [16, 128], strides = [1, 1]} : vector<16x512xf32> to vector<16x128xf32>
    %cst_166 = arith.constant 5.000000e-01 : f32
    %504 = vector.broadcast %cst_166 : f32 to vector<16x128xf32>
    %505 = arith.mulf %504, %503 : vector<16x128xf32>
    %506 = math.tanh %505 : vector<16x128xf32>
    %cst_167 = arith.constant 5.000000e-01 : f32
    %507 = vector.broadcast %cst_167 : f32 to vector<16x128xf32>
    %508 = arith.mulf %507, %506 : vector<16x128xf32>
    %cst_168 = arith.constant 5.000000e-01 : f32
    %509 = vector.broadcast %cst_168 : f32 to vector<16x128xf32>
    %510 = arith.addf %508, %509 : vector<16x128xf32>
    %511 = arith.mulf %500, %428 : vector<16x128xf32>
    %512 = arith.mulf %492, %502 : vector<16x128xf32>
    %513 = arith.addf %511, %512 : vector<16x128xf32>
    %514 = math.tanh %513 : vector<16x128xf32>
    %515 = arith.mulf %510, %514 : vector<16x128xf32>
    %516 = arith.truncf %484 : vector<16x128xf32> to vector<16x128xbf16>
    %517 = arith.index_cast %438 : i32 to index
    %c0_169 = arith.constant 0 : index
    %518 = vector.load %arg10[%517, %c0_169] : memref<128x256xbf16, #tpu.memory_space<vmem>>, vector<16x128xbf16>
    tpu.vector_store %arg10[%517, %c0_169], %516 {strides = array<i32>} : memref<128x256xbf16, #tpu.memory_space<vmem>>, vector<16x128xbf16>,
    %519 = arith.truncf %515 : vector<16x128xf32> to vector<16x128xbf16>
    %520 = arith.index_cast %441 : i32 to index
    %c128_170 = arith.constant 128 : index
    %521 = vector.load %arg10[%520, %c128_170] : memref<128x256xbf16, #tpu.memory_space<vmem>>, vector<16x128xbf16>
    tpu.vector_store %arg10[%520, %c128_170], %519 {strides = array<i32>} : memref<128x256xbf16, #tpu.memory_space<vmem>>, vector<16x128xbf16>,
    %c6_i32 = arith.constant 6 : i32
    %c16_i32_171 = arith.constant 16 : i32
    %522 = arith.muli %c6_i32, %c16_i32_171 : i32
    %523 = tpu.assume_multiple %522, 16 : i32
    %c7_i32_172 = arith.constant 7 : i32
    %524 = arith.subi %c7_i32_172, %c6_i32 : i32
    %c16_i32_173 = arith.constant 16 : i32
    %525 = arith.muli %524, %c16_i32_173 : i32
    %526 = tpu.assume_multiple %525, 16 : i32
    %527 = arith.index_cast %523 : i32 to index
    %c0_174 = arith.constant 0 : index
    %528 = vector.load %arg9[%527, %c0_174] : memref<128x1024xbf16, #tpu.memory_space<vmem>>, vector<16x512xbf16>
    %529 = arith.truncf %484 : vector<16x128xf32> to vector<16x128xbf16>
    %cst_175 = arith.constant dense<0.000000e+00> : vector<16x512xf32>
    %530 = tpu.matmul %529, %9, %cst_175 {dimension_numbers = #tpu.dot_dimension_numbers<[1], [0], [0], [1], [0, 0, 1, 1], [], []>} : vector<16x128xbf16>, vector<128x512xbf16>, vector<16x512xf32> -> vector<16x512xf32>
    %531 = arith.extf %528 : vector<16x512xbf16> to vector<16x512xf32>
    %532 = arith.addf %531, %530 : vector<16x512xf32>
    %533 = arith.index_cast %526 : i32 to index
    %c512_176 = arith.constant 512 : index
    %534 = vector.load %arg9[%533, %c512_176] : memref<128x1024xbf16, #tpu.memory_space<vmem>>, vector<16x512xbf16>
    %535 = arith.truncf %515 : vector<16x128xf32> to vector<16x128xbf16>
    %cst_177 = arith.constant dense<0.000000e+00> : vector<16x512xf32>
    %536 = tpu.matmul %535, %10, %cst_177 {dimension_numbers = #tpu.dot_dimension_numbers<[1], [0], [0], [1], [0, 0, 1, 1], [], []>} : vector<16x128xbf16>, vector<128x512xbf16>, vector<16x512xf32> -> vector<16x512xf32>
    %537 = arith.extf %534 : vector<16x512xbf16> to vector<16x512xf32>
    %538 = arith.addf %537, %536 : vector<16x512xf32>
    %539 = vector.extract_strided_slice %532 {offsets = [0, 0], sizes = [16, 128], strides = [1, 1]} : vector<16x512xf32> to vector<16x128xf32>
    %cst_178 = arith.constant 5.000000e-01 : f32
    %540 = vector.broadcast %cst_178 : f32 to vector<16x128xf32>
    %541 = arith.mulf %540, %539 : vector<16x128xf32>
    %542 = math.tanh %541 : vector<16x128xf32>
    %cst_179 = arith.constant 5.000000e-01 : f32
    %543 = vector.broadcast %cst_179 : f32 to vector<16x128xf32>
    %544 = arith.mulf %543, %542 : vector<16x128xf32>
    %cst_180 = arith.constant 5.000000e-01 : f32
    %545 = vector.broadcast %cst_180 : f32 to vector<16x128xf32>
    %546 = arith.addf %544, %545 : vector<16x128xf32>
    %547 = vector.extract_strided_slice %532 {offsets = [0, 128], sizes = [16, 128], strides = [1, 1]} : vector<16x512xf32> to vector<16x128xf32>
    %cst_181 = arith.constant 5.000000e-01 : f32
    %548 = vector.broadcast %cst_181 : f32 to vector<16x128xf32>
    %549 = arith.mulf %548, %547 : vector<16x128xf32>
    %550 = math.tanh %549 : vector<16x128xf32>
    %cst_182 = arith.constant 5.000000e-01 : f32
    %551 = vector.broadcast %cst_182 : f32 to vector<16x128xf32>
    %552 = arith.mulf %551, %550 : vector<16x128xf32>
    %cst_183 = arith.constant 5.000000e-01 : f32
    %553 = vector.broadcast %cst_183 : f32 to vector<16x128xf32>
    %554 = arith.addf %552, %553 : vector<16x128xf32>
    %555 = vector.extract_strided_slice %532 {offsets = [0, 256], sizes = [16, 128], strides = [1, 1]} : vector<16x512xf32> to vector<16x128xf32>
    %556 = math.tanh %555 : vector<16x128xf32>
    %557 = vector.extract_strided_slice %532 {offsets = [0, 384], sizes = [16, 128], strides = [1, 1]} : vector<16x512xf32> to vector<16x128xf32>
    %cst_184 = arith.constant 5.000000e-01 : f32
    %558 = vector.broadcast %cst_184 : f32 to vector<16x128xf32>
    %559 = arith.mulf %558, %557 : vector<16x128xf32>
    %560 = math.tanh %559 : vector<16x128xf32>
    %cst_185 = arith.constant 5.000000e-01 : f32
    %561 = vector.broadcast %cst_185 : f32 to vector<16x128xf32>
    %562 = arith.mulf %561, %560 : vector<16x128xf32>
    %cst_186 = arith.constant 5.000000e-01 : f32
    %563 = vector.broadcast %cst_186 : f32 to vector<16x128xf32>
    %564 = arith.addf %562, %563 : vector<16x128xf32>
    %565 = arith.mulf %554, %482 : vector<16x128xf32>
    %566 = arith.mulf %546, %556 : vector<16x128xf32>
    %567 = arith.addf %565, %566 : vector<16x128xf32>
    %568 = math.tanh %567 : vector<16x128xf32>
    %569 = arith.mulf %564, %568 : vector<16x128xf32>
    %570 = vector.extract_strided_slice %538 {offsets = [0, 0], sizes = [16, 128], strides = [1, 1]} : vector<16x512xf32> to vector<16x128xf32>
    %cst_187 = arith.constant 5.000000e-01 : f32
    %571 = vector.broadcast %cst_187 : f32 to vector<16x128xf32>
    %572 = arith.mulf %571, %570 : vector<16x128xf32>
    %573 = math.tanh %572 : vector<16x128xf32>
    %cst_188 = arith.constant 5.000000e-01 : f32
    %574 = vector.broadcast %cst_188 : f32 to vector<16x128xf32>
    %575 = arith.mulf %574, %573 : vector<16x128xf32>
    %cst_189 = arith.constant 5.000000e-01 : f32
    %576 = vector.broadcast %cst_189 : f32 to vector<16x128xf32>
    %577 = arith.addf %575, %576 : vector<16x128xf32>
    %578 = vector.extract_strided_slice %538 {offsets = [0, 128], sizes = [16, 128], strides = [1, 1]} : vector<16x512xf32> to vector<16x128xf32>
    %cst_190 = arith.constant 5.000000e-01 : f32
    %579 = vector.broadcast %cst_190 : f32 to vector<16x128xf32>
    %580 = arith.mulf %579, %578 : vector<16x128xf32>
    %581 = math.tanh %580 : vector<16x128xf32>
    %cst_191 = arith.constant 5.000000e-01 : f32
    %582 = vector.broadcast %cst_191 : f32 to vector<16x128xf32>
    %583 = arith.mulf %582, %581 : vector<16x128xf32>
    %cst_192 = arith.constant 5.000000e-01 : f32
    %584 = vector.broadcast %cst_192 : f32 to vector<16x128xf32>
    %585 = arith.addf %583, %584 : vector<16x128xf32>
    %586 = vector.extract_strided_slice %538 {offsets = [0, 256], sizes = [16, 128], strides = [1, 1]} : vector<16x512xf32> to vector<16x128xf32>
    %587 = math.tanh %586 : vector<16x128xf32>
    %588 = vector.extract_strided_slice %538 {offsets = [0, 384], sizes = [16, 128], strides = [1, 1]} : vector<16x512xf32> to vector<16x128xf32>
    %cst_193 = arith.constant 5.000000e-01 : f32
    %589 = vector.broadcast %cst_193 : f32 to vector<16x128xf32>
    %590 = arith.mulf %589, %588 : vector<16x128xf32>
    %591 = math.tanh %590 : vector<16x128xf32>
    %cst_194 = arith.constant 5.000000e-01 : f32
    %592 = vector.broadcast %cst_194 : f32 to vector<16x128xf32>
    %593 = arith.mulf %592, %591 : vector<16x128xf32>
    %cst_195 = arith.constant 5.000000e-01 : f32
    %594 = vector.broadcast %cst_195 : f32 to vector<16x128xf32>
    %595 = arith.addf %593, %594 : vector<16x128xf32>
    %596 = arith.mulf %585, %513 : vector<16x128xf32>
    %597 = arith.mulf %577, %587 : vector<16x128xf32>
    %598 = arith.addf %596, %597 : vector<16x128xf32>
    %599 = math.tanh %598 : vector<16x128xf32>
    %600 = arith.mulf %595, %599 : vector<16x128xf32>
    %601 = arith.truncf %569 : vector<16x128xf32> to vector<16x128xbf16>
    %602 = arith.index_cast %523 : i32 to index
    %c0_196 = arith.constant 0 : index
    %603 = vector.load %arg10[%602, %c0_196] : memref<128x256xbf16, #tpu.memory_space<vmem>>, vector<16x128xbf16>
    tpu.vector_store %arg10[%602, %c0_196], %601 {strides = array<i32>} : memref<128x256xbf16, #tpu.memory_space<vmem>>, vector<16x128xbf16>,
    %604 = arith.truncf %600 : vector<16x128xf32> to vector<16x128xbf16>
    %605 = arith.index_cast %526 : i32 to index
    %c128_197 = arith.constant 128 : index
    %606 = vector.load %arg10[%605, %c128_197] : memref<128x256xbf16, #tpu.memory_space<vmem>>, vector<16x128xbf16>
    tpu.vector_store %arg10[%605, %c128_197], %604 {strides = array<i32>} : memref<128x256xbf16, #tpu.memory_space<vmem>>, vector<16x128xbf16>,
    %c7_i32_198 = arith.constant 7 : i32
    %c16_i32_199 = arith.constant 16 : i32
    %607 = arith.muli %c7_i32_198, %c16_i32_199 : i32
    %608 = tpu.assume_multiple %607, 16 : i32
    %c7_i32_200 = arith.constant 7 : i32
    %609 = arith.subi %c7_i32_200, %c7_i32_198 : i32
    %c16_i32_201 = arith.constant 16 : i32
    %610 = arith.muli %609, %c16_i32_201 : i32
    %611 = tpu.assume_multiple %610, 16 : i32
    %612 = arith.index_cast %608 : i32 to index
    %c0_202 = arith.constant 0 : index
    %613 = vector.load %arg9[%612, %c0_202] : memref<128x1024xbf16, #tpu.memory_space<vmem>>, vector<16x512xbf16>
    %614 = arith.truncf %569 : vector<16x128xf32> to vector<16x128xbf16>
    %cst_203 = arith.constant dense<0.000000e+00> : vector<16x512xf32>
    %615 = tpu.matmul %614, %9, %cst_203 {dimension_numbers = #tpu.dot_dimension_numbers<[1], [0], [0], [1], [0, 0, 1, 1], [], []>} : vector<16x128xbf16>, vector<128x512xbf16>, vector<16x512xf32> -> vector<16x512xf32>
    %616 = arith.extf %613 : vector<16x512xbf16> to vector<16x512xf32>
    %617 = arith.addf %616, %615 : vector<16x512xf32>
    %618 = arith.index_cast %611 : i32 to index
    %c512_204 = arith.constant 512 : index
    %619 = vector.load %arg9[%618, %c512_204] : memref<128x1024xbf16, #tpu.memory_space<vmem>>, vector<16x512xbf16>
    %620 = arith.truncf %600 : vector<16x128xf32> to vector<16x128xbf16>
    %cst_205 = arith.constant dense<0.000000e+00> : vector<16x512xf32>
    %621 = tpu.matmul %620, %10, %cst_205 {dimension_numbers = #tpu.dot_dimension_numbers<[1], [0], [0], [1], [0, 0, 1, 1], [], []>} : vector<16x128xbf16>, vector<128x512xbf16>, vector<16x512xf32> -> vector<16x512xf32>
    %622 = arith.extf %619 : vector<16x512xbf16> to vector<16x512xf32>
    %623 = arith.addf %622, %621 : vector<16x512xf32>
    %624 = vector.extract_strided_slice %617 {offsets = [0, 0], sizes = [16, 128], strides = [1, 1]} : vector<16x512xf32> to vector<16x128xf32>
    %cst_206 = arith.constant 5.000000e-01 : f32
    %625 = vector.broadcast %cst_206 : f32 to vector<16x128xf32>
    %626 = arith.mulf %625, %624 : vector<16x128xf32>
    %627 = math.tanh %626 : vector<16x128xf32>
    %cst_207 = arith.constant 5.000000e-01 : f32
    %628 = vector.broadcast %cst_207 : f32 to vector<16x128xf32>
    %629 = arith.mulf %628, %627 : vector<16x128xf32>
    %cst_208 = arith.constant 5.000000e-01 : f32
    %630 = vector.broadcast %cst_208 : f32 to vector<16x128xf32>
    %631 = arith.addf %629, %630 : vector<16x128xf32>
    %632 = vector.extract_strided_slice %617 {offsets = [0, 128], sizes = [16, 128], strides = [1, 1]} : vector<16x512xf32> to vector<16x128xf32>
    %cst_209 = arith.constant 5.000000e-01 : f32
    %633 = vector.broadcast %cst_209 : f32 to vector<16x128xf32>
    %634 = arith.mulf %633, %632 : vector<16x128xf32>
    %635 = math.tanh %634 : vector<16x128xf32>
    %cst_210 = arith.constant 5.000000e-01 : f32
    %636 = vector.broadcast %cst_210 : f32 to vector<16x128xf32>
    %637 = arith.mulf %636, %635 : vector<16x128xf32>
    %cst_211 = arith.constant 5.000000e-01 : f32
    %638 = vector.broadcast %cst_211 : f32 to vector<16x128xf32>
    %639 = arith.addf %637, %638 : vector<16x128xf32>
    %640 = vector.extract_strided_slice %617 {offsets = [0, 256], sizes = [16, 128], strides = [1, 1]} : vector<16x512xf32> to vector<16x128xf32>
    %641 = math.tanh %640 : vector<16x128xf32>
    %642 = vector.extract_strided_slice %617 {offsets = [0, 384], sizes = [16, 128], strides = [1, 1]} : vector<16x512xf32> to vector<16x128xf32>
    %cst_212 = arith.constant 5.000000e-01 : f32
    %643 = vector.broadcast %cst_212 : f32 to vector<16x128xf32>
    %644 = arith.mulf %643, %642 : vector<16x128xf32>
    %645 = math.tanh %644 : vector<16x128xf32>
    %cst_213 = arith.constant 5.000000e-01 : f32
    %646 = vector.broadcast %cst_213 : f32 to vector<16x128xf32>
    %647 = arith.mulf %646, %645 : vector<16x128xf32>
    %cst_214 = arith.constant 5.000000e-01 : f32
    %648 = vector.broadcast %cst_214 : f32 to vector<16x128xf32>
    %649 = arith.addf %647, %648 : vector<16x128xf32>
    %650 = arith.mulf %639, %567 : vector<16x128xf32>
    %651 = arith.mulf %631, %641 : vector<16x128xf32>
    %652 = arith.addf %650, %651 : vector<16x128xf32>
    %653 = math.tanh %652 : vector<16x128xf32>
    %654 = arith.mulf %649, %653 : vector<16x128xf32>
    %655 = vector.extract_strided_slice %623 {offsets = [0, 0], sizes = [16, 128], strides = [1, 1]} : vector<16x512xf32> to vector<16x128xf32>
    %cst_215 = arith.constant 5.000000e-01 : f32
    %656 = vector.broadcast %cst_215 : f32 to vector<16x128xf32>
    %657 = arith.mulf %656, %655 : vector<16x128xf32>
    %658 = math.tanh %657 : vector<16x128xf32>
    %cst_216 = arith.constant 5.000000e-01 : f32
    %659 = vector.broadcast %cst_216 : f32 to vector<16x128xf32>
    %660 = arith.mulf %659, %658 : vector<16x128xf32>
    %cst_217 = arith.constant 5.000000e-01 : f32
    %661 = vector.broadcast %cst_217 : f32 to vector<16x128xf32>
    %662 = arith.addf %660, %661 : vector<16x128xf32>
    %663 = vector.extract_strided_slice %623 {offsets = [0, 128], sizes = [16, 128], strides = [1, 1]} : vector<16x512xf32> to vector<16x128xf32>
    %cst_218 = arith.constant 5.000000e-01 : f32
    %664 = vector.broadcast %cst_218 : f32 to vector<16x128xf32>
    %665 = arith.mulf %664, %663 : vector<16x128xf32>
    %666 = math.tanh %665 : vector<16x128xf32>
    %cst_219 = arith.constant 5.000000e-01 : f32
    %667 = vector.broadcast %cst_219 : f32 to vector<16x128xf32>
    %668 = arith.mulf %667, %666 : vector<16x128xf32>
    %cst_220 = arith.constant 5.000000e-01 : f32
    %669 = vector.broadcast %cst_220 : f32 to vector<16x128xf32>
    %670 = arith.addf %668, %669 : vector<16x128xf32>
    %671 = vector.extract_strided_slice %623 {offsets = [0, 256], sizes = [16, 128], strides = [1, 1]} : vector<16x512xf32> to vector<16x128xf32>
    %672 = math.tanh %671 : vector<16x128xf32>
    %673 = vector.extract_strided_slice %623 {offsets = [0, 384], sizes = [16, 128], strides = [1, 1]} : vector<16x512xf32> to vector<16x128xf32>
    %cst_221 = arith.constant 5.000000e-01 : f32
    %674 = vector.broadcast %cst_221 : f32 to vector<16x128xf32>
    %675 = arith.mulf %674, %673 : vector<16x128xf32>
    %676 = math.tanh %675 : vector<16x128xf32>
    %cst_222 = arith.constant 5.000000e-01 : f32
    %677 = vector.broadcast %cst_222 : f32 to vector<16x128xf32>
    %678 = arith.mulf %677, %676 : vector<16x128xf32>
    %cst_223 = arith.constant 5.000000e-01 : f32
    %679 = vector.broadcast %cst_223 : f32 to vector<16x128xf32>
    %680 = arith.addf %678, %679 : vector<16x128xf32>
    %681 = arith.mulf %670, %598 : vector<16x128xf32>
    %682 = arith.mulf %662, %672 : vector<16x128xf32>
    %683 = arith.addf %681, %682 : vector<16x128xf32>
    %684 = math.tanh %683 : vector<16x128xf32>
    %685 = arith.mulf %680, %684 : vector<16x128xf32>
    %686 = arith.truncf %654 : vector<16x128xf32> to vector<16x128xbf16>
    %687 = arith.index_cast %608 : i32 to index
    %c0_224 = arith.constant 0 : index
    %688 = vector.load %arg10[%687, %c0_224] : memref<128x256xbf16, #tpu.memory_space<vmem>>, vector<16x128xbf16>
    tpu.vector_store %arg10[%687, %c0_224], %686 {strides = array<i32>} : memref<128x256xbf16, #tpu.memory_space<vmem>>, vector<16x128xbf16>,
    %689 = arith.truncf %685 : vector<16x128xf32> to vector<16x128xbf16>
    %690 = arith.index_cast %611 : i32 to index
    %c128_225 = arith.constant 128 : index
    %691 = vector.load %arg10[%690, %c128_225] : memref<128x256xbf16, #tpu.memory_space<vmem>>, vector<16x128xbf16>
    tpu.vector_store %arg10[%690, %c128_225], %689 {strides = array<i32>} : memref<128x256xbf16, #tpu.memory_space<vmem>>, vector<16x128xbf16>,
    %c8_i32 = arith.constant 8 : i32
    %c0_226 = arith.constant 0 : index
    %c0_227 = arith.constant 0 : index
    %692 = vector.load %arg10[%c0_226, %c0_227] : memref<128x256xbf16, #tpu.memory_space<vmem>>, vector<128x256xbf16>
    %c0_228 = arith.constant 0 : index
    %c0_229 = arith.constant 0 : index
    %693 = vector.load %arg6[%c0_228, %c0_229] : memref<256x128xbf16, #tpu.memory_space<vmem>>, vector<256x128xbf16>
    %cst_230 = arith.constant dense<0.000000e+00> : vector<128x128xf32>
    %694 = tpu.matmul %692, %693, %cst_230 {dimension_numbers = #tpu.dot_dimension_numbers<[1], [0], [0], [1], [0, 0, 1, 1], [], []>} : vector<128x256xbf16>, vector<256x128xbf16>, vector<128x128xf32> -> vector<128x128xf32>
    %c0_231 = arith.constant 0 : index
    %c0_232 = arith.constant 0 : index
    %695 = vector.load %arg7[%c0_231, %c0_232] : memref<1x128xf32, #tpu.memory_space<vmem>>, vector<1x128xf32>
    %696 = vector.broadcast %695 : vector<1x128xf32> to vector<128x128xf32>
    %697 = arith.addf %694, %696 : vector<128x128xf32>
    %c0_233 = arith.constant 0 : index
    %c0_234 = arith.constant 0 : index
    %c0_235 = arith.constant 0 : index
    %698 = vector.load %arg8[%c0_233, %c0_234, %c0_235] : memref<1x128x128xf32, #tpu.memory_space<vmem>>, vector<1x128x128xf32>
    %699 = vector.shape_cast %698 : vector<1x128x128xf32> to vector<128x128xf32>
    %700 = vector.shape_cast %697 : vector<128x128xf32> to vector<1x128x128xf32>
    tpu.vector_store %arg8[%c0_233, %c0_234, %c0_235], %700 {strides = array<i32>} : memref<1x128x128xf32, #tpu.memory_space<vmem>>, vector<1x128x128xf32>,
    return
  }
  func.func @transform_0(%arg0: i32) -> (i32, i32, i32) {
    %c0_i32 = arith.constant 0 : i32
    %c0_i32_0 = arith.constant 0 : i32
    %c0_i32_1 = arith.constant 0 : i32
    return %arg0, %c0_i32, %c0_i32_0 : i32, i32, i32
  }
  func.func @transform_1(%arg0: i32) -> (i32, i32) {
    %c0_i32 = arith.constant 0 : i32
    %c0_i32_0 = arith.constant 0 : i32
    %c0_i32_1 = arith.constant 0 : i32
    return %c0_i32, %c0_i32_0 : i32, i32
  }
  func.func @transform_2(%arg0: i32) -> (i32, i32) {
    %c0_i32 = arith.constant 0 : i32
    %c0_i32_0 = arith.constant 0 : i32
    %c0_i32_1 = arith.constant 0 : i32
    return %c0_i32, %c0_i32_0 : i32, i32
  }
  func.func @transform_3(%arg0: i32) -> (i32, i32) {
    %c0_i32 = arith.constant 0 : i32
    %c0_i32_0 = arith.constant 0 : i32
    %c0_i32_1 = arith.constant 0 : i32
    return %c0_i32, %c0_i32_0 : i32, i32
  }
  func.func @transform_4(%arg0: i32) -> (i32, i32) {
    %c0_i32 = arith.constant 0 : i32
    %c0_i32_0 = arith.constant 0 : i32
    %c0_i32_1 = arith.constant 0 : i32
    return %c0_i32, %c0_i32_0 : i32, i32
  }
  func.func @transform_5(%arg0: i32) -> (i32, i32) {
    %c0_i32 = arith.constant 0 : i32
    %c0_i32_0 = arith.constant 0 : i32
    %c0_i32_1 = arith.constant 0 : i32
    return %c0_i32, %c0_i32_0 : i32, i32
  }
  func.func @transform_6(%arg0: i32) -> (i32, i32) {
    %c0_i32 = arith.constant 0 : i32
    %c0_i32_0 = arith.constant 0 : i32
    %c0_i32_1 = arith.constant 0 : i32
    return %c0_i32, %c0_i32_0 : i32, i32
  }
  func.func @transform_7(%arg0: i32) -> (i32, i32, i32) {
    %c0_i32 = arith.constant 0 : i32
    %c0_i32_0 = arith.constant 0 : i32
    %c0_i32_1 = arith.constant 0 : i32
    return %arg0, %c0_i32, %c0_i32_0 : i32, i32, i32
  }
}

</mosaic_0001>

<llo_original>
// kernel: tpu_custom_call.1
$region0: #{tpu_custom_call.1}
  #allocation0 [shape = 'u32[]', space=smem, size = 0x4, offset = 0x4, fixed_abs, tag = 'smem constant byte address 0x4 - core index']
  #allocation1 [shape = 'u32[144,128]{1,0:T(1,128)}', space=vmem, size = 0x12000, scoped, tag = 'internal scratch']
  #allocation2 [shape = 'bf16[128,1024]{1,0:T(16,128)(2,1)}', space=vmem, size = 0x40000, scoped, tag = 'scratch operand']
  #allocation3 [shape = 'bf16[128,256]{1,0:T(16,128)(2,1)}', space=vmem, size = 0x10000, scoped, tag = 'scratch operand']
  %s0 = inlined_call_operand.vmem [shape: bf16[1,128,32], index: 0, kind: input, shape index: {}]
  %s1 = inlined_call_operand.hbm [shape: bf16[32,1024], index: 1, kind: input, shape index: {}]
  %s2 = inlined_call_operand.hbm [shape: bf16[128,512], index: 2, kind: input, shape index: {}]
  %s3 = inlined_call_operand.hbm [shape: bf16[128,512], index: 3, kind: input, shape index: {}]
  %s4 = inlined_call_operand.vmem [shape: f32[1,1024], index: 4, kind: input, shape index: {}]
  %s5 = inlined_call_operand.hbm [shape: bf16[256,128], index: 5, kind: input, shape index: {}]
  %s6 = inlined_call_operand.vmem [shape: f32[1,128], index: 6, kind: input, shape index: {}]
  %s7 = inlined_call_operand.hbm [shape: f32[1,128,128], index: 7, kind: output, shape index: {}]
  %s8 = sld [smem:[#allocation0]]
  $region54: #{tpu_custom_call.1} parent=0
    _
  %s10 = ssub.s32 1, %s8
  %s11 = scalar_select 0, %s10, %s8
  $region1: #{tpu_custom_call.1} parent=0
    #allocation4 [shape = 'u8[65536]{0}', space=vmem, size = 0x10000, scoped, tag = 'input window, operand 1, single buffered']
    #allocation5 [shape = 's32[1]{0}', space=sflag, size = 0x4, scoped, tag = 'scoped memory for tpu_custom_call.1']
    #allocation6 [shape = 's32[1]{0}', space=sflag, size = 0x4, scoped, tag = 'scoped memory for tpu_custom_call.1']
    #allocation7 [shape = 'u8[131072]{0}', space=vmem, size = 0x20000, scoped, tag = 'input window, operand 2, single buffered']
    #allocation8 [shape = 's32[1]{0}', space=sflag, size = 0x4, scoped, tag = 'scoped memory for tpu_custom_call.1']
    #allocation9 [shape = 'u8[131072]{0}', space=vmem, size = 0x20000, scoped, tag = 'input window, operand 3, single buffered']
    #allocation10 [shape = 'u8[65536]{0}', space=vmem, size = 0x10000, scoped, tag = 'input window, operand 5, single buffered']
    #allocation11 [shape = 's32[1]{0}', space=sflag, size = 0x4, scoped, tag = 'scoped memory for tpu_custom_call.1']
    #allocation12 [shape = 'u8[65536]{0}', space=vmem, size = 0x10000, scoped, tag = 'output window, operand 0, single buffered']
    %12 = vsyncpa [#allocation5], 0
    %13 = vsyncpa [#allocation8], 0
    %14 = vsyncpa [#allocation11], 0
    %15 = vsyncpa [#allocation6], 0
    // Predicated region
    $region2: #{tpu_custom_call.1} parent=1 // pred_check
      _
    $region3: #{tpu_custom_call.1} parent=1 // pred_check_branch
      %17 = sbr.rel (0) target = $region5
    $region4: #{tpu_custom_call.1} parent=1 // pred_region
      _
    $region5: #{tpu_custom_call.1} parent=1 // pred_fallthru
      _
    // Predicated region
    $region6: #{tpu_custom_call.1} parent=1 // pred_check
      _
    $region7: #{tpu_custom_call.1} parent=1 // pred_check_branch
      %19 = sbr.rel (0) target = $region9
    $region8: #{tpu_custom_call.1} parent=1 // pred_region
      %s21 = ssub.s32 2048, 2048
      %22 = vsyncadd [#allocation5], %s21
      %s23 = sshll.u32 [#allocation4], 4
      %s24 = int_to_ptr.vmem [resolvable:$true] %s23
      %29 = dma.hbm_to_vmem [thread:$0]  %s1, 2048, %s24, [#allocation5], 512, 512, 32
    $region9: #{tpu_custom_call.1} parent=1 // pred_fallthru
      _
    // Predicated region
    $region10: #{tpu_custom_call.1} parent=1 // pred_check
      _
    $region11: #{tpu_custom_call.1} parent=1 // pred_check_branch
      %31 = sbr.rel (0) target = $region13
    $region12: #{tpu_custom_call.1} parent=1 // pred_region
      %s33 = ssub.s32 4096, 4096
      %34 = vsyncadd [#allocation8], %s33
      %s35 = sshll.u32 [#allocation7], 4
      %s36 = int_to_ptr.vmem [resolvable:$true] %s35
      %41 = dma.hbm_to_vmem [thread:$0]  %s2, 4096, %s36, [#allocation8], 256, 256, 16
    $region13: #{tpu_custom_call.1} parent=1 // pred_fallthru
      _
    // Predicated region
    $region14: #{tpu_custom_call.1} parent=1 // pred_check
      _
    $region15: #{tpu_custom_call.1} parent=1 // pred_check_branch
      %43 = sbr.rel (0) target = $region17
    $region16: #{tpu_custom_call.1} parent=1 // pred_region
      %s45 = ssub.s32 4096, 4096
      %46 = vsyncadd [#allocation8], %s45
      %s47 = sshll.u32 [#allocation9], 4
      %s48 = int_to_ptr.vmem [resolvable:$true] %s47
      %53 = dma.hbm_to_vmem [thread:$0]  %s3, 4096, %s48, [#allocation8], 256, 256, 16
    $region17: #{tpu_custom_call.1} parent=1 // pred_fallthru
      _
    // Predicated region
    $region18: #{tpu_custom_call.1} parent=1 // pred_check
      _
    $region19: #{tpu_custom_call.1} parent=1 // pred_check_branch
      %55 = sbr.rel (0) target = $region21
    $region20: #{tpu_custom_call.1} parent=1 // pred_region
      _
    $region21: #{tpu_custom_call.1} parent=1 // pred_fallthru
      _
    // Predicated region
    $region22: #{tpu_custom_call.1} parent=1 // pred_check
      _
    $region23: #{tpu_custom_call.1} parent=1 // pred_check_branch
      %57 = sbr.rel (0) target = $region25
    $region24: #{tpu_custom_call.1} parent=1 // pred_region
      %s59 = ssub.s32 2048, 2048
      %60 = vsyncadd [#allocation11], %s59
      %s61 = sshll.u32 [#allocation10], 4
      %s62 = int_to_ptr.vmem [resolvable:$true] %s61
      %67 = dma.hbm_to_vmem [thread:$0]  %s5, 2048, %s62, [#allocation11], 64, 64, 4
    $region25: #{tpu_custom_call.1} parent=1 // pred_fallthru
      _
    // Predicated region
    $region26: #{tpu_custom_call.1} parent=1 // pred_check
      _
    $region27: #{tpu_custom_call.1} parent=1 // pred_check_branch
      %69 = sbr.rel (0) target = $region29
    $region28: #{tpu_custom_call.1} parent=1 // pred_region
      _
    $region29: #{tpu_custom_call.1} parent=1 // pred_fallthru
      _
    // Predicated region
    $region30: #{tpu_custom_call.1} parent=1 // pred_check
      _
    $region31: #{tpu_custom_call.1} parent=1 // pred_check_branch
      %71 = sbr.rel (0) target = $region33
    $region32: #{tpu_custom_call.1} parent=1 // pred_region
      %72 = dma.done [#allocation5], 2048
    $region33: #{tpu_custom_call.1} parent=1 // pred_fallthru
      _
    // Predicated region
    $region34: #{tpu_custom_call.1} parent=1 // pred_check
      _
    $region35: #{tpu_custom_call.1} parent=1 // pred_check_branch
      %74 = sbr.rel (0) target = $region37
    $region36: #{tpu_custom_call.1} parent=1 // pred_region
      %75 = dma.done [#allocation8], 4096
    $region37: #{tpu_custom_call.1} parent=1 // pred_fallthru
      _
    // Predicated region
    $region38: #{tpu_custom_call.1} parent=1 // pred_check
      _
    $region39: #{tpu_custom_call.1} parent=1 // pred_check_branch
      %77 = sbr.rel (0) target = $region41
    $region40: #{tpu_custom_call.1} parent=1 // pred_region
      %78 = dma.done [#allocation8], 4096
    $region41: #{tpu_custom_call.1} parent=1 // pred_fallthru
      _
    // Predicated region
    $region42: #{tpu_custom_call.1} parent=1 // pred_check
      _
    $region43: #{tpu_custom_call.1} parent=1 // pred_check_branch
      %80 = sbr.rel (0) target = $region45
    $region44: #{tpu_custom_call.1} parent=1 // pred_region
      %81 = dma.done [#allocation11], 2048
    $region45: #{tpu_custom_call.1} parent=1 // pred_fallthru
      _
    %v83 = vld [vmem:[%s0] sm:$0xf]
    %v84 = vld [vmem:[%s0 + $0x4] sm:$0xf]
    %v85 = vld [vmem:[%s0 + $0x8] sm:$0xf]
    %v86 = vld [vmem:[%s0 + $0xc] sm:$0xf]
    %v87 = vld [vmem:[%s0 + $0x10] sm:$0xf]
    %v88 = vld [vmem:[%s0 + $0x14] sm:$0xf]
    %v89 = vld [vmem:[%s0 + $0x18] sm:$0xf]
    %v90 = vld [vmem:[%s0 + $0x1c] sm:$0xf]
    %v91 = vld [vmem:[%s0 + $0x20] sm:$0xf]
    %v92 = vld [vmem:[%s0 + $0x24] sm:$0xf]
    %v93 = vld [vmem:[%s0 + $0x28] sm:$0xf]
    %v94 = vld [vmem:[%s0 + $0x2c] sm:$0xf]
    %v95 = vld [vmem:[%s0 + $0x30] sm:$0xf]
    %v96 = vld [vmem:[%s0 + $0x34] sm:$0xf]
    %v97 = vld [vmem:[%s0 + $0x38] sm:$0xf]
    %v98 = vld [vmem:[%s0 + $0x3c] sm:$0xf]
    %v99 = vld [vmem:[#allocation4] sm:$0xff]
    %v100 = vld [vmem:[#allocation4 + $0x8] sm:$0xff]
    %v101 = vld [vmem:[#allocation4 + $0x10] sm:$0xff]
    %v102 = vld [vmem:[#allocation4 + $0x18] sm:$0xff]
    %v103 = vld [vmem:[#allocation4 + $0x20] sm:$0xff]
    %v104 = vld [vmem:[#allocation4 + $0x28] sm:$0xff]
    %v105 = vld [vmem:[#allocation4 + $0x30] sm:$0xff]
    %v106 = vld [vmem:[#allocation4 + $0x38] sm:$0xff]
    %v107 = vld [vmem:[#allocation4 + $0x40] sm:$0xff]
    %v108 = vld [vmem:[#allocation4 + $0x48] sm:$0xff]
    %v109 = vld [vmem:[#allocation4 + $0x50] sm:$0xff]
    %v110 = vld [vmem:[#allocation4 + $0x58] sm:$0xff]
    %v111 = vld [vmem:[#allocation4 + $0x60] sm:$0xff]
    %v112 = vld [vmem:[#allocation4 + $0x68] sm:$0xff]
    %v113 = vld [vmem:[#allocation4 + $0x70] sm:$0xff]
    %v114 = vld [vmem:[#allocation4 + $0x78] sm:$0xff]
    %v115 = vld [vmem:[%s4] sm:$0xff]
    %v117 = vlaneseq
    %v118 = vshrl.u32 %v117, 7
    %v119 = vsub.s32 0, %v118
    %v120 = vrot.slane %v115, %v119
    %v121 = vlaneseq
    %v122 = vshrl.u32 %v121, 7
    %v123 = vsub.s32 1, %v122
    %v124 = vrot.slane %v115, %v123
    %v125 = vlaneseq
    %v126 = vshrl.u32 %v125, 7
    %v127 = vsub.s32 2, %v126
    %v128 = vrot.slane %v115, %v127
    %v129 = vlaneseq
    %v130 = vshrl.u32 %v129, 7
    %v131 = vsub.s32 3, %v130
    %v132 = vrot.slane %v115, %v131
    %v133 = vlaneseq
    %v134 = vshrl.u32 %v133, 7
    %v135 = vsub.s32 4, %v134
    %v136 = vrot.slane %v115, %v135
    %v137 = vlaneseq
    %v138 = vshrl.u32 %v137, 7
    %v139 = vsub.s32 5, %v138
    %v140 = vrot.slane %v115, %v139
    %v141 = vlaneseq
    %v142 = vshrl.u32 %v141, 7
    %v143 = vsub.s32 6, %v142
    %v144 = vrot.slane %v115, %v143
    %v145 = vlaneseq
    %v146 = vshrl.u32 %v145, 7
    %v147 = vsub.s32 7, %v146
    %v148 = vrot.slane %v115, %v147
    %v173 = vunpack.c.l.b16 %v83
    %v174 = vunpack.c.l.b16 %v84
    %v175 = vunpack.c.l.b16 %v85
    %v176 = vunpack.c.l.b16 %v86
    %v177 = vunpack.c.l.b16 %v87
    %v178 = vunpack.c.l.b16 %v88
    %v179 = vunpack.c.l.b16 %v89
    %v180 = vunpack.c.l.b16 %v90
    %v181 = vunpack.c.l.b16 %v91
    %v182 = vunpack.c.l.b16 %v92
    %v183 = vunpack.c.l.b16 %v93
    %v184 = vunpack.c.l.b16 %v94
    %v185 = vunpack.c.l.b16 %v95
    %v186 = vunpack.c.l.b16 %v96
    %v187 = vunpack.c.l.b16 %v97
    %v188 = vunpack.c.l.b16 %v98
    %v189 = vpack.c.b16 %v174, %v173
    %v190 = vpack.c.b16 %v176, %v175
    %v191 = vpack.c.b16 %v178, %v177
    %v192 = vpack.c.b16 %v180, %v179
    %v193 = vpack.c.b16 %v182, %v181
    %v194 = vpack.c.b16 %v184, %v183
    %v195 = vpack.c.b16 %v186, %v185
    %v196 = vpack.c.b16 %v188, %v187
    %v213 = vunpack.c.l.b16 %v99
    %v214 = vunpack.c.h.b16 %v99
    %v215 = vunpack.c.l.b16 %v100
    %v216 = vunpack.c.h.b16 %v100
    %v217 = vunpack.c.l.b16 %v101
    %v218 = vunpack.c.h.b16 %v101
    %v219 = vunpack.c.l.b16 %v102
    %v220 = vunpack.c.h.b16 %v102
    %v221 = vunpack.c.l.b16 %v103
    %v222 = vunpack.c.h.b16 %v103
    %v223 = vunpack.c.l.b16 %v104
    %v224 = vunpack.c.h.b16 %v104
    %v225 = vunpack.c.l.b16 %v105
    %v226 = vunpack.c.h.b16 %v105
    %v227 = vunpack.c.l.b16 %v106
    %v228 = vunpack.c.h.b16 %v106
    %v229 = vunpack.c.l.b16 %v107
    %v230 = vunpack.c.h.b16 %v107
    %v231 = vunpack.c.l.b16 %v108
    %v232 = vunpack.c.h.b16 %v108
    %v233 = vunpack.c.l.b16 %v109
    %v234 = vunpack.c.h.b16 %v109
    %v235 = vunpack.c.l.b16 %v110
    %v236 = vunpack.c.h.b16 %v110
    %v237 = vunpack.c.l.b16 %v111
    %v238 = vunpack.c.h.b16 %v111
    %v239 = vunpack.c.l.b16 %v112
    %v240 = vunpack.c.h.b16 %v112
    %v241 = vunpack.c.l.b16 %v113
    %v242 = vunpack.c.h.b16 %v113
    %v243 = vunpack.c.l.b16 %v114
    %v244 = vunpack.c.h.b16 %v114
    %v245 = vpack.c.b16 %v221, %v213
    %v246 = vpack.c.b16 %v222, %v214
    %v247 = vpack.c.b16 %v223, %v215
    %v248 = vpack.c.b16 %v224, %v216
    %v249 = vpack.c.b16 %v225, %v217
    %v250 = vpack.c.b16 %v226, %v218
    %v251 = vpack.c.b16 %v227, %v219
    %v252 = vpack.c.b16 %v228, %v220
    %v253 = vpack.c.b16 %v237, %v229
    %v254 = vpack.c.b16 %v238, %v230
    %v255 = vpack.c.b16 %v239, %v231
    %v256 = vpack.c.b16 %v240, %v232
    %v257 = vpack.c.b16 %v241, %v233
    %v258 = vpack.c.b16 %v242, %v234
    %v259 = vpack.c.b16 %v243, %v235
    %v260 = vpack.c.b16 %v244, %v236
    %vm277 = vcmask 261120
    %v279 = vsel %vm277, %v189, 0
    %v282 = vsel %vm277, %v190, 0
    %v285 = vsel %vm277, %v191, 0
    %v288 = vsel %vm277, %v192, 0
    %v291 = vsel %vm277, %v193, 0
    %v294 = vsel %vm277, %v194, 0
    %v297 = vsel %vm277, %v195, 0
    %v300 = vsel %vm277, %v196, 0
    %302 = vmatprep.subr.bf16.mxu0 %v246
    %303 = vmatpush1.bf16.msra.mxu0 %v245
    %304 = vmatprep.subr.bf16.mxu0 %v254
    %305 = vmatpush1.bf16.msra.mxu0 %v253
    %306 = vmatprep.subr.bf16.mxu0 0
    %307 = vmatpush1.bf16.msra.mxu0 0
    %308 = vmatprep.subr.bf16.mxu0 0
    %309 = vmatpush1.bf16.msra.mxu0 0
    %310 = vmatprep.subr.bf16.mxu0 0
    %311 = vmatpush1.bf16.msra.mxu0 0
    %312 = vmatprep.subr.bf16.mxu0 0
    %313 = vmatpush1.bf16.msra.mxu0 0
    %314 = vmatprep.subr.bf16.mxu0 0
    %315 = vmatpush1.bf16.msra.mxu0 0
    %316 = vmatprep.subr.bf16.mxu0 0
    %317 = vmatpush1.bf16.msra.mxu0 0
    %318 = vmatprep.subr.bf16.mxu0 0
    %319 = vmatpush1.bf16.msra.mxu0 0
    %320 = vmatprep.subr.bf16.mxu0 0
    %321 = vmatpush1.bf16.msra.mxu0 0
    %322 = vmatprep.subr.bf16.mxu0 0
    %323 = vmatpush1.bf16.msra.mxu0 0
    %324 = vmatprep.subr.bf16.mxu0 0
    %325 = vmatpush1.bf16.msra.mxu0 0
    %326 = vmatprep.subr.bf16.mxu0 0
    %327 = vmatpush1.bf16.msra.mxu0 0
    %328 = vmatprep.subr.bf16.mxu0 0
    %329 = vmatpush1.bf16.msra.mxu0 0
    %330 = vmatprep.subr.bf16.mxu0 0
    %331 = vmatpush1.bf16.msra.mxu0 0
    %332 = vmatprep.subr.bf16.mxu0 0
    %333 = vmatpush1.bf16.msra.mxu0 0
    %334 = vmatprep.mubr.bf16.mxu0 0
    %335 = vmatmul.mubr.bf16.gmra.mrb[0].mxu0 %v279
    %v336 = vpop.f32.mrb[0].mxu0
    %v337 = vadd.f32 %v120, %v336
    %v338 = vpop.f32.mrb[0].mxu0
    %v339 = vadd.f32 %v124, %v338
    %v340 = vpop.f32.mrb[0].mxu0
    %v341 = vadd.f32 %v120, %v340
    %v342 = vpop.f32.mrb[0].mxu0
    %v343 = vadd.f32 %v124, %v342
    %344 = vmatprep.mubr.bf16.mxu0 0
    %345 = vmatmul.mubr.bf16.gmra.mrb[0].mxu0 %v282
    %v346 = vpop.f32.mrb[0].mxu0
    %v347 = vadd.f32 %v120, %v346
    %v348 = vpop.f32.mrb[0].mxu0
    %v349 = vadd.f32 %v124, %v348
    %v350 = vpop.f32.mrb[0].mxu0
    %v351 = vadd.f32 %v120, %v350
    %v352 = vpop.f32.mrb[0].mxu0
    %v353 = vadd.f32 %v124, %v352
    %354 = vmatprep.mubr.bf16.mxu0 0
    %355 = vmatmul.mubr.bf16.gmra.mrb[0].mxu0 %v285
    %v356 = vpop.f32.mrb[0].mxu0
    %v357 = vadd.f32 %v120, %v356
    %v358 = vpop.f32.mrb[0].mxu0
    %v359 = vadd.f32 %v124, %v358
    %v360 = vpop.f32.mrb[0].mxu0
    %v361 = vadd.f32 %v120, %v360
    %v362 = vpop.f32.mrb[0].mxu0
    %v363 = vadd.f32 %v124, %v362
    %364 = vmatprep.mubr.bf16.mxu0 0
    %365 = vmatmul.mubr.bf16.gmra.mrb[0].mxu0 %v288
    %v366 = vpop.f32.mrb[0].mxu0
    %v367 = vadd.f32 %v120, %v366
    %v368 = vpop.f32.mrb[0].mxu0
    %v369 = vadd.f32 %v124, %v368
    %v370 = vpop.f32.mrb[0].mxu0
    %v371 = vadd.f32 %v120, %v370
    %v372 = vpop.f32.mrb[0].mxu0
    %v373 = vadd.f32 %v124, %v372
    %374 = vmatprep.mubr.bf16.mxu0 0
    %375 = vmatmul.mubr.bf16.gmra.mrb[0].mxu0 %v291
    %v376 = vpop.f32.mrb[0].mxu0
    %v377 = vadd.f32 %v120, %v376
    %v378 = vpop.f32.mrb[0].mxu0
    %v379 = vadd.f32 %v124, %v378
    %v380 = vpop.f32.mrb[0].mxu0
    %v381 = vadd.f32 %v120, %v380
    %v382 = vpop.f32.mrb[0].mxu0
    %v383 = vadd.f32 %v124, %v382
    %384 = vmatprep.mubr.bf16.mxu0 0
    %385 = vmatmul.mubr.bf16.gmra.mrb[0].mxu0 %v294
    %v386 = vpop.f32.mrb[0].mxu0
    %v387 = vadd.f32 %v120, %v386
    %v388 = vpop.f32.mrb[0].mxu0
    %v389 = vadd.f32 %v124, %v388
    %v390 = vpop.f32.mrb[0].mxu0
    %v391 = vadd.f32 %v120, %v390
    %v392 = vpop.f32.mrb[0].mxu0
    %v393 = vadd.f32 %v124, %v392
    %394 = vmatprep.mubr.bf16.mxu0 0
    %395 = vmatmul.mubr.bf16.gmra.mrb[0].mxu0 %v297
    %v396 = vpop.f32.mrb[0].mxu0
    %v397 = vadd.f32 %v120, %v396
    %v398 = vpop.f32.mrb[0].mxu0
    %v399 = vadd.f32 %v124, %v398
    %v400 = vpop.f32.mrb[0].mxu0
    %v401 = vadd.f32 %v120, %v400
    %v402 = vpop.f32.mrb[0].mxu0
    %v403 = vadd.f32 %v124, %v402
    %404 = vmatprep.mubr.bf16.mxu0 0
    %405 = vmatmul.mubr.bf16.gmra.mrb[0].mxu0 %v300
    %v406 = vpop.f32.mrb[0].mxu0
    %v407 = vadd.f32 %v120, %v406
    %v408 = vpop.f32.mrb[0].mxu0
    %v409 = vadd.f32 %v124, %v408
    %v410 = vpop.f32.mrb[0].mxu0
    %v411 = vadd.f32 %v120, %v410
    %v412 = vpop.f32.mrb[0].mxu0
    %v413 = vadd.f32 %v124, %v412
    %414 = vdwg.mxu0
    %415 = vmatprep.subr.bf16.mxu0 %v248
    %416 = vmatpush1.bf16.msra.mxu0 %v247
    %417 = vmatprep.subr.bf16.mxu0 %v256
    %418 = vmatpush1.bf16.msra.mxu0 %v255
    %419 = vmatprep.subr.bf16.mxu0 0
    %420 = vmatpush1.bf16.msra.mxu0 0
    %421 = vmatprep.subr.bf16.mxu0 0
    %422 = vmatpush1.bf16.msra.mxu0 0
    %423 = vmatprep.subr.bf16.mxu0 0
    %424 = vmatpush1.bf16.msra.mxu0 0
    %425 = vmatprep.subr.bf16.mxu0 0
    %426 = vmatpush1.bf16.msra.mxu0 0
    %427 = vmatprep.subr.bf16.mxu0 0
    %428 = vmatpush1.bf16.msra.mxu0 0
    %429 = vmatprep.subr.bf16.mxu0 0
    %430 = vmatpush1.bf16.msra.mxu0 0
    %431 = vmatprep.subr.bf16.mxu0 0
    %432 = vmatpush1.bf16.msra.mxu0 0
    %433 = vmatprep.subr.bf16.mxu0 0
    %434 = vmatpush1.bf16.msra.mxu0 0
    %435 = vmatprep.subr.bf16.mxu0 0
    %436 = vmatpush1.bf16.msra.mxu0 0
    %437 = vmatprep.subr.bf16.mxu0 0
    %438 = vmatpush1.bf16.msra.mxu0 0
    %439 = vmatprep.subr.bf16.mxu0 0
    %440 = vmatpush1.bf16.msra.mxu0 0
    %441 = vmatprep.subr.bf16.mxu0 0
    %442 = vmatpush1.bf16.msra.mxu0 0
    %443 = vmatprep.subr.bf16.mxu0 0
    %444 = vmatpush1.bf16.msra.mxu0 0
    %445 = vmatprep.subr.bf16.mxu0 0
    %446 = vmatpush1.bf16.msra.mxu0 0
    %447 = vmatprep.mubr.bf16.mxu0 0
    %448 = vmatmul.mubr.bf16.gmra.mrb[0].mxu0 %v279
    %v449 = vpop.f32.mrb[0].mxu0
    %v450 = vadd.f32 %v128, %v449
    %v451 = vpop.f32.mrb[0].mxu0
    %v452 = vadd.f32 %v132, %v451
    %v453 = vpop.f32.mrb[0].mxu0
    %v454 = vadd.f32 %v128, %v453
    %v455 = vpop.f32.mrb[0].mxu0
    %v456 = vadd.f32 %v132, %v455
    %457 = vmatprep.mubr.bf16.mxu0 0
    %458 = vmatmul.mubr.bf16.gmra.mrb[0].mxu0 %v282
    %v459 = vpop.f32.mrb[0].mxu0
    %v460 = vadd.f32 %v128, %v459
    %v461 = vpop.f32.mrb[0].mxu0
    %v462 = vadd.f32 %v132, %v461
    %v463 = vpop.f32.mrb[0].mxu0
    %v464 = vadd.f32 %v128, %v463
    %v465 = vpop.f32.mrb[0].mxu0
    %v466 = vadd.f32 %v132, %v465
    %467 = vmatprep.mubr.bf16.mxu0 0
    %468 = vmatmul.mubr.bf16.gmra.mrb[0].mxu0 %v285
    %v469 = vpop.f32.mrb[0].mxu0
    %v470 = vadd.f32 %v128, %v469
    %v471 = vpop.f32.mrb[0].mxu0
    %v472 = vadd.f32 %v132, %v471
    %v473 = vpop.f32.mrb[0].mxu0
    %v474 = vadd.f32 %v128, %v473
    %v475 = vpop.f32.mrb[0].mxu0
    %v476 = vadd.f32 %v132, %v475
    %477 = vmatprep.mubr.bf16.mxu0 0
    %478 = vmatmul.mubr.bf16.gmra.mrb[0].mxu0 %v288
    %v479 = vpop.f32.mrb[0].mxu0
    %v480 = vadd.f32 %v128, %v479
    %v481 = vpop.f32.mrb[0].mxu0
    %v482 = vadd.f32 %v132, %v481
    %v483 = vpop.f32.mrb[0].mxu0
    %v484 = vadd.f32 %v128, %v483
    %v485 = vpop.f32.mrb[0].mxu0
    %v486 = vadd.f32 %v132, %v485
    %487 = vmatprep.mubr.bf16.mxu0 0
    %488 = vmatmul.mubr.bf16.gmra.mrb[0].mxu0 %v291
    %v489 = vpop.f32.mrb[0].mxu0
    %v490 = vadd.f32 %v128, %v489
    %v491 = vpop.f32.mrb[0].mxu0
    %v492 = vadd.f32 %v132, %v491
    %v493 = vpop.f32.mrb[0].mxu0
    %v494 = vadd.f32 %v128, %v493
    %v495 = vpop.f32.mrb[0].mxu0
    %v496 = vadd.f32 %v132, %v495
    %497 = vmatprep.mubr.bf16.mxu0 0
    %498 = vmatmul.mubr.bf16.gmra.mrb[0].mxu0 %v294
    %v499 = vpop.f32.mrb[0].mxu0
    %v500 = vadd.f32 %v128, %v499
    %v501 = vpop.f32.mrb[0].mxu0
    %v502 = vadd.f32 %v132, %v501
    %v503 = vpop.f32.mrb[0].mxu0
    %v504 = vadd.f32 %v128, %v503
    %v505 = vpop.f32.mrb[0].mxu0
    %v506 = vadd.f32 %v132, %v505
    %507 = vmatprep.mubr.bf16.mxu0 0
    %508 = vmatmul.mubr.bf16.gmra.mrb[0].mxu0 %v297
    %v509 = vpop.f32.mrb[0].mxu0
    %v510 = vadd.f32 %v128, %v509
    %v511 = vpop.f32.mrb[0].mxu0
    %v512 = vadd.f32 %v132, %v511
    %v513 = vpop.f32.mrb[0].mxu0
    %v514 = vadd.f32 %v128, %v513
    %v515 = vpop.f32.mrb[0].mxu0
    %v516 = vadd.f32 %v132, %v515
    %517 = vmatprep.mubr.bf16.mxu0 0
    %518 = vmatmul.mubr.bf16.gmra.mrb[0].mxu0 %v300
    %v519 = vpop.f32.mrb[0].mxu0
    %v520 = vadd.f32 %v128, %v519
    %v521 = vpop.f32.mrb[0].mxu0
    %v522 = vadd.f32 %v132, %v521
    %v523 = vpop.f32.mrb[0].mxu0
    %v524 = vadd.f32 %v128, %v523
    %v525 = vpop.f32.mrb[0].mxu0
    %v526 = vadd.f32 %v132, %v525
    %527 = vdwg.mxu0
    %528 = vmatprep.subr.bf16.mxu0 %v250
    %529 = vmatpush1.bf16.msra.mxu0 %v249
    %530 = vmatprep.subr.bf16.mxu0 %v258
    %531 = vmatpush1.bf16.msra.mxu0 %v257
    %532 = vmatprep.subr.bf16.mxu0 0
    %533 = vmatpush1.bf16.msra.mxu0 0
    %534 = vmatprep.subr.bf16.mxu0 0
    %535 = vmatpush1.bf16.msra.mxu0 0
    %536 = vmatprep.subr.bf16.mxu0 0
    %537 = vmatpush1.bf16.msra.mxu0 0
    %538 = vmatprep.subr.bf16.mxu0 0
    %539 = vmatpush1.bf16.msra.mxu0 0
    %540 = vmatprep.subr.bf16.mxu0 0
    %541 = vmatpush1.bf16.msra.mxu0 0
    %542 = vmatprep.subr.bf16.mxu0 0
    %543 = vmatpush1.bf16.msra.mxu0 0
    %544 = vmatprep.subr.bf16.mxu0 0
    %545 = vmatpush1.bf16.msra.mxu0 0
    %546 = vmatprep.subr.bf16.mxu0 0
    %547 = vmatpush1.bf16.msra.mxu0 0
    %548 = vmatprep.subr.bf16.mxu0 0
    %549 = vmatpush1.bf16.msra.mxu0 0
    %550 = vmatprep.subr.bf16.mxu0 0
    %551 = vmatpush1.bf16.msra.mxu0 0
    %552 = vmatprep.subr.bf16.mxu0 0
    %553 = vmatpush1.bf16.msra.mxu0 0
    %554 = vmatprep.subr.bf16.mxu0 0
    %555 = vmatpush1.bf16.msra.mxu0 0
    %556 = vmatprep.subr.bf16.mxu0 0
    %557 = vmatpush1.bf16.msra.mxu0 0
    %558 = vmatprep.subr.bf16.mxu0 0
    %559 = vmatpush1.bf16.msra.mxu0 0
    %560 = vmatprep.mubr.bf16.mxu0 0
    %561 = vmatmul.mubr.bf16.gmra.mrb[0].mxu0 %v279
    %v562 = vpop.f32.mrb[0].mxu0
    %v563 = vadd.f32 %v136, %v562
    %v564 = vpop.f32.mrb[0].mxu0
    %v565 = vadd.f32 %v140, %v564
    %v566 = vpop.f32.mrb[0].mxu0
    %v567 = vadd.f32 %v136, %v566
    %v568 = vpop.f32.mrb[0].mxu0
    %v569 = vadd.f32 %v140, %v568
    %570 = vmatprep.mubr.bf16.mxu0 0
    %571 = vmatmul.mubr.bf16.gmra.mrb[0].mxu0 %v282
    %v572 = vpop.f32.mrb[0].mxu0
    %v573 = vadd.f32 %v136, %v572
    %v574 = vpop.f32.mrb[0].mxu0
    %v575 = vadd.f32 %v140, %v574
    %v576 = vpop.f32.mrb[0].mxu0
    %v577 = vadd.f32 %v136, %v576
    %v578 = vpop.f32.mrb[0].mxu0
    %v579 = vadd.f32 %v140, %v578
    %580 = vmatprep.mubr.bf16.mxu0 0
    %581 = vmatmul.mubr.bf16.gmra.mrb[0].mxu0 %v285
    %v582 = vpop.f32.mrb[0].mxu0
    %v583 = vadd.f32 %v136, %v582
    %v584 = vpop.f32.mrb[0].mxu0
    %v585 = vadd.f32 %v140, %v584
    %v586 = vpop.f32.mrb[0].mxu0
    %v587 = vadd.f32 %v136, %v586
    %v588 = vpop.f32.mrb[0].mxu0
    %v589 = vadd.f32 %v140, %v588
    %590 = vmatprep.mubr.bf16.mxu0 0
    %591 = vmatmul.mubr.bf16.gmra.mrb[0].mxu0 %v288
    %v592 = vpop.f32.mrb[0].mxu0
    %v593 = vadd.f32 %v136, %v592
    %v594 = vpop.f32.mrb[0].mxu0
    %v595 = vadd.f32 %v140, %v594
    %v596 = vpop.f32.mrb[0].mxu0
    %v597 = vadd.f32 %v136, %v596
    %v598 = vpop.f32.mrb[0].mxu0
    %v599 = vadd.f32 %v140, %v598
    %600 = vmatprep.mubr.bf16.mxu0 0
    %601 = vmatmul.mubr.bf16.gmra.mrb[0].mxu0 %v291
    %v602 = vpop.f32.mrb[0].mxu0
    %v603 = vadd.f32 %v136, %v602
    %v604 = vpop.f32.mrb[0].mxu0
    %v605 = vadd.f32 %v140, %v604
    %v606 = vpop.f32.mrb[0].mxu0
    %v607 = vadd.f32 %v136, %v606
    %v608 = vpop.f32.mrb[0].mxu0
    %v609 = vadd.f32 %v140, %v608
    %610 = vmatprep.mubr.bf16.mxu0 0
    %611 = vmatmul.mubr.bf16.gmra.mrb[0].mxu0 %v294
    %v612 = vpop.f32.mrb[0].mxu0
    %v613 = vadd.f32 %v136, %v612
    %v614 = vpop.f32.mrb[0].mxu0
    %v615 = vadd.f32 %v140, %v614
    %v616 = vpop.f32.mrb[0].mxu0
    %v617 = vadd.f32 %v136, %v616
    %v618 = vpop.f32.mrb[0].mxu0
    %v619 = vadd.f32 %v140, %v618
    %620 = vmatprep.mubr.bf16.mxu0 0
    %621 = vmatmul.mubr.bf16.gmra.mrb[0].mxu0 %v297
    %v622 = vpop.f32.mrb[0].mxu0
    %v623 = vadd.f32 %v136, %v622
    %v624 = vpop.f32.mrb[0].mxu0
    %v625 = vadd.f32 %v140, %v624
    %v626 = vpop.f32.mrb[0].mxu0
    %v627 = vadd.f32 %v136, %v626
    %v628 = vpop.f32.mrb[0].mxu0
    %v629 = vadd.f32 %v140, %v628
    %630 = vmatprep.mubr.bf16.mxu0 0
    %631 = vmatmul.mubr.bf16.gmra.mrb[0].mxu0 %v300
    %v632 = vpop.f32.mrb[0].mxu0
    %v633 = vadd.f32 %v136, %v632
    %v634 = vpop.f32.mrb[0].mxu0
    %v635 = vadd.f32 %v140, %v634
    %v636 = vpop.f32.mrb[0].mxu0
    %v637 = vadd.f32 %v136, %v636
    %v638 = vpop.f32.mrb[0].mxu0
    %v639 = vadd.f32 %v140, %v638
    %640 = vdwg.mxu0
    %641 = vmatprep.subr.bf16.mxu0 %v252
    %642 = vmatpush1.bf16.msra.mxu0 %v251
    %643 = vmatprep.subr.bf16.mxu0 %v260
    %644 = vmatpush1.bf16.msra.mxu0 %v259
    %645 = vmatprep.subr.bf16.mxu0 0
    %646 = vmatpush1.bf16.msra.mxu0 0
    %647 = vmatprep.subr.bf16.mxu0 0
    %648 = vmatpush1.bf16.msra.mxu0 0
    %649 = vmatprep.subr.bf16.mxu0 0
    %650 = vmatpush1.bf16.msra.mxu0 0
    %651 = vmatprep.subr.bf16.mxu0 0
    %652 = vmatpush1.bf16.msra.mxu0 0
    %653 = vmatprep.subr.bf16.mxu0 0
    %654 = vmatpush1.bf16.msra.mxu0 0
    %655 = vmatprep.subr.bf16.mxu0 0
    %656 = vmatpush1.bf16.msra.mxu0 0
    %657 = vmatprep.subr.bf16.mxu0 0
    %658 = vmatpush1.bf16.msra.mxu0 0
    %659 = vmatprep.subr.bf16.mxu0 0
    %660 = vmatpush1.bf16.msra.mxu0 0
    %661 = vmatprep.subr.bf16.mxu0 0
    %662 = vmatpush1.bf16.msra.mxu0 0
    %663 = vmatprep.subr.bf16.mxu0 0
    %664 = vmatpush1.bf16.msra.mxu0 0
    %665 = vmatprep.subr.bf16.mxu0 0
    %666 = vmatpush1.bf16.msra.mxu0 0
    %667 = vmatprep.subr.bf16.mxu0 0
    %668 = vmatpush1.bf16.msra.mxu0 0
    %669 = vmatprep.subr.bf16.mxu0 0
    %670 = vmatpush1.bf16.msra.mxu0 0
    %671 = vmatprep.subr.bf16.mxu0 0
    %672 = vmatpush1.bf16.msra.mxu0 0
    %673 = vmatprep.mubr.bf16.mxu0 0
    %674 = vmatmul.mubr.bf16.gmra.mrb[0].mxu0 %v279
    %v675 = vpop.f32.mrb[0].mxu0
    %v676 = vadd.f32 %v144, %v675
    %v677 = vpop.f32.mrb[0].mxu0
    %v678 = vadd.f32 %v148, %v677
    %v679 = vpop.f32.mrb[0].mxu0
    %v680 = vadd.f32 %v144, %v679
    %v681 = vpop.f32.mrb[0].mxu0
    %v682 = vadd.f32 %v148, %v681
    %683 = vmatprep.mubr.bf16.mxu0 0
    %684 = vmatmul.mubr.bf16.gmra.mrb[0].mxu0 %v282
    %v685 = vpop.f32.mrb[0].mxu0
    %v686 = vadd.f32 %v144, %v685
    %v687 = vpop.f32.mrb[0].mxu0
    %v688 = vadd.f32 %v148, %v687
    %v689 = vpop.f32.mrb[0].mxu0
    %v690 = vadd.f32 %v144, %v689
    %v691 = vpop.f32.mrb[0].mxu0
    %v692 = vadd.f32 %v148, %v691
    %693 = vmatprep.mubr.bf16.mxu0 0
    %694 = vmatmul.mubr.bf16.gmra.mrb[0].mxu0 %v285
    %v695 = vpop.f32.mrb[0].mxu0
    %v696 = vadd.f32 %v144, %v695
    %v697 = vpop.f32.mrb[0].mxu0
    %v698 = vadd.f32 %v148, %v697
    %v699 = vpop.f32.mrb[0].mxu0
    %v700 = vadd.f32 %v144, %v699
    %v701 = vpop.f32.mrb[0].mxu0
    %v702 = vadd.f32 %v148, %v701
    %703 = vmatprep.mubr.bf16.mxu0 0
    %704 = vmatmul.mubr.bf16.gmra.mrb[0].mxu0 %v288
    %v705 = vpop.f32.mrb[0].mxu0
    %v706 = vadd.f32 %v144, %v705
    %v707 = vpop.f32.mrb[0].mxu0
    %v708 = vadd.f32 %v148, %v707
    %v709 = vpop.f32.mrb[0].mxu0
    %v710 = vadd.f32 %v144, %v709
    %v711 = vpop.f32.mrb[0].mxu0
    %v712 = vadd.f32 %v148, %v711
    %713 = vmatprep.mubr.bf16.mxu0 0
    %714 = vmatmul.mubr.bf16.gmra.mrb[0].mxu0 %v291
    %v715 = vpop.f32.mrb[0].mxu0
    %v716 = vadd.f32 %v144, %v715
    %v717 = vpop.f32.mrb[0].mxu0
    %v718 = vadd.f32 %v148, %v717
    %v719 = vpop.f32.mrb[0].mxu0
    %v720 = vadd.f32 %v144, %v719
    %v721 = vpop.f32.mrb[0].mxu0
    %v722 = vadd.f32 %v148, %v721
    %723 = vmatprep.mubr.bf16.mxu0 0
    %724 = vmatmul.mubr.bf16.gmra.mrb[0].mxu0 %v294
    %v725 = vpop.f32.mrb[0].mxu0
    %v726 = vadd.f32 %v144, %v725
    %v727 = vpop.f32.mrb[0].mxu0
    %v728 = vadd.f32 %v148, %v727
    %v729 = vpop.f32.mrb[0].mxu0
    %v730 = vadd.f32 %v144, %v729
    %v731 = vpop.f32.mrb[0].mxu0
    %v732 = vadd.f32 %v148, %v731
    %733 = vmatprep.mubr.bf16.mxu0 0
    %734 = vmatmul.mubr.bf16.gmra.mrb[0].mxu0 %v297
    %v735 = vpop.f32.mrb[0].mxu0
    %v736 = vadd.f32 %v144, %v735
    %v737 = vpop.f32.mrb[0].mxu0
    %v738 = vadd.f32 %v148, %v737
    %v739 = vpop.f32.mrb[0].mxu0
    %v740 = vadd.f32 %v144, %v739
    %v741 = vpop.f32.mrb[0].mxu0
    %v742 = vadd.f32 %v148, %v741
    %743 = vmatprep.mubr.bf16.mxu0 0
    %744 = vmatmul.mubr.bf16.gmra.mrb[0].mxu0 %v300
    %v745 = vpop.f32.mrb[0].mxu0
    %v746 = vadd.f32 %v144, %v745
    %v747 = vpop.f32.mrb[0].mxu0
    %v748 = vadd.f32 %v148, %v747
    %v749 = vpop.f32.mrb[0].mxu0
    %v750 = vadd.f32 %v144, %v749
    %v751 = vpop.f32.mrb[0].mxu0
    %v752 = vadd.f32 %v148, %v751
    %753 = vdwg.mxu0
    %v754 = vpack.c.bf16 %v341, %v337
    %v755 = vpack.c.bf16 %v343, %v339
    %v756 = vpack.c.bf16 %v454, %v450
    %v757 = vpack.c.bf16 %v456, %v452
    %v758 = vpack.c.bf16 %v567, %v563
    %v759 = vpack.c.bf16 %v569, %v565
    %v760 = vpack.c.bf16 %v680, %v676
    %v761 = vpack.c.bf16 %v682, %v678
    %v762 = vpack.c.bf16 %v351, %v347
    %v763 = vpack.c.bf16 %v353, %v349
    %v764 = vpack.c.bf16 %v464, %v460
    %v765 = vpack.c.bf16 %v466, %v462
    %v766 = vpack.c.bf16 %v577, %v573
    %v767 = vpack.c.bf16 %v579, %v575
    %v768 = vpack.c.bf16 %v690, %v686
    %v769 = vpack.c.bf16 %v692, %v688
    %v770 = vpack.c.bf16 %v361, %v357
    %v771 = vpack.c.bf16 %v363, %v359
    %v772 = vpack.c.bf16 %v474, %v470
    %v773 = vpack.c.bf16 %v476, %v472
    %v774 = vpack.c.bf16 %v587, %v583
    %v775 = vpack.c.bf16 %v589, %v585
    %v776 = vpack.c.bf16 %v700, %v696
    %v777 = vpack.c.bf16 %v702, %v698
    %v778 = vpack.c.bf16 %v371, %v367
    %v779 = vpack.c.bf16 %v373, %v369
    %v780 = vpack.c.bf16 %v484, %v480
    %v781 = vpack.c.bf16 %v486, %v482
    %v782 = vpack.c.bf16 %v597, %v593
    %v783 = vpack.c.bf16 %v599, %v595
    %v784 = vpack.c.bf16 %v710, %v706
    %v785 = vpack.c.bf16 %v712, %v708
    %v786 = vpack.c.bf16 %v381, %v377
    %v787 = vpack.c.bf16 %v383, %v379
    %v788 = vpack.c.bf16 %v494, %v490
    %v789 = vpack.c.bf16 %v496, %v492
    %v790 = vpack.c.bf16 %v607, %v603
    %v791 = vpack.c.bf16 %v609, %v605
    %v792 = vpack.c.bf16 %v720, %v716
    %v793 = vpack.c.bf16 %v722, %v718
    %v794 = vpack.c.bf16 %v391, %v387
    %v795 = vpack.c.bf16 %v393, %v389
    %v796 = vpack.c.bf16 %v504, %v500
    %v797 = vpack.c.bf16 %v506, %v502
    %v798 = vpack.c.bf16 %v617, %v613
    %v799 = vpack.c.bf16 %v619, %v615
    %v800 = vpack.c.bf16 %v730, %v726
    %v801 = vpack.c.bf16 %v732, %v728
    %v802 = vpack.c.bf16 %v401, %v397
    %v803 = vpack.c.bf16 %v403, %v399
    %v804 = vpack.c.bf16 %v514, %v510
    %v805 = vpack.c.bf16 %v516, %v512
    %v806 = vpack.c.bf16 %v627, %v623
    %v807 = vpack.c.bf16 %v629, %v625
    %v808 = vpack.c.bf16 %v740, %v736
    %v809 = vpack.c.bf16 %v742, %v738
    %v810 = vpack.c.bf16 %v411, %v407
    %v811 = vpack.c.bf16 %v413, %v409
    %v812 = vpack.c.bf16 %v524, %v520
    %v813 = vpack.c.bf16 %v526, %v522
    %v814 = vpack.c.bf16 %v637, %v633
    %v815 = vpack.c.bf16 %v639, %v635
    %v816 = vpack.c.bf16 %v750, %v746
    %v817 = vpack.c.bf16 %v752, %v748
    %818 = vst [vmem:[#allocation2] sm:$0xff] %v754
    %819 = vst [vmem:[#allocation2 + $0x8] sm:$0xff] %v755
    %820 = vst [vmem:[#allocation2 + $0x10] sm:$0xff] %v756
    %821 = vst [vmem:[#allocation2 + $0x18] sm:$0xff] %v757
    %822 = vst [vmem:[#allocation2 + $0x20] sm:$0xff] %v758
    %823 = vst [vmem:[#allocation2 + $0x28] sm:$0xff] %v759
    %824 = vst [vmem:[#allocation2 + $0x30] sm:$0xff] %v760
    %825 = vst [vmem:[#allocation2 + $0x38] sm:$0xff] %v761
    %826 = vst [vmem:[#allocation2 + $0x40] sm:$0xff] %v762
    %827 = vst [vmem:[#allocation2 + $0x48] sm:$0xff] %v763
    %828 = vst [vmem:[#allocation2 + $0x50] sm:$0xff] %v764
    %829 = vst [vmem:[#allocation2 + $0x58] sm:$0xff] %v765
    %830 = vst [vmem:[#allocation2 + $0x60] sm:$0xff] %v766
    %831 = vst [vmem:[#allocation2 + $0x68] sm:$0xff] %v767
    %832 = vst [vmem:[#allocation2 + $0x70] sm:$0xff] %v768
    %833 = vst [vmem:[#allocation2 + $0x78] sm:$0xff] %v769
    %834 = vst [vmem:[#allocation2 + $0x80] sm:$0xff] %v770
    %835 = vst [vmem:[#allocation2 + $0x88] sm:$0xff] %v771
    %836 = vst [vmem:[#allocation2 + $0x90] sm:$0xff] %v772
    %837 = vst [vmem:[#allocation2 + $0x98] sm:$0xff] %v773
    %838 = vst [vmem:[#allocation2 + $0xa0] sm:$0xff] %v774
    %839 = vst [vmem:[#allocation2 + $0xa8] sm:$0xff] %v775
    %840 = vst [vmem:[#allocation2 + $0xb0] sm:$0xff] %v776
    %841 = vst [vmem:[#allocation2 + $0xb8] sm:$0xff] %v777
    %842 = vst [vmem:[#allocation2 + $0xc0] sm:$0xff] %v778
    %843 = vst [vmem:[#allocation2 + $0xc8] sm:$0xff] %v779
    %844 = vst [vmem:[#allocation2 + $0xd0] sm:$0xff] %v780
    %845 = vst [vmem:[#allocation2 + $0xd8] sm:$0xff] %v781
    %846 = vst [vmem:[#allocation2 + $0xe0] sm:$0xff] %v782
    %847 = vst [vmem:[#allocation2 + $0xe8] sm:$0xff] %v783
    %848 = vst [vmem:[#allocation2 + $0xf0] sm:$0xff] %v784
    %849 = vst [vmem:[#allocation2 + $0xf8] sm:$0xff] %v785
    %850 = vst [vmem:[#allocation2 + $0x100] sm:$0xff] %v786
    %851 = vst [vmem:[#allocation2 + $0x108] sm:$0xff] %v787
    %852 = vst [vmem:[#allocation2 + $0x110] sm:$0xff] %v788
    %853 = vst [vmem:[#allocation2 + $0x118] sm:$0xff] %v789
    %854 = vst [vmem:[#allocation2 + $0x120] sm:$0xff] %v790
    %855 = vst [vmem:[#allocation2 + $0x128] sm:$0xff] %v791
    %856 = vst [vmem:[#allocation2 + $0x130] sm:$0xff] %v792
    %857 = vst [vmem:[#allocation2 + $0x138] sm:$0xff] %v793
    %858 = vst [vmem:[#allocation2 + $0x140] sm:$0xff] %v794
    %859 = vst [vmem:[#allocation2 + $0x148] sm:$0xff] %v795
    %860 = vst [vmem:[#allocation2 + $0x150] sm:$0xff] %v796
    %861 = vst [vmem:[#allocation2 + $0x158] sm:$0xff] %v797
    %862 = vst [vmem:[#allocation2 + $0x160] sm:$0xff] %v798
    %863 = vst [vmem:[#allocation2 + $0x168] sm:$0xff] %v799
    %864 = vst [vmem:[#allocation2 + $0x170] sm:$0xff] %v800
    %865 = vst [vmem:[#allocation2 + $0x178] sm:$0xff] %v801
    %866 = vst [vmem:[#allocation2 + $0x180] sm:$0xff] %v802
    %867 = vst [vmem:[#allocation2 + $0x188] sm:$0xff] %v803
    %868 = vst [vmem:[#allocation2 + $0x190] sm:$0xff] %v804
    %869 = vst [vmem:[#allocation2 + $0x198] sm:$0xff] %v805
    %870 = vst [vmem:[#allocation2 + $0x1a0] sm:$0xff] %v806
    %871 = vst [vmem:[#allocation2 + $0x1a8] sm:$0xff] %v807
    %872 = vst [vmem:[#allocation2 + $0x1b0] sm:$0xff] %v808
    %873 = vst [vmem:[#allocation2 + $0x1b8] sm:$0xff] %v809
    %874 = vst [vmem:[#allocation2 + $0x1c0] sm:$0xff] %v810
    %875 = vst [vmem:[#allocation2 + $0x1c8] sm:$0xff] %v811
    %876 = vst [vmem:[#allocation2 + $0x1d0] sm:$0xff] %v812
    %877 = vst [vmem:[#allocation2 + $0x1d8] sm:$0xff] %v813
    %878 = vst [vmem:[#allocation2 + $0x1e0] sm:$0xff] %v814
    %879 = vst [vmem:[#allocation2 + $0x1e8] sm:$0xff] %v815
    %880 = vst [vmem:[#allocation2 + $0x1f0] sm:$0xff] %v816
    %881 = vst [vmem:[#allocation2 + $0x1f8] sm:$0xff] %v817
    %v882 = vld [vmem:[#allocation7] sm:$0xff]
    %v883 = vld [vmem:[#allocation7 + $0x8] sm:$0xff]
    %v884 = vld [vmem:[#allocation7 + $0x10] sm:$0xff]
    %v885 = vld [vmem:[#allocation7 + $0x18] sm:$0xff]
    %v886 = vld [vmem:[#allocation7 + $0x20] sm:$0xff]
    %v887 = vld [vmem:[#allocation7 + $0x28] sm:$0xff]
    %v888 = vld [vmem:[#allocation7 + $0x30] sm:$0xff]
    %v889 = vld [vmem:[#allocation7 + $0x38] sm:$0xff]
    %v890 = vld [vmem:[#allocation7 + $0x40] sm:$0xff]
    %v891 = vld [vmem:[#allocation7 + $0x48] sm:$0xff]
    %v892 = vld [vmem:[#allocation7 + $0x50] sm:$0xff]
    %v893 = vld [vmem:[#allocation7 + $0x58] sm:$0xff]
    %v894 = vld [vmem:[#allocation7 + $0x60] sm:$0xff]
    %v895 = vld [vmem:[#allocation7 + $0x68] sm:$0xff]
    %v896 = vld [vmem:[#allocation7 + $0x70] sm:$0xff]
    %v897 = vld [vmem:[#allocation7 + $0x78] sm:$0xff]
    %v898 = vld [vmem:[#allocation7 + $0x80] sm:$0xff]
    %v899 = vld [vmem:[#allocation7 + $0x88] sm:$0xff]
    %v900 = vld [vmem:[#allocation7 + $0x90] sm:$0xff]
    %v901 = vld [vmem:[#allocation7 + $0x98] sm:$0xff]
    %v902 = vld [vmem:[#allocation7 + $0xa0] sm:$0xff]
    %v903 = vld [vmem:[#allocation7 + $0xa8] sm:$0xff]
    %v904 = vld [vmem:[#allocation7 + $0xb0] sm:$0xff]
    %v905 = vld [vmem:[#allocation7 + $0xb8] sm:$0xff]
    %v906 = vld [vmem:[#allocation7 + $0xc0] sm:$0xff]
    %v907 = vld [vmem:[#allocation7 + $0xc8] sm:$0xff]
    %v908 = vld [vmem:[#allocation7 + $0xd0] sm:$0xff]
    %v909 = vld [vmem:[#allocation7 + $0xd8] sm:$0xff]
    %v910 = vld [vmem:[#allocation7 + $0xe0] sm:$0xff]
    %v911 = vld [vmem:[#allocation7 + $0xe8] sm:$0xff]
    %v912 = vld [vmem:[#allocation7 + $0xf0] sm:$0xff]
    %v913 = vld [vmem:[#allocation7 + $0xf8] sm:$0xff]
    %v914 = vld [vmem:[#allocation9] sm:$0xff]
    %v915 = vld [vmem:[#allocation9 + $0x8] sm:$0xff]
    %v916 = vld [vmem:[#allocation9 + $0x10] sm:$0xff]
    %v917 = vld [vmem:[#allocation9 + $0x18] sm:$0xff]
    %v918 = vld [vmem:[#allocation9 + $0x20] sm:$0xff]
    %v919 = vld [vmem:[#allocation9 + $0x28] sm:$0xff]
    %v920 = vld [vmem:[#allocation9 + $0x30] sm:$0xff]
    %v921 = vld [vmem:[#allocation9 + $0x38] sm:$0xff]
    %v922 = vld [vmem:[#allocation9 + $0x40] sm:$0xff]
    %v923 = vld [vmem:[#allocation9 + $0x48] sm:$0xff]
    %v924 = vld [vmem:[#allocation9 + $0x50] sm:$0xff]
    %v925 = vld [vmem:[#allocation9 + $0x58] sm:$0xff]
    %v926 = vld [vmem:[#allocation9 + $0x60] sm:$0xff]
    %v927 = vld [vmem:[#allocation9 + $0x68] sm:$0xff]
    %v928 = vld [vmem:[#allocation9 + $0x70] sm:$0xff]
    %v929 = vld [vmem:[#allocation9 + $0x78] sm:$0xff]
    %v930 = vld [vmem:[#allocation9 + $0x80] sm:$0xff]
    %v931 = vld [vmem:[#allocation9 + $0x88] sm:$0xff]
    %v932 = vld [vmem:[#allocation9 + $0x90] sm:$0xff]
    %v933 = vld [vmem:[#allocation9 + $0x98] sm:$0xff]
    %v934 = vld [vmem:[#allocation9 + $0xa0] sm:$0xff]
    %v935 = vld [vmem:[#allocation9 + $0xa8] sm:$0xff]
    %v936 = vld [vmem:[#allocation9 + $0xb0] sm:$0xff]
    %v937 = vld [vmem:[#allocation9 + $0xb8] sm:$0xff]
    %v938 = vld [vmem:[#allocation9 + $0xc0] sm:$0xff]
    %v939 = vld [vmem:[#allocation9 + $0xc8] sm:$0xff]
    %v940 = vld [vmem:[#allocation9 + $0xd0] sm:$0xff]
    %v941 = vld [vmem:[#allocation9 + $0xd8] sm:$0xff]
    %v942 = vld [vmem:[#allocation9 + $0xe0] sm:$0xff]
    %v943 = vld [vmem:[#allocation9 + $0xe8] sm:$0xff]
    %v944 = vld [vmem:[#allocation9 + $0xf0] sm:$0xff]
    %v945 = vld [vmem:[#allocation9 + $0xf8] sm:$0xff]
    %s946 = smul.u32 0, 8
    %s947 = smul.addr %s946, 8
    %s948 = scalar_lea.vmem [#allocation2], %s947
    %v949 = vld [vmem:[%s948] sm:$0xff]
    %v950 = vld [vmem:[%s948 + $0x8] sm:$0xff]
    %v951 = vld [vmem:[%s948 + $0x10] sm:$0xff]
    %v952 = vld [vmem:[%s948 + $0x18] sm:$0xff]
    %v985 = vunpack.c.l.b16 %v882
    %v986 = vunpack.c.h.b16 %v882
    %v987 = vunpack.c.l.b16 %v883
    %v988 = vunpack.c.h.b16 %v883
    %v989 = vunpack.c.l.b16 %v884
    %v990 = vunpack.c.h.b16 %v884
    %v991 = vunpack.c.l.b16 %v885
    %v992 = vunpack.c.h.b16 %v885
    %v993 = vunpack.c.l.b16 %v886
    %v994 = vunpack.c.h.b16 %v886
    %v995 = vunpack.c.l.b16 %v887
    %v996 = vunpack.c.h.b16 %v887
    %v997 = vunpack.c.l.b16 %v888
    %v998 = vunpack.c.h.b16 %v888
    %v999 = vunpack.c.l.b16 %v889
    %v1000 = vunpack.c.h.b16 %v889
    %v1001 = vunpack.c.l.b16 %v890
    %v1002 = vunpack.c.h.b16 %v890
    %v1003 = vunpack.c.l.b16 %v891
    %v1004 = vunpack.c.h.b16 %v891
    %v1005 = vunpack.c.l.b16 %v892
    %v1006 = vunpack.c.h.b16 %v892
    %v1007 = vunpack.c.l.b16 %v893
    %v1008 = vunpack.c.h.b16 %v893
    %v1009 = vunpack.c.l.b16 %v894
    %v1010 = vunpack.c.h.b16 %v894
    %v1011 = vunpack.c.l.b16 %v895
    %v1012 = vunpack.c.h.b16 %v895
    %v1013 = vunpack.c.l.b16 %v896
    %v1014 = vunpack.c.h.b16 %v896
    %v1015 = vunpack.c.l.b16 %v897
    %v1016 = vunpack.c.h.b16 %v897
    %v1017 = vunpack.c.l.b16 %v898
    %v1018 = vunpack.c.h.b16 %v898
    %v1019 = vunpack.c.l.b16 %v899
    %v1020 = vunpack.c.h.b16 %v899
    %v1021 = vunpack.c.l.b16 %v900
    %v1022 = vunpack.c.h.b16 %v900
    %v1023 = vunpack.c.l.b16 %v901
    %v1024 = vunpack.c.h.b16 %v901
    %v1025 = vunpack.c.l.b16 %v902
    %v1026 = vunpack.c.h.b16 %v902
    %v1027 = vunpack.c.l.b16 %v903
    %v1028 = vunpack.c.h.b16 %v903
    %v1029 = vunpack.c.l.b16 %v904
    %v1030 = vunpack.c.h.b16 %v904
    %v1031 = vunpack.c.l.b16 %v905
    %v1032 = vunpack.c.h.b16 %v905
    %v1033 = vunpack.c.l.b16 %v906
    %v1034 = vunpack.c.h.b16 %v906
    %v1035 = vunpack.c.l.b16 %v907
    %v1036 = vunpack.c.h.b16 %v907
    %v1037 = vunpack.c.l.b16 %v908
    %v1038 = vunpack.c.h.b16 %v908
    %v1039 = vunpack.c.l.b16 %v909
    %v1040 = vunpack.c.h.b16 %v909
    %v1041 = vunpack.c.l.b16 %v910
    %v1042 = vunpack.c.h.b16 %v910
    %v1043 = vunpack.c.l.b16 %v911
    %v1044 = vunpack.c.h.b16 %v911
    %v1045 = vunpack.c.l.b16 %v912
    %v1046 = vunpack.c.h.b16 %v912
    %v1047 = vunpack.c.l.b16 %v913
    %v1048 = vunpack.c.h.b16 %v913
    %v1049 = vpack.c.b16 %v989, %v985
    %v1050 = vpack.c.b16 %v990, %v986
    %v1051 = vpack.c.b16 %v991, %v987
    %v1052 = vpack.c.b16 %v992, %v988
    %v1053 = vpack.c.b16 %v997, %v993
    %v1054 = vpack.c.b16 %v998, %v994
    %v1055 = vpack.c.b16 %v999, %v995
    %v1056 = vpack.c.b16 %v1000, %v996
    %v1057 = vpack.c.b16 %v1005, %v1001
    %v1058 = vpack.c.b16 %v1006, %v1002
    %v1059 = vpack.c.b16 %v1007, %v1003
    %v1060 = vpack.c.b16 %v1008, %v1004
    %v1061 = vpack.c.b16 %v1013, %v1009
    %v1062 = vpack.c.b16 %v1014, %v1010
    %v1063 = vpack.c.b16 %v1015, %v1011
    %v1064 = vpack.c.b16 %v1016, %v1012
    %v1065 = vpack.c.b16 %v1021, %v1017
    %v1066 = vpack.c.b16 %v1022, %v1018
    %v1067 = vpack.c.b16 %v1023, %v1019
    %v1068 = vpack.c.b16 %v1024, %v1020
    %v1069 = vpack.c.b16 %v1029, %v1025
    %v1070 = vpack.c.b16 %v1030, %v1026
    %v1071 = vpack.c.b16 %v1031, %v1027
    %v1072 = vpack.c.b16 %v1032, %v1028
    %v1073 = vpack.c.b16 %v1037, %v1033
    %v1074 = vpack.c.b16 %v1038, %v1034
    %v1075 = vpack.c.b16 %v1039, %v1035
    %v1076 = vpack.c.b16 %v1040, %v1036
    %v1077 = vpack.c.b16 %v1045, %v1041
    %v1078 = vpack.c.b16 %v1046, %v1042
    %v1079 = vpack.c.b16 %v1047, %v1043
    %v1080 = vpack.c.b16 %v1048, %v1044
    %1113 = vmatprep.subr.bf16.mxu0 %v1050
    %1114 = vmatpush1.bf16.msra.mxu0 %v1049
    %1115 = vmatprep.subr.bf16.mxu0 %v1054
    %1116 = vmatpush1.bf16.msra.mxu0 %v1053
    %1117 = vmatprep.subr.bf16.mxu0 %v1058
    %1118 = vmatpush1.bf16.msra.mxu0 %v1057
    %1119 = vmatprep.subr.bf16.mxu0 %v1062
    %1120 = vmatpush1.bf16.msra.mxu0 %v1061
    %1121 = vmatprep.subr.bf16.mxu0 %v1066
    %1122 = vmatpush1.bf16.msra.mxu0 %v1065
    %1123 = vmatprep.subr.bf16.mxu0 %v1070
    %1124 = vmatpush1.bf16.msra.mxu0 %v1069
    %1125 = vmatprep.subr.bf16.mxu0 %v1074
    %1126 = vmatpush1.bf16.msra.mxu0 %v1073
    %1127 = vmatprep.subr.bf16.mxu0 %v1078
    %1128 = vmatpush1.bf16.msra.mxu0 %v1077
    %1129 = vmatprep.subr.bf16.mxu0 0
    %1130 = vmatpush1.bf16.msra.mxu0 0
    %1131 = vmatprep.subr.bf16.mxu0 0
    %1132 = vmatpush1.bf16.msra.mxu0 0
    %1133 = vmatprep.subr.bf16.mxu0 0
    %1134 = vmatpush1.bf16.msra.mxu0 0
    %1135 = vmatprep.subr.bf16.mxu0 0
    %1136 = vmatpush1.bf16.msra.mxu0 0
    %1137 = vmatprep.subr.bf16.mxu0 0
    %1138 = vmatpush1.bf16.msra.mxu0 0
    %1139 = vmatprep.subr.bf16.mxu0 0
    %1140 = vmatpush1.bf16.msra.mxu0 0
    %1141 = vmatprep.subr.bf16.mxu0 0
    %1142 = vmatpush1.bf16.msra.mxu0 0
    %1143 = vmatprep.subr.bf16.mxu0 0
    %1144 = vmatpush1.bf16.msra.mxu0 0
    %1145 = vmatprep.mubr.bf16.mxu0 0
    %1146 = vmatmul.mubr.bf16.gmra.mrb[0].mxu0 0
    %v1147 = vpop.f32.mrb[0].mxu0
    %v1148 = vadd.f32 0.0, %v1147
    %v1149 = vpop.f32.mrb[0].mxu0
    %v1150 = vadd.f32 0.0, %v1149
    %v1151 = vpop.f32.mrb[0].mxu0
    %v1152 = vadd.f32 0.0, %v1151
    %v1153 = vpop.f32.mrb[0].mxu0
    %v1154 = vadd.f32 0.0, %v1153
    %1155 = vdwg.mxu0
    %1156 = vmatprep.subr.bf16.mxu0 %v1052
    %1157 = vmatpush1.bf16.msra.mxu0 %v1051
    %1158 = vmatprep.subr.bf16.mxu0 %v1056
    %1159 = vmatpush1.bf16.msra.mxu0 %v1055
    %1160 = vmatprep.subr.bf16.mxu0 %v1060
    %1161 = vmatpush1.bf16.msra.mxu0 %v1059
    %1162 = vmatprep.subr.bf16.mxu0 %v1064
    %1163 = vmatpush1.bf16.msra.mxu0 %v1063
    %1164 = vmatprep.subr.bf16.mxu0 %v1068
    %1165 = vmatpush1.bf16.msra.mxu0 %v1067
    %1166 = vmatprep.subr.bf16.mxu0 %v1072
    %1167 = vmatpush1.bf16.msra.mxu0 %v1071
    %1168 = vmatprep.subr.bf16.mxu0 %v1076
    %1169 = vmatpush1.bf16.msra.mxu0 %v1075
    %1170 = vmatprep.subr.bf16.mxu0 %v1080
    %1171 = vmatpush1.bf16.msra.mxu0 %v1079
    %1172 = vmatprep.subr.bf16.mxu0 0
    %1173 = vmatpush1.bf16.msra.mxu0 0
    %1174 = vmatprep.subr.bf16.mxu0 0
    %1175 = vmatpush1.bf16.msra.mxu0 0
    %1176 = vmatprep.subr.bf16.mxu0 0
    %1177 = vmatpush1.bf16.msra.mxu0 0
    %1178 = vmatprep.subr.bf16.mxu0 0
    %1179 = vmatpush1.bf16.msra.mxu0 0
    %1180 = vmatprep.subr.bf16.mxu0 0
    %1181 = vmatpush1.bf16.msra.mxu0 0
    %1182 = vmatprep.subr.bf16.mxu0 0
    %1183 = vmatpush1.bf16.msra.mxu0 0
    %1184 = vmatprep.subr.bf16.mxu0 0
    %1185 = vmatpush1.bf16.msra.mxu0 0
    %1186 = vmatprep.subr.bf16.mxu0 0
    %1187 = vmatpush1.bf16.msra.mxu0 0
    %1188 = vmatprep.mubr.bf16.mxu0 0
    %1189 = vmatmul.mubr.bf16.gmra.mrb[0].mxu0 0
    %v1190 = vpop.f32.mrb[0].mxu0
    %v1191 = vadd.f32 0.0, %v1190
    %v1192 = vpop.f32.mrb[0].mxu0
    %v1193 = vadd.f32 0.0, %v1192
    %v1194 = vpop.f32.mrb[0].mxu0
    %v1195 = vadd.f32 0.0, %v1194
    %v1196 = vpop.f32.mrb[0].mxu0
    %v1197 = vadd.f32 0.0, %v1196
    %1198 = vdwg.mxu0
    %v1199 = vunpack.c.l.bf16 %v949
    %v1200 = vunpack.c.l.bf16 %v950
    %v1201 = vunpack.c.l.bf16 %v951
    %v1202 = vunpack.c.l.bf16 %v952
    %v1203 = vunpack.c.h.bf16 %v949
    %v1204 = vunpack.c.h.bf16 %v950
    %v1205 = vunpack.c.h.bf16 %v951
    %v1206 = vunpack.c.h.bf16 %v952
    %v1207 = vadd.f32 %v1199, %v1148
    %v1208 = vadd.f32 %v1200, %v1150
    %v1209 = vadd.f32 %v1201, %v1191
    %v1210 = vadd.f32 %v1202, %v1193
    %v1211 = vadd.f32 %v1203, %v1152
    %v1212 = vadd.f32 %v1204, %v1154
    %v1213 = vadd.f32 %v1205, %v1195
    %v1214 = vadd.f32 %v1206, %v1197
    %s1215 = smul.u32 7, 8
    %s1216 = smul.addr %s1215, 8
    %s1217 = scalar_lea.vmem [#allocation2], %s1216
    %v1218 = vld [vmem:[%s1217 + $0x20] sm:$0xff]
    %v1219 = vld [vmem:[%s1217 + $0x28] sm:$0xff]
    %v1220 = vld [vmem:[%s1217 + $0x30] sm:$0xff]
    %v1221 = vld [vmem:[%s1217 + $0x38] sm:$0xff]
    %v1254 = vunpack.c.l.b16 %v914
    %v1255 = vunpack.c.h.b16 %v914
    %v1256 = vunpack.c.l.b16 %v915
    %v1257 = vunpack.c.h.b16 %v915
    %v1258 = vunpack.c.l.b16 %v916
    %v1259 = vunpack.c.h.b16 %v916
    %v1260 = vunpack.c.l.b16 %v917
    %v1261 = vunpack.c.h.b16 %v917
    %v1262 = vunpack.c.l.b16 %v918
    %v1263 = vunpack.c.h.b16 %v918
    %v1264 = vunpack.c.l.b16 %v919
    %v1265 = vunpack.c.h.b16 %v919
    %v1266 = vunpack.c.l.b16 %v920
    %v1267 = vunpack.c.h.b16 %v920
    %v1268 = vunpack.c.l.b16 %v921
    %v1269 = vunpack.c.h.b16 %v921
    %v1270 = vunpack.c.l.b16 %v922
    %v1271 = vunpack.c.h.b16 %v922
    %v1272 = vunpack.c.l.b16 %v923
    %v1273 = vunpack.c.h.b16 %v923
    %v1274 = vunpack.c.l.b16 %v924
    %v1275 = vunpack.c.h.b16 %v924
    %v1276 = vunpack.c.l.b16 %v925
    %v1277 = vunpack.c.h.b16 %v925
    %v1278 = vunpack.c.l.b16 %v926
    %v1279 = vunpack.c.h.b16 %v926
    %v1280 = vunpack.c.l.b16 %v927
    %v1281 = vunpack.c.h.b16 %v927
    %v1282 = vunpack.c.l.b16 %v928
    %v1283 = vunpack.c.h.b16 %v928
    %v1284 = vunpack.c.l.b16 %v929
    %v1285 = vunpack.c.h.b16 %v929
    %v1286 = vunpack.c.l.b16 %v930
    %v1287 = vunpack.c.h.b16 %v930
    %v1288 = vunpack.c.l.b16 %v931
    %v1289 = vunpack.c.h.b16 %v931
    %v1290 = vunpack.c.l.b16 %v932
    %v1291 = vunpack.c.h.b16 %v932
    %v1292 = vunpack.c.l.b16 %v933
    %v1293 = vunpack.c.h.b16 %v933
    %v1294 = vunpack.c.l.b16 %v934
    %v1295 = vunpack.c.h.b16 %v934
    %v1296 = vunpack.c.l.b16 %v935
    %v1297 = vunpack.c.h.b16 %v935
    %v1298 = vunpack.c.l.b16 %v936
    %v1299 = vunpack.c.h.b16 %v936
    %v1300 = vunpack.c.l.b16 %v937
    %v1301 = vunpack.c.h.b16 %v937
    %v1302 = vunpack.c.l.b16 %v938
    %v1303 = vunpack.c.h.b16 %v938
    %v1304 = vunpack.c.l.b16 %v939
    %v1305 = vunpack.c.h.b16 %v939
    %v1306 = vunpack.c.l.b16 %v940
    %v1307 = vunpack.c.h.b16 %v940
    %v1308 = vunpack.c.l.b16 %v941
    %v1309 = vunpack.c.h.b16 %v941
    %v1310 = vunpack.c.l.b16 %v942
    %v1311 = vunpack.c.h.b16 %v942
    %v1312 = vunpack.c.l.b16 %v943
    %v1313 = vunpack.c.h.b16 %v943
    %v1314 = vunpack.c.l.b16 %v944
    %v1315 = vunpack.c.h.b16 %v944
    %v1316 = vunpack.c.l.b16 %v945
    %v1317 = vunpack.c.h.b16 %v945
    %v1318 = vpack.c.b16 %v1258, %v1254
    %v1319 = vpack.c.b16 %v1259, %v1255
    %v1320 = vpack.c.b16 %v1260, %v1256
    %v1321 = vpack.c.b16 %v1261, %v1257
    %v1322 = vpack.c.b16 %v1266, %v1262
    %v1323 = vpack.c.b16 %v1267, %v1263
    %v1324 = vpack.c.b16 %v1268, %v1264
    %v1325 = vpack.c.b16 %v1269, %v1265
    %v1326 = vpack.c.b16 %v1274, %v1270
    %v1327 = vpack.c.b16 %v1275, %v1271
    %v1328 = vpack.c.b16 %v1276, %v1272
    %v1329 = vpack.c.b16 %v1277, %v1273
    %v1330 = vpack.c.b16 %v1282, %v1278
    %v1331 = vpack.c.b16 %v1283, %v1279
    %v1332 = vpack.c.b16 %v1284, %v1280
    %v1333 = vpack.c.b16 %v1285, %v1281
    %v1334 = vpack.c.b16 %v1290, %v1286
    %v1335 = vpack.c.b16 %v1291, %v1287
    %v1336 = vpack.c.b16 %v1292, %v1288
    %v1337 = vpack.c.b16 %v1293, %v1289
    %v1338 = vpack.c.b16 %v1298, %v1294
    %v1339 = vpack.c.b16 %v1299, %v1295
    %v1340 = vpack.c.b16 %v1300, %v1296
    %v1341 = vpack.c.b16 %v1301, %v1297
    %v1342 = vpack.c.b16 %v1306, %v1302
    %v1343 = vpack.c.b16 %v1307, %v1303
    %v1344 = vpack.c.b16 %v1308, %v1304
    %v1345 = vpack.c.b16 %v1309, %v1305
    %v1346 = vpack.c.b16 %v1314, %v1310
    %v1347 = vpack.c.b16 %v1315, %v1311
    %v1348 = vpack.c.b16 %v1316, %v1312
    %v1349 = vpack.c.b16 %v1317, %v1313
    %1382 = vmatprep.subr.bf16.mxu0 %v1319
    %1383 = vmatpush1.bf16.msra.mxu0 %v1318
    %1384 = vmatprep.subr.bf16.mxu0 %v1323
    %1385 = vmatpush1.bf16.msra.mxu0 %v1322
    %1386 = vmatprep.subr.bf16.mxu0 %v1327
    %1387 = vmatpush1.bf16.msra.mxu0 %v1326
    %1388 = vmatprep.subr.bf16.mxu0 %v1331
    %1389 = vmatpush1.bf16.msra.mxu0 %v1330
    %1390 = vmatprep.subr.bf16.mxu0 %v1335
    %1391 = vmatpush1.bf16.msra.mxu0 %v1334
    %1392 = vmatprep.subr.bf16.mxu0 %v1339
    %1393 = vmatpush1.bf16.msra.mxu0 %v1338
    %1394 = vmatprep.subr.bf16.mxu0 %v1343
    %1395 = vmatpush1.bf16.msra.mxu0 %v1342
    %1396 = vmatprep.subr.bf16.mxu0 %v1347
    %1397 = vmatpush1.bf16.msra.mxu0 %v1346
    %1398 = vmatprep.subr.bf16.mxu0 0
    %1399 = vmatpush1.bf16.msra.mxu0 0
    %1400 = vmatprep.subr.bf16.mxu0 0
    %1401 = vmatpush1.bf16.msra.mxu0 0
    %1402 = vmatprep.subr.bf16.mxu0 0
    %1403 = vmatpush1.bf16.msra.mxu0 0
    %1404 = vmatprep.subr.bf16.mxu0 0
    %1405 = vmatpush1.bf16.msra.mxu0 0
    %1406 = vmatprep.subr.bf16.mxu0 0
    %1407 = vmatpush1.bf16.msra.mxu0 0
    %1408 = vmatprep.subr.bf16.mxu0 0
    %1409 = vmatpush1.bf16.msra.mxu0 0
    %1410 = vmatprep.subr.bf16.mxu0 0
    %1411 = vmatpush1.bf16.msra.mxu0 0
    %1412 = vmatprep.subr.bf16.mxu0 0
    %1413 = vmatpush1.bf16.msra.mxu0 0
    %1414 = vmatprep.mubr.bf16.mxu0 0
    %1415 = vmatmul.mubr.bf16.gmra.mrb[0].mxu0 0
    %v1416 = vpop.f32.mrb[0].mxu0
    %v1417 = vadd.f32 0.0, %v1416
    %v1418 = vpop.f32.mrb[0].mxu0
    %v1419 = vadd.f32 0.0, %v1418
    %v1420 = vpop.f32.mrb[0].mxu0
    %v1421 = vadd.f32 0.0, %v1420
    %v1422 = vpop.f32.mrb[0].mxu0
    %v1423 = vadd.f32 0.0, %v1422
    %1424 = vdwg.mxu0
    %1425 = vmatprep.subr.bf16.mxu0 %v1321
    %1426 = vmatpush1.bf16.msra.mxu0 %v1320
    %1427 = vmatprep.subr.bf16.mxu0 %v1325
    %1428 = vmatpush1.bf16.msra.mxu0 %v1324
    %1429 = vmatprep.subr.bf16.mxu0 %v1329
    %1430 = vmatpush1.bf16.msra.mxu0 %v1328
    %1431 = vmatprep.subr.bf16.mxu0 %v1333
    %1432 = vmatpush1.bf16.msra.mxu0 %v1332
    %1433 = vmatprep.subr.bf16.mxu0 %v1337
    %1434 = vmatpush1.bf16.msra.mxu0 %v1336
    %1435 = vmatprep.subr.bf16.mxu0 %v1341
    %1436 = vmatpush1.bf16.msra.mxu0 %v1340
    %1437 = vmatprep.subr.bf16.mxu0 %v1345
    %1438 = vmatpush1.bf16.msra.mxu0 %v1344
    %1439 = vmatprep.subr.bf16.mxu0 %v1349
    %1440 = vmatpush1.bf16.msra.mxu0 %v1348
    %1441 = vmatprep.subr.bf16.mxu0 0
    %1442 = vmatpush1.bf16.msra.mxu0 0
    %1443 = vmatprep.subr.bf16.mxu0 0
    %1444 = vmatpush1.bf16.msra.mxu0 0
    %1445 = vmatprep.subr.bf16.mxu0 0
    %1446 = vmatpush1.bf16.msra.mxu0 0
    %1447 = vmatprep.subr.bf16.mxu0 0
    %1448 = vmatpush1.bf16.msra.mxu0 0
    %1449 = vmatprep.subr.bf16.mxu0 0
    %1450 = vmatpush1.bf16.msra.mxu0 0
    %1451 = vmatprep.subr.bf16.mxu0 0
    %1452 = vmatpush1.bf16.msra.mxu0 0
    %1453 = vmatprep.subr.bf16.mxu0 0
    %1454 = vmatpush1.bf16.msra.mxu0 0
    %1455 = vmatprep.subr.bf16.mxu0 0
    %1456 = vmatpush1.bf16.msra.mxu0 0
    %1457 = vmatprep.mubr.bf16.mxu0 0
    %1458 = vmatmul.mubr.bf16.gmra.mrb[0].mxu0 0
    %v1459 = vpop.f32.mrb[0].mxu0
    %v1460 = vadd.f32 0.0, %v1459
    %v1461 = vpop.f32.mrb[0].mxu0
    %v1462 = vadd.f32 0.0, %v1461
    %v1463 = vpop.f32.mrb[0].mxu0
    %v1464 = vadd.f32 0.0, %v1463
    %v1465 = vpop.f32.mrb[0].mxu0
    %v1466 = vadd.f32 0.0, %v1465
    %1467 = vdwg.mxu0
    %v1468 = vunpack.c.l.bf16 %v1218
    %v1469 = vunpack.c.l.bf16 %v1219
    %v1470 = vunpack.c.l.bf16 %v1220
    %v1471 = vunpack.c.l.bf16 %v1221
    %v1472 = vunpack.c.h.bf16 %v1218
    %v1473 = vunpack.c.h.bf16 %v1219
    %v1474 = vunpack.c.h.bf16 %v1220
    %v1475 = vunpack.c.h.bf16 %v1221
    %v1476 = vadd.f32 %v1468, %v1417
    %v1477 = vadd.f32 %v1469, %v1419
    %v1478 = vadd.f32 %v1470, %v1460
    %v1479 = vadd.f32 %v1471, %v1462
    %v1480 = vadd.f32 %v1472, %v1421
    %v1481 = vadd.f32 %v1473, %v1423
    %v1482 = vadd.f32 %v1474, %v1464
    %v1483 = vadd.f32 %v1475, %v1466
    %v1484 = vmul.f32 %v1207, 0.5
    %v1485 = vmul.f32 %v1211, 0.5
    %v1486 = vtanh.pop %v1484
    %v1487 = vtanh.pop %v1485
    %v1488 = vmul.f32 %v1486, 0.5
    %v1489 = vmul.f32 %v1487, 0.5
    %v1490 = vadd.f32 %v1488, 0.5
    %v1491 = vadd.f32 %v1489, 0.5
    %v1492 = vmul.f32 %v1208, 0.5
    %v1493 = vmul.f32 %v1212, 0.5
    %v1494 = vtanh.pop %v1492
    %v1495 = vtanh.pop %v1493
    %v1496 = vmul.f32 %v1494, 0.5
    %v1497 = vmul.f32 %v1495, 0.5
    %v1498 = vadd.f32 %v1496, 0.5
    %v1499 = vadd.f32 %v1497, 0.5
    %v1500 = vtanh.pop %v1209
    %v1501 = vtanh.pop %v1213
    %v1502 = vmul.f32 %v1210, 0.5
    %v1503 = vmul.f32 %v1214, 0.5
    %v1504 = vtanh.pop %v1502
    %v1505 = vtanh.pop %v1503
    %v1506 = vmul.f32 %v1504, 0.5
    %v1507 = vmul.f32 %v1505, 0.5
    %v1508 = vadd.f32 %v1506, 0.5
    %v1509 = vadd.f32 %v1507, 0.5
    %v1510 = vmul.f32 %v1498, 0.0
    %v1511 = vmul.f32 %v1499, 0.0
    %v1512 = vmul.f32 %v1490, %v1500
    %v1513 = vmul.f32 %v1491, %v1501
    %v1514 = vadd.f32 %v1510, %v1512
    %v1515 = vadd.f32 %v1511, %v1513
    %v1516 = vtanh.pop %v1514
    %v1517 = vtanh.pop %v1515
    %v1518 = vmul.f32 %v1508, %v1516
    %v1519 = vmul.f32 %v1509, %v1517
    %v1520 = vmul.f32 %v1476, 0.5
    %v1521 = vmul.f32 %v1480, 0.5
    %v1522 = vtanh.pop %v1520
    %v1523 = vtanh.pop %v1521
    %v1524 = vmul.f32 %v1522, 0.5
    %v1525 = vmul.f32 %v1523, 0.5
    %v1526 = vadd.f32 %v1524, 0.5
    %v1527 = vadd.f32 %v1525, 0.5
    %v1528 = vmul.f32 %v1477, 0.5
    %v1529 = vmul.f32 %v1481, 0.5
    %v1530 = vtanh.pop %v1528
    %v1531 = vtanh.pop %v1529
    %v1532 = vmul.f32 %v1530, 0.5
    %v1533 = vmul.f32 %v1531, 0.5
    %v1534 = vadd.f32 %v1532, 0.5
    %v1535 = vadd.f32 %v1533, 0.5
    %v1536 = vtanh.pop %v1478
    %v1537 = vtanh.pop %v1482
    %v1538 = vmul.f32 %v1479, 0.5
    %v1539 = vmul.f32 %v1483, 0.5
    %v1540 = vtanh.pop %v1538
    %v1541 = vtanh.pop %v1539
    %v1542 = vmul.f32 %v1540, 0.5
    %v1543 = vmul.f32 %v1541, 0.5
    %v1544 = vadd.f32 %v1542, 0.5
    %v1545 = vadd.f32 %v1543, 0.5
    %v1546 = vmul.f32 %v1534, 0.0
    %v1547 = vmul.f32 %v1535, 0.0
    %v1548 = vmul.f32 %v1526, %v1536
    %v1549 = vmul.f32 %v1527, %v1537
    %v1550 = vadd.f32 %v1546, %v1548
    %v1551 = vadd.f32 %v1547, %v1549
    %v1552 = vtanh.pop %v1550
    %v1553 = vtanh.pop %v1551
    %v1554 = vmul.f32 %v1544, %v1552
    %v1555 = vmul.f32 %v1545, %v1553
    %v1556 = vpack.c.bf16 %v1519, %v1518
    %s1557 = smul.u32 0, 2
    %s1558 = smul.addr %s1557, 8
    %s1559 = scalar_lea.vmem [#allocation3], %s1558
    %1560 = vst [vmem:[%s1559] sm:$0xff] %v1556
    %v1561 = vpack.c.bf16 %v1555, %v1554
    %s1562 = smul.u32 7, 2
    %s1563 = smul.addr %s1562, 8
    %s1564 = scalar_lea.vmem [#allocation3], %s1563
    %1565 = vst [vmem:[%s1564 + $0x8] sm:$0xff] %v1561
    %s1566 = smul.u32 1, 8
    %s1567 = smul.addr %s1566, 8
    %s1568 = scalar_lea.vmem [#allocation2], %s1567
    %v1569 = vld [vmem:[%s1568] sm:$0xff]
    %v1570 = vld [vmem:[%s1568 + $0x8] sm:$0xff]
    %v1571 = vld [vmem:[%s1568 + $0x10] sm:$0xff]
    %v1572 = vld [vmem:[%s1568 + $0x18] sm:$0xff]
    %1573 = vmatprep.subr.bf16.mxu0 %v1050
    %1574 = vmatpush1.bf16.msra.mxu0 %v1049
    %1575 = vmatprep.subr.bf16.mxu0 %v1054
    %1576 = vmatpush1.bf16.msra.mxu0 %v1053
    %1577 = vmatprep.subr.bf16.mxu0 %v1058
    %1578 = vmatpush1.bf16.msra.mxu0 %v1057
    %1579 = vmatprep.subr.bf16.mxu0 %v1062
    %1580 = vmatpush1.bf16.msra.mxu0 %v1061
    %1581 = vmatprep.subr.bf16.mxu0 %v1066
    %1582 = vmatpush1.bf16.msra.mxu0 %v1065
    %1583 = vmatprep.subr.bf16.mxu0 %v1070
    %1584 = vmatpush1.bf16.msra.mxu0 %v1069
    %1585 = vmatprep.subr.bf16.mxu0 %v1074
    %1586 = vmatpush1.bf16.msra.mxu0 %v1073
    %1587 = vmatprep.subr.bf16.mxu0 %v1078
    %1588 = vmatpush1.bf16.msra.mxu0 %v1077
    %1589 = vmatprep.subr.bf16.mxu0 0
    %1590 = vmatpush1.bf16.msra.mxu0 0
    %1591 = vmatprep.subr.bf16.mxu0 0
    %1592 = vmatpush1.bf16.msra.mxu0 0
    %1593 = vmatprep.subr.bf16.mxu0 0
    %1594 = vmatpush1.bf16.msra.mxu0 0
    %1595 = vmatprep.subr.bf16.mxu0 0
    %1596 = vmatpush1.bf16.msra.mxu0 0
    %1597 = vmatprep.subr.bf16.mxu0 0
    %1598 = vmatpush1.bf16.msra.mxu0 0
    %1599 = vmatprep.subr.bf16.mxu0 0
    %1600 = vmatpush1.bf16.msra.mxu0 0
    %1601 = vmatprep.subr.bf16.mxu0 0
    %1602 = vmatpush1.bf16.msra.mxu0 0
    %1603 = vmatprep.subr.bf16.mxu0 0
    %1604 = vmatpush1.bf16.msra.mxu0 0
    %1605 = vmatprep.mubr.bf16.mxu0 0
    %1606 = vmatmul.mubr.bf16.gmra.mrb[0].mxu0 %v1556
    %v1607 = vpop.f32.mrb[0].mxu0
    %v1608 = vadd.f32 0.0, %v1607
    %v1609 = vpop.f32.mrb[0].mxu0
    %v1610 = vadd.f32 0.0, %v1609
    %v1611 = vpop.f32.mrb[0].mxu0
    %v1612 = vadd.f32 0.0, %v1611
    %v1613 = vpop.f32.mrb[0].mxu0
    %v1614 = vadd.f32 0.0, %v1613
    %1615 = vdwg.mxu0
    %1616 = vmatprep.subr.bf16.mxu0 %v1052
    %1617 = vmatpush1.bf16.msra.mxu0 %v1051
    %1618 = vmatprep.subr.bf16.mxu0 %v1056
    %1619 = vmatpush1.bf16.msra.mxu0 %v1055
    %1620 = vmatprep.subr.bf16.mxu0 %v1060
    %1621 = vmatpush1.bf16.msra.mxu0 %v1059
    %1622 = vmatprep.subr.bf16.mxu0 %v1064
    %1623 = vmatpush1.bf16.msra.mxu0 %v1063
    %1624 = vmatprep.subr.bf16.mxu0 %v1068
    %1625 = vmatpush1.bf16.msra.mxu0 %v1067
    %1626 = vmatprep.subr.bf16.mxu0 %v1072
    %1627 = vmatpush1.bf16.msra.mxu0 %v1071
    %1628 = vmatprep.subr.bf16.mxu0 %v1076
    %1629 = vmatpush1.bf16.msra.mxu0 %v1075
    %1630 = vmatprep.subr.bf16.mxu0 %v1080
    %1631 = vmatpush1.bf16.msra.mxu0 %v1079
    %1632 = vmatprep.subr.bf16.mxu0 0
    %1633 = vmatpush1.bf16.msra.mxu0 0
    %1634 = vmatprep.subr.bf16.mxu0 0
    %1635 = vmatpush1.bf16.msra.mxu0 0
    %1636 = vmatprep.subr.bf16.mxu0 0
    %1637 = vmatpush1.bf16.msra.mxu0 0
    %1638 = vmatprep.subr.bf16.mxu0 0
    %1639 = vmatpush1.bf16.msra.mxu0 0
    %1640 = vmatprep.subr.bf16.mxu0 0
    %1641 = vmatpush1.bf16.msra.mxu0 0
    %1642 = vmatprep.subr.bf16.mxu0 0
    %1643 = vmatpush1.bf16.msra.mxu0 0
    %1644 = vmatprep.subr.bf16.mxu0 0
    %1645 = vmatpush1.bf16.msra.mxu0 0
    %1646 = vmatprep.subr.bf16.mxu0 0
    %1647 = vmatpush1.bf16.msra.mxu0 0
    %1648 = vmatprep.mubr.bf16.mxu0 0
    %1649 = vmatmul.mubr.bf16.gmra.mrb[0].mxu0 %v1556
    %v1650 = vpop.f32.mrb[0].mxu0
    %v1651 = vadd.f32 0.0, %v1650
    %v1652 = vpop.f32.mrb[0].mxu0
    %v1653 = vadd.f32 0.0, %v1652
    %v1654 = vpop.f32.mrb[0].mxu0
    %v1655 = vadd.f32 0.0, %v1654
    %v1656 = vpop.f32.mrb[0].mxu0
    %v1657 = vadd.f32 0.0, %v1656
    %1658 = vdwg.mxu0
    %v1659 = vunpack.c.l.bf16 %v1569
    %v1660 = vunpack.c.l.bf16 %v1570
    %v1661 = vunpack.c.l.bf16 %v1571
    %v1662 = vunpack.c.l.bf16 %v1572
    %v1663 = vunpack.c.h.bf16 %v1569
    %v1664 = vunpack.c.h.bf16 %v1570
    %v1665 = vunpack.c.h.bf16 %v1571
    %v1666 = vunpack.c.h.bf16 %v1572
    %v1667 = vadd.f32 %v1659, %v1608
    %v1668 = vadd.f32 %v1660, %v1610
    %v1669 = vadd.f32 %v1661, %v1651
    %v1670 = vadd.f32 %v1662, %v1653
    %v1671 = vadd.f32 %v1663, %v1612
    %v1672 = vadd.f32 %v1664, %v1614
    %v1673 = vadd.f32 %v1665, %v1655
    %v1674 = vadd.f32 %v1666, %v1657
    %s1675 = smul.u32 6, 8
    %s1676 = smul.addr %s1675, 8
    %s1677 = scalar_lea.vmem [#allocation2], %s1676
    %v1678 = vld [vmem:[%s1677 + $0x20] sm:$0xff]
    %v1679 = vld [vmem:[%s1677 + $0x28] sm:$0xff]
    %v1680 = vld [vmem:[%s1677 + $0x30] sm:$0xff]
    %v1681 = vld [vmem:[%s1677 + $0x38] sm:$0xff]
    %1682 = vmatprep.subr.bf16.mxu0 %v1319
    %1683 = vmatpush1.bf16.msra.mxu0 %v1318
    %1684 = vmatprep.subr.bf16.mxu0 %v1323
    %1685 = vmatpush1.bf16.msra.mxu0 %v1322
    %1686 = vmatprep.subr.bf16.mxu0 %v1327
    %1687 = vmatpush1.bf16.msra.mxu0 %v1326
    %1688 = vmatprep.subr.bf16.mxu0 %v1331
    %1689 = vmatpush1.bf16.msra.mxu0 %v1330
    %1690 = vmatprep.subr.bf16.mxu0 %v1335
    %1691 = vmatpush1.bf16.msra.mxu0 %v1334
    %1692 = vmatprep.subr.bf16.mxu0 %v1339
    %1693 = vmatpush1.bf16.msra.mxu0 %v1338
    %1694 = vmatprep.subr.bf16.mxu0 %v1343
    %1695 = vmatpush1.bf16.msra.mxu0 %v1342
    %1696 = vmatprep.subr.bf16.mxu0 %v1347
    %1697 = vmatpush1.bf16.msra.mxu0 %v1346
    %1698 = vmatprep.subr.bf16.mxu0 0
    %1699 = vmatpush1.bf16.msra.mxu0 0
    %1700 = vmatprep.subr.bf16.mxu0 0
    %1701 = vmatpush1.bf16.msra.mxu0 0
    %1702 = vmatprep.subr.bf16.mxu0 0
    %1703 = vmatpush1.bf16.msra.mxu0 0
    %1704 = vmatprep.subr.bf16.mxu0 0
    %1705 = vmatpush1.bf16.msra.mxu0 0
    %1706 = vmatprep.subr.bf16.mxu0 0
    %1707 = vmatpush1.bf16.msra.mxu0 0
    %1708 = vmatprep.subr.bf16.mxu0 0
    %1709 = vmatpush1.bf16.msra.mxu0 0
    %1710 = vmatprep.subr.bf16.mxu0 0
    %1711 = vmatpush1.bf16.msra.mxu0 0
    %1712 = vmatprep.subr.bf16.mxu0 0
    %1713 = vmatpush1.bf16.msra.mxu0 0
    %1714 = vmatprep.mubr.bf16.mxu0 0
    %1715 = vmatmul.mubr.bf16.gmra.mrb[0].mxu0 %v1561
    %v1716 = vpop.f32.mrb[0].mxu0
    %v1717 = vadd.f32 0.0, %v1716
    %v1718 = vpop.f32.mrb[0].mxu0
    %v1719 = vadd.f32 0.0, %v1718
    %v1720 = vpop.f32.mrb[0].mxu0
    %v1721 = vadd.f32 0.0, %v1720
    %v1722 = vpop.f32.mrb[0].mxu0
    %v1723 = vadd.f32 0.0, %v1722
    %1724 = vdwg.mxu0
    %1725 = vmatprep.subr.bf16.mxu0 %v1321
    %1726 = vmatpush1.bf16.msra.mxu0 %v1320
    %1727 = vmatprep.subr.bf16.mxu0 %v1325
    %1728 = vmatpush1.bf16.msra.mxu0 %v1324
    %1729 = vmatprep.subr.bf16.mxu0 %v1329
    %1730 = vmatpush1.bf16.msra.mxu0 %v1328
    %1731 = vmatprep.subr.bf16.mxu0 %v1333
    %1732 = vmatpush1.bf16.msra.mxu0 %v1332
    %1733 = vmatprep.subr.bf16.mxu0 %v1337
    %1734 = vmatpush1.bf16.msra.mxu0 %v1336
    %1735 = vmatprep.subr.bf16.mxu0 %v1341
    %1736 = vmatpush1.bf16.msra.mxu0 %v1340
    %1737 = vmatprep.subr.bf16.mxu0 %v1345
    %1738 = vmatpush1.bf16.msra.mxu0 %v1344
    %1739 = vmatprep.subr.bf16.mxu0 %v1349
    %1740 = vmatpush1.bf16.msra.mxu0 %v1348
    %1741 = vmatprep.subr.bf16.mxu0 0
    %1742 = vmatpush1.bf16.msra.mxu0 0
    %1743 = vmatprep.subr.bf16.mxu0 0
    %1744 = vmatpush1.bf16.msra.mxu0 0
    %1745 = vmatprep.subr.bf16.mxu0 0
    %1746 = vmatpush1.bf16.msra.mxu0 0
    %1747 = vmatprep.subr.bf16.mxu0 0
    %1748 = vmatpush1.bf16.msra.mxu0 0
    %1749 = vmatprep.subr.bf16.mxu0 0
    %1750 = vmatpush1.bf16.msra.mxu0 0
    %1751 = vmatprep.subr.bf16.mxu0 0
    %1752 = vmatpush1.bf16.msra.mxu0 0
    %1753 = vmatprep.subr.bf16.mxu0 0
    %1754 = vmatpush1.bf16.msra.mxu0 0
    %1755 = vmatprep.subr.bf16.mxu0 0
    %1756 = vmatpush1.bf16.msra.mxu0 0
    %1757 = vmatprep.mubr.bf16.mxu0 0
    %1758 = vmatmul.mubr.bf16.gmra.mrb[0].mxu0 %v1561
    %v1759 = vpop.f32.mrb[0].mxu0
    %v1760 = vadd.f32 0.0, %v1759
    %v1761 = vpop.f32.mrb[0].mxu0
    %v1762 = vadd.f32 0.0, %v1761
    %v1763 = vpop.f32.mrb[0].mxu0
    %v1764 = vadd.f32 0.0, %v1763
    %v1765 = vpop.f32.mrb[0].mxu0
    %v1766 = vadd.f32 0.0, %v1765
    %1767 = vdwg.mxu0
    %v1768 = vunpack.c.l.bf16 %v1678
    %v1769 = vunpack.c.l.bf16 %v1679
    %v1770 = vunpack.c.l.bf16 %v1680
    %v1771 = vunpack.c.l.bf16 %v1681
    %v1772 = vunpack.c.h.bf16 %v1678
    %v1773 = vunpack.c.h.bf16 %v1679
    %v1774 = vunpack.c.h.bf16 %v1680
    %v1775 = vunpack.c.h.bf16 %v1681
    %v1776 = vadd.f32 %v1768, %v1717
    %v1777 = vadd.f32 %v1769, %v1719
    %v1778 = vadd.f32 %v1770, %v1760
    %v1779 = vadd.f32 %v1771, %v1762
    %v1780 = vadd.f32 %v1772, %v1721
    %v1781 = vadd.f32 %v1773, %v1723
    %v1782 = vadd.f32 %v1774, %v1764
    %v1783 = vadd.f32 %v1775, %v1766
    %v1784 = vmul.f32 %v1667, 0.5
    %v1785 = vmul.f32 %v1671, 0.5
    %v1786 = vtanh.pop %v1784
    %v1787 = vtanh.pop %v1785
    %v1788 = vmul.f32 %v1786, 0.5
    %v1789 = vmul.f32 %v1787, 0.5
    %v1790 = vadd.f32 %v1788, 0.5
    %v1791 = vadd.f32 %v1789, 0.5
    %v1792 = vmul.f32 %v1668, 0.5
    %v1793 = vmul.f32 %v1672, 0.5
    %v1794 = vtanh.pop %v1792
    %v1795 = vtanh.pop %v1793
    %v1796 = vmul.f32 %v1794, 0.5
    %v1797 = vmul.f32 %v1795, 0.5
    %v1798 = vadd.f32 %v1796, 0.5
    %v1799 = vadd.f32 %v1797, 0.5
    %v1800 = vtanh.pop %v1669
    %v1801 = vtanh.pop %v1673
    %v1802 = vmul.f32 %v1670, 0.5
    %v1803 = vmul.f32 %v1674, 0.5
    %v1804 = vtanh.pop %v1802
    %v1805 = vtanh.pop %v1803
    %v1806 = vmul.f32 %v1804, 0.5
    %v1807 = vmul.f32 %v1805, 0.5
    %v1808 = vadd.f32 %v1806, 0.5
    %v1809 = vadd.f32 %v1807, 0.5
    %v1810 = vmul.f32 %v1798, %v1514
    %v1811 = vmul.f32 %v1799, %v1515
    %v1812 = vmul.f32 %v1790, %v1800
    %v1813 = vmul.f32 %v1791, %v1801
    %v1814 = vadd.f32 %v1810, %v1812
    %v1815 = vadd.f32 %v1811, %v1813
    %v1816 = vtanh.pop %v1814
    %v1817 = vtanh.pop %v1815
    %v1818 = vmul.f32 %v1808, %v1816
    %v1819 = vmul.f32 %v1809, %v1817
    %v1820 = vmul.f32 %v1776, 0.5
    %v1821 = vmul.f32 %v1780, 0.5
    %v1822 = vtanh.pop %v1820
    %v1823 = vtanh.pop %v1821
    %v1824 = vmul.f32 %v1822, 0.5
    %v1825 = vmul.f32 %v1823, 0.5
    %v1826 = vadd.f32 %v1824, 0.5
    %v1827 = vadd.f32 %v1825, 0.5
    %v1828 = vmul.f32 %v1777, 0.5
    %v1829 = vmul.f32 %v1781, 0.5
    %v1830 = vtanh.pop %v1828
    %v1831 = vtanh.pop %v1829
    %v1832 = vmul.f32 %v1830, 0.5
    %v1833 = vmul.f32 %v1831, 0.5
    %v1834 = vadd.f32 %v1832, 0.5
    %v1835 = vadd.f32 %v1833, 0.5
    %v1836 = vtanh.pop %v1778
    %v1837 = vtanh.pop %v1782
    %v1838 = vmul.f32 %v1779, 0.5
    %v1839 = vmul.f32 %v1783, 0.5
    %v1840 = vtanh.pop %v1838
    %v1841 = vtanh.pop %v1839
    %v1842 = vmul.f32 %v1840, 0.5
    %v1843 = vmul.f32 %v1841, 0.5
    %v1844 = vadd.f32 %v1842, 0.5
    %v1845 = vadd.f32 %v1843, 0.5
    %v1846 = vmul.f32 %v1834, %v1550
    %v1847 = vmul.f32 %v1835, %v1551
    %v1848 = vmul.f32 %v1826, %v1836
    %v1849 = vmul.f32 %v1827, %v1837
    %v1850 = vadd.f32 %v1846, %v1848
    %v1851 = vadd.f32 %v1847, %v1849
    %v1852 = vtanh.pop %v1850
    %v1853 = vtanh.pop %v1851
    %v1854 = vmul.f32 %v1844, %v1852
    %v1855 = vmul.f32 %v1845, %v1853
    %v1856 = vpack.c.bf16 %v1819, %v1818
    %s1857 = smul.u32 1, 2
    %s1858 = smul.addr %s1857, 8
    %s1859 = scalar_lea.vmem [#allocation3], %s1858
    %1860 = vst [vmem:[%s1859] sm:$0xff] %v1856
    %v1861 = vpack.c.bf16 %v1855, %v1854
    %s1862 = smul.u32 6, 2
    %s1863 = smul.addr %s1862, 8
    %s1864 = scalar_lea.vmem [#allocation3], %s1863
    %1865 = vst [vmem:[%s1864 + $0x8] sm:$0xff] %v1861
    %s1866 = smul.u32 2, 8
    %s1867 = smul.addr %s1866, 8
    %s1868 = scalar_lea.vmem [#allocation2], %s1867
    %v1869 = vld [vmem:[%s1868] sm:$0xff]
    %v1870 = vld [vmem:[%s1868 + $0x8] sm:$0xff]
    %v1871 = vld [vmem:[%s1868 + $0x10] sm:$0xff]
    %v1872 = vld [vmem:[%s1868 + $0x18] sm:$0xff]
    %1873 = vmatprep.subr.bf16.mxu0 %v1050
    %1874 = vmatpush1.bf16.msra.mxu0 %v1049
    %1875 = vmatprep.subr.bf16.mxu0 %v1054
    %1876 = vmatpush1.bf16.msra.mxu0 %v1053
    %1877 = vmatprep.subr.bf16.mxu0 %v1058
    %1878 = vmatpush1.bf16.msra.mxu0 %v1057
    %1879 = vmatprep.subr.bf16.mxu0 %v1062
    %1880 = vmatpush1.bf16.msra.mxu0 %v1061
    %1881 = vmatprep.subr.bf16.mxu0 %v1066
    %1882 = vmatpush1.bf16.msra.mxu0 %v1065
    %1883 = vmatprep.subr.bf16.mxu0 %v1070
    %1884 = vmatpush1.bf16.msra.mxu0 %v1069
    %1885 = vmatprep.subr.bf16.mxu0 %v1074
    %1886 = vmatpush1.bf16.msra.mxu0 %v1073
    %1887 = vmatprep.subr.bf16.mxu0 %v1078
    %1888 = vmatpush1.bf16.msra.mxu0 %v1077
    %1889 = vmatprep.subr.bf16.mxu0 0
    %1890 = vmatpush1.bf16.msra.mxu0 0
    %1891 = vmatprep.subr.bf16.mxu0 0
    %1892 = vmatpush1.bf16.msra.mxu0 0
    %1893 = vmatprep.subr.bf16.mxu0 0
    %1894 = vmatpush1.bf16.msra.mxu0 0
    %1895 = vmatprep.subr.bf16.mxu0 0
    %1896 = vmatpush1.bf16.msra.mxu0 0
    %1897 = vmatprep.subr.bf16.mxu0 0
    %1898 = vmatpush1.bf16.msra.mxu0 0
    %1899 = vmatprep.subr.bf16.mxu0 0
    %1900 = vmatpush1.bf16.msra.mxu0 0
    %1901 = vmatprep.subr.bf16.mxu0 0
    %1902 = vmatpush1.bf16.msra.mxu0 0
    %1903 = vmatprep.subr.bf16.mxu0 0
    %1904 = vmatpush1.bf16.msra.mxu0 0
    %1905 = vmatprep.mubr.bf16.mxu0 0
    %1906 = vmatmul.mubr.bf16.gmra.mrb[0].mxu0 %v1856
    %v1907 = vpop.f32.mrb[0].mxu0
    %v1908 = vadd.f32 0.0, %v1907
    %v1909 = vpop.f32.mrb[0].mxu0
    %v1910 = vadd.f32 0.0, %v1909
    %v1911 = vpop.f32.mrb[0].mxu0
    %v1912 = vadd.f32 0.0, %v1911
    %v1913 = vpop.f32.mrb[0].mxu0
    %v1914 = vadd.f32 0.0, %v1913
    %1915 = vdwg.mxu0
    %1916 = vmatprep.subr.bf16.mxu0 %v1052
    %1917 = vmatpush1.bf16.msra.mxu0 %v1051
    %1918 = vmatprep.subr.bf16.mxu0 %v1056
    %1919 = vmatpush1.bf16.msra.mxu0 %v1055
    %1920 = vmatprep.subr.bf16.mxu0 %v1060
    %1921 = vmatpush1.bf16.msra.mxu0 %v1059
    %1922 = vmatprep.subr.bf16.mxu0 %v1064
    %1923 = vmatpush1.bf16.msra.mxu0 %v1063
    %1924 = vmatprep.subr.bf16.mxu0 %v1068
    %1925 = vmatpush1.bf16.msra.mxu0 %v1067
    %1926 = vmatprep.subr.bf16.mxu0 %v1072
    %1927 = vmatpush1.bf16.msra.mxu0 %v1071
    %1928 = vmatprep.subr.bf16.mxu0 %v1076
    %1929 = vmatpush1.bf16.msra.mxu0 %v1075
    %1930 = vmatprep.subr.bf16.mxu0 %v1080
    %1931 = vmatpush1.bf16.msra.mxu0 %v1079
    %1932 = vmatprep.subr.bf16.mxu0 0
    %1933 = vmatpush1.bf16.msra.mxu0 0
    %1934 = vmatprep.subr.bf16.mxu0 0
    %1935 = vmatpush1.bf16.msra.mxu0 0
    %1936 = vmatprep.subr.bf16.mxu0 0
    %1937 = vmatpush1.bf16.msra.mxu0 0
    %1938 = vmatprep.subr.bf16.mxu0 0
    %1939 = vmatpush1.bf16.msra.mxu0 0
    %1940 = vmatprep.subr.bf16.mxu0 0
    %1941 = vmatpush1.bf16.msra.mxu0 0
    %1942 = vmatprep.subr.bf16.mxu0 0
    %1943 = vmatpush1.bf16.msra.mxu0 0
    %1944 = vmatprep.subr.bf16.mxu0 0
    %1945 = vmatpush1.bf16.msra.mxu0 0
    %1946 = vmatprep.subr.bf16.mxu0 0
    %1947 = vmatpush1.bf16.msra.mxu0 0
    %1948 = vmatprep.mubr.bf16.mxu0 0
    %1949 = vmatmul.mubr.bf16.gmra.mrb[0].mxu0 %v1856
    %v1950 = vpop.f32.mrb[0].mxu0
    %v1951 = vadd.f32 0.0, %v1950
    %v1952 = vpop.f32.mrb[0].mxu0
    %v1953 = vadd.f32 0.0, %v1952
    %v1954 = vpop.f32.mrb[0].mxu0
    %v1955 = vadd.f32 0.0, %v1954
    %v1956 = vpop.f32.mrb[0].mxu0
    %v1957 = vadd.f32 0.0, %v1956
    %1958 = vdwg.mxu0
    %v1959 = vunpack.c.l.bf16 %v1869
    %v1960 = vunpack.c.l.bf16 %v1870
    %v1961 = vunpack.c.l.bf16 %v1871
    %v1962 = vunpack.c.l.bf16 %v1872
    %v1963 = vunpack.c.h.bf16 %v1869
    %v1964 = vunpack.c.h.bf16 %v1870
    %v1965 = vunpack.c.h.bf16 %v1871
    %v1966 = vunpack.c.h.bf16 %v1872
    %v1967 = vadd.f32 %v1959, %v1908
    %v1968 = vadd.f32 %v1960, %v1910
    %v1969 = vadd.f32 %v1961, %v1951
    %v1970 = vadd.f32 %v1962, %v1953
    %v1971 = vadd.f32 %v1963, %v1912
    %v1972 = vadd.f32 %v1964, %v1914
    %v1973 = vadd.f32 %v1965, %v1955
    %v1974 = vadd.f32 %v1966, %v1957
    %s1975 = smul.u32 5, 8
    %s1976 = smul.addr %s1975, 8
    %s1977 = scalar_lea.vmem [#allocation2], %s1976
    %v1978 = vld [vmem:[%s1977 + $0x20] sm:$0xff]
    %v1979 = vld [vmem:[%s1977 + $0x28] sm:$0xff]
    %v1980 = vld [vmem:[%s1977 + $0x30] sm:$0xff]
    %v1981 = vld [vmem:[%s1977 + $0x38] sm:$0xff]
    %1982 = vmatprep.subr.bf16.mxu0 %v1319
    %1983 = vmatpush1.bf16.msra.mxu0 %v1318
    %1984 = vmatprep.subr.bf16.mxu0 %v1323
    %1985 = vmatpush1.bf16.msra.mxu0 %v1322
    %1986 = vmatprep.subr.bf16.mxu0 %v1327
    %1987 = vmatpush1.bf16.msra.mxu0 %v1326
    %1988 = vmatprep.subr.bf16.mxu0 %v1331
    %1989 = vmatpush1.bf16.msra.mxu0 %v1330
    %1990 = vmatprep.subr.bf16.mxu0 %v1335
    %1991 = vmatpush1.bf16.msra.mxu0 %v1334
    %1992 = vmatprep.subr.bf16.mxu0 %v1339
    %1993 = vmatpush1.bf16.msra.mxu0 %v1338
    %1994 = vmatprep.subr.bf16.mxu0 %v1343
    %1995 = vmatpush1.bf16.msra.mxu0 %v1342
    %1996 = vmatprep.subr.bf16.mxu0 %v1347
    %1997 = vmatpush1.bf16.msra.mxu0 %v1346
    %1998 = vmatprep.subr.bf16.mxu0 0
    %1999 = vmatpush1.bf16.msra.mxu0 0
    %2000 = vmatprep.subr.bf16.mxu0 0
    %2001 = vmatpush1.bf16.msra.mxu0 0
    %2002 = vmatprep.subr.bf16.mxu0 0
    %2003 = vmatpush1.bf16.msra.mxu0 0
    %2004 = vmatprep.subr.bf16.mxu0 0
    %2005 = vmatpush1.bf16.msra.mxu0 0
    %2006 = vmatprep.subr.bf16.mxu0 0
    %2007 = vmatpush1.bf16.msra.mxu0 0
    %2008 = vmatprep.subr.bf16.mxu0 0
    %2009 = vmatpush1.bf16.msra.mxu0 0
    %2010 = vmatprep.subr.bf16.mxu0 0
    %2011 = vmatpush1.bf16.msra.mxu0 0
    %2012 = vmatprep.subr.bf16.mxu0 0
    %2013 = vmatpush1.bf16.msra.mxu0 0
    %2014 = vmatprep.mubr.bf16.mxu0 0
    %2015 = vmatmul.mubr.bf16.gmra.mrb[0].mxu0 %v1861
    %v2016 = vpop.f32.mrb[0].mxu0
    %v2017 = vadd.f32 0.0, %v2016
    %v2018 = vpop.f32.mrb[0].mxu0
    %v2019 = vadd.f32 0.0, %v2018
    %v2020 = vpop.f32.mrb[0].mxu0
    %v2021 = vadd.f32 0.0, %v2020
    %v2022 = vpop.f32.mrb[0].mxu0
    %v2023 = vadd.f32 0.0, %v2022
    %2024 = vdwg.mxu0
    %2025 = vmatprep.subr.bf16.mxu0 %v1321
    %2026 = vmatpush1.bf16.msra.mxu0 %v1320
    %2027 = vmatprep.subr.bf16.mxu0 %v1325
    %2028 = vmatpush1.bf16.msra.mxu0 %v1324
    %2029 = vmatprep.subr.bf16.mxu0 %v1329
    %2030 = vmatpush1.bf16.msra.mxu0 %v1328
    %2031 = vmatprep.subr.bf16.mxu0 %v1333
    %2032 = vmatpush1.bf16.msra.mxu0 %v1332
    %2033 = vmatprep.subr.bf16.mxu0 %v1337
    %2034 = vmatpush1.bf16.msra.mxu0 %v1336
    %2035 = vmatprep.subr.bf16.mxu0 %v1341
    %2036 = vmatpush1.bf16.msra.mxu0 %v1340
    %2037 = vmatprep.subr.bf16.mxu0 %v1345
    %2038 = vmatpush1.bf16.msra.mxu0 %v1344
    %2039 = vmatprep.subr.bf16.mxu0 %v1349
    %2040 = vmatpush1.bf16.msra.mxu0 %v1348
    %2041 = vmatprep.subr.bf16.mxu0 0
    %2042 = vmatpush1.bf16.msra.mxu0 0
    %2043 = vmatprep.subr.bf16.mxu0 0
    %2044 = vmatpush1.bf16.msra.mxu0 0
    %2045 = vmatprep.subr.bf16.mxu0 0
    %2046 = vmatpush1.bf16.msra.mxu0 0
    %2047 = vmatprep.subr.bf16.mxu0 0
    %2048 = vmatpush1.bf16.msra.mxu0 0
    %2049 = vmatprep.subr.bf16.mxu0 0
    %2050 = vmatpush1.bf16.msra.mxu0 0
    %2051 = vmatprep.subr.bf16.mxu0 0
    %2052 = vmatpush1.bf16.msra.mxu0 0
    %2053 = vmatprep.subr.bf16.mxu0 0
    %2054 = vmatpush1.bf16.msra.mxu0 0
    %2055 = vmatprep.subr.bf16.mxu0 0
    %2056 = vmatpush1.bf16.msra.mxu0 0
    %2057 = vmatprep.mubr.bf16.mxu0 0
    %2058 = vmatmul.mubr.bf16.gmra.mrb[0].mxu0 %v1861
    %v2059 = vpop.f32.mrb[0].mxu0
    %v2060 = vadd.f32 0.0, %v2059
    %v2061 = vpop.f32.mrb[0].mxu0
    %v2062 = vadd.f32 0.0, %v2061
    %v2063 = vpop.f32.mrb[0].mxu0
    %v2064 = vadd.f32 0.0, %v2063
    %v2065 = vpop.f32.mrb[0].mxu0
    %v2066 = vadd.f32 0.0, %v2065
    %2067 = vdwg.mxu0
    %v2068 = vunpack.c.l.bf16 %v1978
    %v2069 = vunpack.c.l.bf16 %v1979
    %v2070 = vunpack.c.l.bf16 %v1980
    %v2071 = vunpack.c.l.bf16 %v1981
    %v2072 = vunpack.c.h.bf16 %v1978
    %v2073 = vunpack.c.h.bf16 %v1979
    %v2074 = vunpack.c.h.bf16 %v1980
    %v2075 = vunpack.c.h.bf16 %v1981
    %v2076 = vadd.f32 %v2068, %v2017
    %v2077 = vadd.f32 %v2069, %v2019
    %v2078 = vadd.f32 %v2070, %v2060
    %v2079 = vadd.f32 %v2071, %v2062
    %v2080 = vadd.f32 %v2072, %v2021
    %v2081 = vadd.f32 %v2073, %v2023
    %v2082 = vadd.f32 %v2074, %v2064
    %v2083 = vadd.f32 %v2075, %v2066
    %v2084 = vmul.f32 %v1967, 0.5
    %v2085 = vmul.f32 %v1971, 0.5
    %v2086 = vtanh.pop %v2084
    %v2087 = vtanh.pop %v2085
    %v2088 = vmul.f32 %v2086, 0.5
    %v2089 = vmul.f32 %v2087, 0.5
    %v2090 = vadd.f32 %v2088, 0.5
    %v2091 = vadd.f32 %v2089, 0.5
    %v2092 = vmul.f32 %v1968, 0.5
    %v2093 = vmul.f32 %v1972, 0.5
    %v2094 = vtanh.pop %v2092
    %v2095 = vtanh.pop %v2093
    %v2096 = vmul.f32 %v2094, 0.5
    %v2097 = vmul.f32 %v2095, 0.5
    %v2098 = vadd.f32 %v2096, 0.5
    %v2099 = vadd.f32 %v2097, 0.5
    %v2100 = vtanh.pop %v1969
    %v2101 = vtanh.pop %v1973
    %v2102 = vmul.f32 %v1970, 0.5
    %v2103 = vmul.f32 %v1974, 0.5
    %v2104 = vtanh.pop %v2102
    %v2105 = vtanh.pop %v2103
    %v2106 = vmul.f32 %v2104, 0.5
    %v2107 = vmul.f32 %v2105, 0.5
    %v2108 = vadd.f32 %v2106, 0.5
    %v2109 = vadd.f32 %v2107, 0.5
    %v2110 = vmul.f32 %v2098, %v1814
    %v2111 = vmul.f32 %v2099, %v1815
    %v2112 = vmul.f32 %v2090, %v2100
    %v2113 = vmul.f32 %v2091, %v2101
    %v2114 = vadd.f32 %v2110, %v2112
    %v2115 = vadd.f32 %v2111, %v2113
    %v2116 = vtanh.pop %v2114
    %v2117 = vtanh.pop %v2115
    %v2118 = vmul.f32 %v2108, %v2116
    %v2119 = vmul.f32 %v2109, %v2117
    %v2120 = vmul.f32 %v2076, 0.5
    %v2121 = vmul.f32 %v2080, 0.5
    %v2122 = vtanh.pop %v2120
    %v2123 = vtanh.pop %v2121
    %v2124 = vmul.f32 %v2122, 0.5
    %v2125 = vmul.f32 %v2123, 0.5
    %v2126 = vadd.f32 %v2124, 0.5
    %v2127 = vadd.f32 %v2125, 0.5
    %v2128 = vmul.f32 %v2077, 0.5
    %v2129 = vmul.f32 %v2081, 0.5
    %v2130 = vtanh.pop %v2128
    %v2131 = vtanh.pop %v2129
    %v2132 = vmul.f32 %v2130, 0.5
    %v2133 = vmul.f32 %v2131, 0.5
    %v2134 = vadd.f32 %v2132, 0.5
    %v2135 = vadd.f32 %v2133, 0.5
    %v2136 = vtanh.pop %v2078
    %v2137 = vtanh.pop %v2082
    %v2138 = vmul.f32 %v2079, 0.5
    %v2139 = vmul.f32 %v2083, 0.5
    %v2140 = vtanh.pop %v2138
    %v2141 = vtanh.pop %v2139
    %v2142 = vmul.f32 %v2140, 0.5
    %v2143 = vmul.f32 %v2141, 0.5
    %v2144 = vadd.f32 %v2142, 0.5
    %v2145 = vadd.f32 %v2143, 0.5
    %v2146 = vmul.f32 %v2134, %v1850
    %v2147 = vmul.f32 %v2135, %v1851
    %v2148 = vmul.f32 %v2126, %v2136
    %v2149 = vmul.f32 %v2127, %v2137
    %v2150 = vadd.f32 %v2146, %v2148
    %v2151 = vadd.f32 %v2147, %v2149
    %v2152 = vtanh.pop %v2150
    %v2153 = vtanh.pop %v2151
    %v2154 = vmul.f32 %v2144, %v2152
    %v2155 = vmul.f32 %v2145, %v2153
    %v2156 = vpack.c.bf16 %v2119, %v2118
    %s2157 = smul.u32 2, 2
    %s2158 = smul.addr %s2157, 8
    %s2159 = scalar_lea.vmem [#allocation3], %s2158
    %2160 = vst [vmem:[%s2159] sm:$0xff] %v2156
    %v2161 = vpack.c.bf16 %v2155, %v2154
    %s2162 = smul.u32 5, 2
    %s2163 = smul.addr %s2162, 8
    %s2164 = scalar_lea.vmem [#allocation3], %s2163
    %2165 = vst [vmem:[%s2164 + $0x8] sm:$0xff] %v2161
    %s2166 = smul.u32 3, 8
    %s2167 = smul.addr %s2166, 8
    %s2168 = scalar_lea.vmem [#allocation2], %s2167
    %v2169 = vld [vmem:[%s2168] sm:$0xff]
    %v2170 = vld [vmem:[%s2168 + $0x8] sm:$0xff]
    %v2171 = vld [vmem:[%s2168 + $0x10] sm:$0xff]
    %v2172 = vld [vmem:[%s2168 + $0x18] sm:$0xff]
    %2173 = vmatprep.subr.bf16.mxu0 %v1050
    %2174 = vmatpush1.bf16.msra.mxu0 %v1049
    %2175 = vmatprep.subr.bf16.mxu0 %v1054
    %2176 = vmatpush1.bf16.msra.mxu0 %v1053
    %2177 = vmatprep.subr.bf16.mxu0 %v1058
    %2178 = vmatpush1.bf16.msra.mxu0 %v1057
    %2179 = vmatprep.subr.bf16.mxu0 %v1062
    %2180 = vmatpush1.bf16.msra.mxu0 %v1061
    %2181 = vmatprep.subr.bf16.mxu0 %v1066
    %2182 = vmatpush1.bf16.msra.mxu0 %v1065
    %2183 = vmatprep.subr.bf16.mxu0 %v1070
    %2184 = vmatpush1.bf16.msra.mxu0 %v1069
    %2185 = vmatprep.subr.bf16.mxu0 %v1074
    %2186 = vmatpush1.bf16.msra.mxu0 %v1073
    %2187 = vmatprep.subr.bf16.mxu0 %v1078
    %2188 = vmatpush1.bf16.msra.mxu0 %v1077
    %2189 = vmatprep.subr.bf16.mxu0 0
    %2190 = vmatpush1.bf16.msra.mxu0 0
    %2191 = vmatprep.subr.bf16.mxu0 0
    %2192 = vmatpush1.bf16.msra.mxu0 0
    %2193 = vmatprep.subr.bf16.mxu0 0
    %2194 = vmatpush1.bf16.msra.mxu0 0
    %2195 = vmatprep.subr.bf16.mxu0 0
    %2196 = vmatpush1.bf16.msra.mxu0 0
    %2197 = vmatprep.subr.bf16.mxu0 0
    %2198 = vmatpush1.bf16.msra.mxu0 0
    %2199 = vmatprep.subr.bf16.mxu0 0
    %2200 = vmatpush1.bf16.msra.mxu0 0
    %2201 = vmatprep.subr.bf16.mxu0 0
    %2202 = vmatpush1.bf16.msra.mxu0 0
    %2203 = vmatprep.subr.bf16.mxu0 0
    %2204 = vmatpush1.bf16.msra.mxu0 0
    %2205 = vmatprep.mubr.bf16.mxu0 0
    %2206 = vmatmul.mubr.bf16.gmra.mrb[0].mxu0 %v2156
    %v2207 = vpop.f32.mrb[0].mxu0
    %v2208 = vadd.f32 0.0, %v2207
    %v2209 = vpop.f32.mrb[0].mxu0
    %v2210 = vadd.f32 0.0, %v2209
    %v2211 = vpop.f32.mrb[0].mxu0
    %v2212 = vadd.f32 0.0, %v2211
    %v2213 = vpop.f32.mrb[0].mxu0
    %v2214 = vadd.f32 0.0, %v2213
    %2215 = vdwg.mxu0
    %2216 = vmatprep.subr.bf16.mxu0 %v1052
    %2217 = vmatpush1.bf16.msra.mxu0 %v1051
    %2218 = vmatprep.subr.bf16.mxu0 %v1056
    %2219 = vmatpush1.bf16.msra.mxu0 %v1055
    %2220 = vmatprep.subr.bf16.mxu0 %v1060
    %2221 = vmatpush1.bf16.msra.mxu0 %v1059
    %2222 = vmatprep.subr.bf16.mxu0 %v1064
    %2223 = vmatpush1.bf16.msra.mxu0 %v1063
    %2224 = vmatprep.subr.bf16.mxu0 %v1068
    %2225 = vmatpush1.bf16.msra.mxu0 %v1067
    %2226 = vmatprep.subr.bf16.mxu0 %v1072
    %2227 = vmatpush1.bf16.msra.mxu0 %v1071
    %2228 = vmatprep.subr.bf16.mxu0 %v1076
    %2229 = vmatpush1.bf16.msra.mxu0 %v1075
    %2230 = vmatprep.subr.bf16.mxu0 %v1080
    %2231 = vmatpush1.bf16.msra.mxu0 %v1079
    %2232 = vmatprep.subr.bf16.mxu0 0
    %2233 = vmatpush1.bf16.msra.mxu0 0
    %2234 = vmatprep.subr.bf16.mxu0 0
    %2235 = vmatpush1.bf16.msra.mxu0 0
    %2236 = vmatprep.subr.bf16.mxu0 0
    %2237 = vmatpush1.bf16.msra.mxu0 0
    %2238 = vmatprep.subr.bf16.mxu0 0
    %2239 = vmatpush1.bf16.msra.mxu0 0
    %2240 = vmatprep.subr.bf16.mxu0 0
    %2241 = vmatpush1.bf16.msra.mxu0 0
    %2242 = vmatprep.subr.bf16.mxu0 0
    %2243 = vmatpush1.bf16.msra.mxu0 0
    %2244 = vmatprep.subr.bf16.mxu0 0
    %2245 = vmatpush1.bf16.msra.mxu0 0
    %2246 = vmatprep.subr.bf16.mxu0 0
    %2247 = vmatpush1.bf16.msra.mxu0 0
    %2248 = vmatprep.mubr.bf16.mxu0 0
    %2249 = vmatmul.mubr.bf16.gmra.mrb[0].mxu0 %v2156
    %v2250 = vpop.f32.mrb[0].mxu0
    %v2251 = vadd.f32 0.0, %v2250
    %v2252 = vpop.f32.mrb[0].mxu0
    %v2253 = vadd.f32 0.0, %v2252
    %v2254 = vpop.f32.mrb[0].mxu0
    %v2255 = vadd.f32 0.0, %v2254
    %v2256 = vpop.f32.mrb[0].mxu0
    %v2257 = vadd.f32 0.0, %v2256
    %2258 = vdwg.mxu0
    %v2259 = vunpack.c.l.bf16 %v2169
    %v2260 = vunpack.c.l.bf16 %v2170
    %v2261 = vunpack.c.l.bf16 %v2171
    %v2262 = vunpack.c.l.bf16 %v2172
    %v2263 = vunpack.c.h.bf16 %v2169
    %v2264 = vunpack.c.h.bf16 %v2170
    %v2265 = vunpack.c.h.bf16 %v2171
    %v2266 = vunpack.c.h.bf16 %v2172
    %v2267 = vadd.f32 %v2259, %v2208
    %v2268 = vadd.f32 %v2260, %v2210
    %v2269 = vadd.f32 %v2261, %v2251
    %v2270 = vadd.f32 %v2262, %v2253
    %v2271 = vadd.f32 %v2263, %v2212
    %v2272 = vadd.f32 %v2264, %v2214
    %v2273 = vadd.f32 %v2265, %v2255
    %v2274 = vadd.f32 %v2266, %v2257
    %s2275 = smul.u32 4, 8
    %s2276 = smul.addr %s2275, 8
    %s2277 = scalar_lea.vmem [#allocation2], %s2276
    %v2278 = vld [vmem:[%s2277 + $0x20] sm:$0xff]
    %v2279 = vld [vmem:[%s2277 + $0x28] sm:$0xff]
    %v2280 = vld [vmem:[%s2277 + $0x30] sm:$0xff]
    %v2281 = vld [vmem:[%s2277 + $0x38] sm:$0xff]
    %2282 = vmatprep.subr.bf16.mxu0 %v1319
    %2283 = vmatpush1.bf16.msra.mxu0 %v1318
    %2284 = vmatprep.subr.bf16.mxu0 %v1323
    %2285 = vmatpush1.bf16.msra.mxu0 %v1322
    %2286 = vmatprep.subr.bf16.mxu0 %v1327
    %2287 = vmatpush1.bf16.msra.mxu0 %v1326
    %2288 = vmatprep.subr.bf16.mxu0 %v1331
    %2289 = vmatpush1.bf16.msra.mxu0 %v1330
    %2290 = vmatprep.subr.bf16.mxu0 %v1335
    %2291 = vmatpush1.bf16.msra.mxu0 %v1334
    %2292 = vmatprep.subr.bf16.mxu0 %v1339
    %2293 = vmatpush1.bf16.msra.mxu0 %v1338
    %2294 = vmatprep.subr.bf16.mxu0 %v1343
    %2295 = vmatpush1.bf16.msra.mxu0 %v1342
    %2296 = vmatprep.subr.bf16.mxu0 %v1347
    %2297 = vmatpush1.bf16.msra.mxu0 %v1346
    %2298 = vmatprep.subr.bf16.mxu0 0
    %2299 = vmatpush1.bf16.msra.mxu0 0
    %2300 = vmatprep.subr.bf16.mxu0 0
    %2301 = vmatpush1.bf16.msra.mxu0 0
    %2302 = vmatprep.subr.bf16.mxu0 0
    %2303 = vmatpush1.bf16.msra.mxu0 0
    %2304 = vmatprep.subr.bf16.mxu0 0
    %2305 = vmatpush1.bf16.msra.mxu0 0
    %2306 = vmatprep.subr.bf16.mxu0 0
    %2307 = vmatpush1.bf16.msra.mxu0 0
    %2308 = vmatprep.subr.bf16.mxu0 0
    %2309 = vmatpush1.bf16.msra.mxu0 0
    %2310 = vmatprep.subr.bf16.mxu0 0
    %2311 = vmatpush1.bf16.msra.mxu0 0
    %2312 = vmatprep.subr.bf16.mxu0 0
    %2313 = vmatpush1.bf16.msra.mxu0 0
    %2314 = vmatprep.mubr.bf16.mxu0 0
    %2315 = vmatmul.mubr.bf16.gmra.mrb[0].mxu0 %v2161
    %v2316 = vpop.f32.mrb[0].mxu0
    %v2317 = vadd.f32 0.0, %v2316
    %v2318 = vpop.f32.mrb[0].mxu0
    %v2319 = vadd.f32 0.0, %v2318
    %v2320 = vpop.f32.mrb[0].mxu0
    %v2321 = vadd.f32 0.0, %v2320
    %v2322 = vpop.f32.mrb[0].mxu0
    %v2323 = vadd.f32 0.0, %v2322
    %2324 = vdwg.mxu0
    %2325 = vmatprep.subr.bf16.mxu0 %v1321
    %2326 = vmatpush1.bf16.msra.mxu0 %v1320
    %2327 = vmatprep.subr.bf16.mxu0 %v1325
    %2328 = vmatpush1.bf16.msra.mxu0 %v1324
    %2329 = vmatprep.subr.bf16.mxu0 %v1329
    %2330 = vmatpush1.bf16.msra.mxu0 %v1328
    %2331 = vmatprep.subr.bf16.mxu0 %v1333
    %2332 = vmatpush1.bf16.msra.mxu0 %v1332
    %2333 = vmatprep.subr.bf16.mxu0 %v1337
    %2334 = vmatpush1.bf16.msra.mxu0 %v1336
    %2335 = vmatprep.subr.bf16.mxu0 %v1341
    %2336 = vmatpush1.bf16.msra.mxu0 %v1340
    %2337 = vmatprep.subr.bf16.mxu0 %v1345
    %2338 = vmatpush1.bf16.msra.mxu0 %v1344
    %2339 = vmatprep.subr.bf16.mxu0 %v1349
    %2340 = vmatpush1.bf16.msra.mxu0 %v1348
    %2341 = vmatprep.subr.bf16.mxu0 0
    %2342 = vmatpush1.bf16.msra.mxu0 0
    %2343 = vmatprep.subr.bf16.mxu0 0
    %2344 = vmatpush1.bf16.msra.mxu0 0
    %2345 = vmatprep.subr.bf16.mxu0 0
    %2346 = vmatpush1.bf16.msra.mxu0 0
    %2347 = vmatprep.subr.bf16.mxu0 0
    %2348 = vmatpush1.bf16.msra.mxu0 0
    %2349 = vmatprep.subr.bf16.mxu0 0
    %2350 = vmatpush1.bf16.msra.mxu0 0
    %2351 = vmatprep.subr.bf16.mxu0 0
    %2352 = vmatpush1.bf16.msra.mxu0 0
    %2353 = vmatprep.subr.bf16.mxu0 0
    %2354 = vmatpush1.bf16.msra.mxu0 0
    %2355 = vmatprep.subr.bf16.mxu0 0
    %2356 = vmatpush1.bf16.msra.mxu0 0
    %2357 = vmatprep.mubr.bf16.mxu0 0
    %2358 = vmatmul.mubr.bf16.gmra.mrb[0].mxu0 %v2161
    %v2359 = vpop.f32.mrb[0].mxu0
    %v2360 = vadd.f32 0.0, %v2359
    %v2361 = vpop.f32.mrb[0].mxu0
    %v2362 = vadd.f32 0.0, %v2361
    %v2363 = vpop.f32.mrb[0].mxu0
    %v2364 = vadd.f32 0.0, %v2363
    %v2365 = vpop.f32.mrb[0].mxu0
    %v2366 = vadd.f32 0.0, %v2365
    %2367 = vdwg.mxu0
    %v2368 = vunpack.c.l.bf16 %v2278
    %v2369 = vunpack.c.l.bf16 %v2279
    %v2370 = vunpack.c.l.bf16 %v2280
    %v2371 = vunpack.c.l.bf16 %v2281
    %v2372 = vunpack.c.h.bf16 %v2278
    %v2373 = vunpack.c.h.bf16 %v2279
    %v2374 = vunpack.c.h.bf16 %v2280
    %v2375 = vunpack.c.h.bf16 %v2281
    %v2376 = vadd.f32 %v2368, %v2317
    %v2377 = vadd.f32 %v2369, %v2319
    %v2378 = vadd.f32 %v2370, %v2360
    %v2379 = vadd.f32 %v2371, %v2362
    %v2380 = vadd.f32 %v2372, %v2321
    %v2381 = vadd.f32 %v2373, %v2323
    %v2382 = vadd.f32 %v2374, %v2364
    %v2383 = vadd.f32 %v2375, %v2366
    %v2384 = vmul.f32 %v2267, 0.5
    %v2385 = vmul.f32 %v2271, 0.5
    %v2386 = vtanh.pop %v2384
    %v2387 = vtanh.pop %v2385
    %v2388 = vmul.f32 %v2386, 0.5
    %v2389 = vmul.f32 %v2387, 0.5
    %v2390 = vadd.f32 %v2388, 0.5
    %v2391 = vadd.f32 %v2389, 0.5
    %v2392 = vmul.f32 %v2268, 0.5
    %v2393 = vmul.f32 %v2272, 0.5
    %v2394 = vtanh.pop %v2392
    %v2395 = vtanh.pop %v2393
    %v2396 = vmul.f32 %v2394, 0.5
    %v2397 = vmul.f32 %v2395, 0.5
    %v2398 = vadd.f32 %v2396, 0.5
    %v2399 = vadd.f32 %v2397, 0.5
    %v2400 = vtanh.pop %v2269
    %v2401 = vtanh.pop %v2273
    %v2402 = vmul.f32 %v2270, 0.5
    %v2403 = vmul.f32 %v2274, 0.5
    %v2404 = vtanh.pop %v2402
    %v2405 = vtanh.pop %v2403
    %v2406 = vmul.f32 %v2404, 0.5
    %v2407 = vmul.f32 %v2405, 0.5
    %v2408 = vadd.f32 %v2406, 0.5
    %v2409 = vadd.f32 %v2407, 0.5
    %v2410 = vmul.f32 %v2398, %v2114
    %v2411 = vmul.f32 %v2399, %v2115
    %v2412 = vmul.f32 %v2390, %v2400
    %v2413 = vmul.f32 %v2391, %v2401
    %v2414 = vadd.f32 %v2410, %v2412
    %v2415 = vadd.f32 %v2411, %v2413
    %v2416 = vtanh.pop %v2414
    %v2417 = vtanh.pop %v2415
    %v2418 = vmul.f32 %v2408, %v2416
    %v2419 = vmul.f32 %v2409, %v2417
    %v2420 = vmul.f32 %v2376, 0.5
    %v2421 = vmul.f32 %v2380, 0.5
    %v2422 = vtanh.pop %v2420
    %v2423 = vtanh.pop %v2421
    %v2424 = vmul.f32 %v2422, 0.5
    %v2425 = vmul.f32 %v2423, 0.5
    %v2426 = vadd.f32 %v2424, 0.5
    %v2427 = vadd.f32 %v2425, 0.5
    %v2428 = vmul.f32 %v2377, 0.5
    %v2429 = vmul.f32 %v2381, 0.5
    %v2430 = vtanh.pop %v2428
    %v2431 = vtanh.pop %v2429
    %v2432 = vmul.f32 %v2430, 0.5
    %v2433 = vmul.f32 %v2431, 0.5
    %v2434 = vadd.f32 %v2432, 0.5
    %v2435 = vadd.f32 %v2433, 0.5
    %v2436 = vtanh.pop %v2378
    %v2437 = vtanh.pop %v2382
    %v2438 = vmul.f32 %v2379, 0.5
    %v2439 = vmul.f32 %v2383, 0.5
    %v2440 = vtanh.pop %v2438
    %v2441 = vtanh.pop %v2439
    %v2442 = vmul.f32 %v2440, 0.5
    %v2443 = vmul.f32 %v2441, 0.5
    %v2444 = vadd.f32 %v2442, 0.5
    %v2445 = vadd.f32 %v2443, 0.5
    %v2446 = vmul.f32 %v2434, %v2150
    %v2447 = vmul.f32 %v2435, %v2151
    %v2448 = vmul.f32 %v2426, %v2436
    %v2449 = vmul.f32 %v2427, %v2437
    %v2450 = vadd.f32 %v2446, %v2448
    %v2451 = vadd.f32 %v2447, %v2449
    %v2452 = vtanh.pop %v2450
    %v2453 = vtanh.pop %v2451
    %v2454 = vmul.f32 %v2444, %v2452
    %v2455 = vmul.f32 %v2445, %v2453
    %v2456 = vpack.c.bf16 %v2419, %v2418
    %s2457 = smul.u32 3, 2
    %s2458 = smul.addr %s2457, 8
    %s2459 = scalar_lea.vmem [#allocation3], %s2458
    %2460 = vst [vmem:[%s2459] sm:$0xff] %v2456
    %v2461 = vpack.c.bf16 %v2455, %v2454
    %s2462 = smul.u32 4, 2
    %s2463 = smul.addr %s2462, 8
    %s2464 = scalar_lea.vmem [#allocation3], %s2463
    %2465 = vst [vmem:[%s2464 + $0x8] sm:$0xff] %v2461
    %v2466 = vld [vmem:[%s2277] sm:$0xff]
    %v2467 = vld [vmem:[%s2277 + $0x8] sm:$0xff]
    %v2468 = vld [vmem:[%s2277 + $0x10] sm:$0xff]
    %v2469 = vld [vmem:[%s2277 + $0x18] sm:$0xff]
    %2470 = vmatprep.subr.bf16.mxu0 %v1050
    %2471 = vmatpush1.bf16.msra.mxu0 %v1049
    %2472 = vmatprep.subr.bf16.mxu0 %v1054
    %2473 = vmatpush1.bf16.msra.mxu0 %v1053
    %2474 = vmatprep.subr.bf16.mxu0 %v1058
    %2475 = vmatpush1.bf16.msra.mxu0 %v1057
    %2476 = vmatprep.subr.bf16.mxu0 %v1062
    %2477 = vmatpush1.bf16.msra.mxu0 %v1061
    %2478 = vmatprep.subr.bf16.mxu0 %v1066
    %2479 = vmatpush1.bf16.msra.mxu0 %v1065
    %2480 = vmatprep.subr.bf16.mxu0 %v1070
    %2481 = vmatpush1.bf16.msra.mxu0 %v1069
    %2482 = vmatprep.subr.bf16.mxu0 %v1074
    %2483 = vmatpush1.bf16.msra.mxu0 %v1073
    %2484 = vmatprep.subr.bf16.mxu0 %v1078
    %2485 = vmatpush1.bf16.msra.mxu0 %v1077
    %2486 = vmatprep.subr.bf16.mxu0 0
    %2487 = vmatpush1.bf16.msra.mxu0 0
    %2488 = vmatprep.subr.bf16.mxu0 0
    %2489 = vmatpush1.bf16.msra.mxu0 0
    %2490 = vmatprep.subr.bf16.mxu0 0
    %2491 = vmatpush1.bf16.msra.mxu0 0
    %2492 = vmatprep.subr.bf16.mxu0 0
    %2493 = vmatpush1.bf16.msra.mxu0 0
    %2494 = vmatprep.subr.bf16.mxu0 0
    %2495 = vmatpush1.bf16.msra.mxu0 0
    %2496 = vmatprep.subr.bf16.mxu0 0
    %2497 = vmatpush1.bf16.msra.mxu0 0
    %2498 = vmatprep.subr.bf16.mxu0 0
    %2499 = vmatpush1.bf16.msra.mxu0 0
    %2500 = vmatprep.subr.bf16.mxu0 0
    %2501 = vmatpush1.bf16.msra.mxu0 0
    %2502 = vmatprep.mubr.bf16.mxu0 0
    %2503 = vmatmul.mubr.bf16.gmra.mrb[0].mxu0 %v2456
    %v2504 = vpop.f32.mrb[0].mxu0
    %v2505 = vadd.f32 0.0, %v2504
    %v2506 = vpop.f32.mrb[0].mxu0
    %v2507 = vadd.f32 0.0, %v2506
    %v2508 = vpop.f32.mrb[0].mxu0
    %v2509 = vadd.f32 0.0, %v2508
    %v2510 = vpop.f32.mrb[0].mxu0
    %v2511 = vadd.f32 0.0, %v2510
    %2512 = vdwg.mxu0
    %2513 = vmatprep.subr.bf16.mxu0 %v1052
    %2514 = vmatpush1.bf16.msra.mxu0 %v1051
    %2515 = vmatprep.subr.bf16.mxu0 %v1056
    %2516 = vmatpush1.bf16.msra.mxu0 %v1055
    %2517 = vmatprep.subr.bf16.mxu0 %v1060
    %2518 = vmatpush1.bf16.msra.mxu0 %v1059
    %2519 = vmatprep.subr.bf16.mxu0 %v1064
    %2520 = vmatpush1.bf16.msra.mxu0 %v1063
    %2521 = vmatprep.subr.bf16.mxu0 %v1068
    %2522 = vmatpush1.bf16.msra.mxu0 %v1067
    %2523 = vmatprep.subr.bf16.mxu0 %v1072
    %2524 = vmatpush1.bf16.msra.mxu0 %v1071
    %2525 = vmatprep.subr.bf16.mxu0 %v1076
    %2526 = vmatpush1.bf16.msra.mxu0 %v1075
    %2527 = vmatprep.subr.bf16.mxu0 %v1080
    %2528 = vmatpush1.bf16.msra.mxu0 %v1079
    %2529 = vmatprep.subr.bf16.mxu0 0
    %2530 = vmatpush1.bf16.msra.mxu0 0
    %2531 = vmatprep.subr.bf16.mxu0 0
    %2532 = vmatpush1.bf16.msra.mxu0 0
    %2533 = vmatprep.subr.bf16.mxu0 0
    %2534 = vmatpush1.bf16.msra.mxu0 0
    %2535 = vmatprep.subr.bf16.mxu0 0
    %2536 = vmatpush1.bf16.msra.mxu0 0
    %2537 = vmatprep.subr.bf16.mxu0 0
    %2538 = vmatpush1.bf16.msra.mxu0 0
    %2539 = vmatprep.subr.bf16.mxu0 0
    %2540 = vmatpush1.bf16.msra.mxu0 0
    %2541 = vmatprep.subr.bf16.mxu0 0
    %2542 = vmatpush1.bf16.msra.mxu0 0
    %2543 = vmatprep.subr.bf16.mxu0 0
    %2544 = vmatpush1.bf16.msra.mxu0 0
    %2545 = vmatprep.mubr.bf16.mxu0 0
    %2546 = vmatmul.mubr.bf16.gmra.mrb[0].mxu0 %v2456
    %v2547 = vpop.f32.mrb[0].mxu0
    %v2548 = vadd.f32 0.0, %v2547
    %v2549 = vpop.f32.mrb[0].mxu0
    %v2550 = vadd.f32 0.0, %v2549
    %v2551 = vpop.f32.mrb[0].mxu0
    %v2552 = vadd.f32 0.0, %v2551
    %v2553 = vpop.f32.mrb[0].mxu0
    %v2554 = vadd.f32 0.0, %v2553
    %2555 = vdwg.mxu0
    %v2556 = vunpack.c.l.bf16 %v2466
    %v2557 = vunpack.c.l.bf16 %v2467
    %v2558 = vunpack.c.l.bf16 %v2468
    %v2559 = vunpack.c.l.bf16 %v2469
    %v2560 = vunpack.c.h.bf16 %v2466
    %v2561 = vunpack.c.h.bf16 %v2467
    %v2562 = vunpack.c.h.bf16 %v2468
    %v2563 = vunpack.c.h.bf16 %v2469
    %v2564 = vadd.f32 %v2556, %v2505
    %v2565 = vadd.f32 %v2557, %v2507
    %v2566 = vadd.f32 %v2558, %v2548
    %v2567 = vadd.f32 %v2559, %v2550
    %v2568 = vadd.f32 %v2560, %v2509
    %v2569 = vadd.f32 %v2561, %v2511
    %v2570 = vadd.f32 %v2562, %v2552
    %v2571 = vadd.f32 %v2563, %v2554
    %v2572 = vld [vmem:[%s2168 + $0x20] sm:$0xff]
    %v2573 = vld [vmem:[%s2168 + $0x28] sm:$0xff]
    %v2574 = vld [vmem:[%s2168 + $0x30] sm:$0xff]
    %v2575 = vld [vmem:[%s2168 + $0x38] sm:$0xff]
    %2576 = vmatprep.subr.bf16.mxu0 %v1319
    %2577 = vmatpush1.bf16.msra.mxu0 %v1318
    %2578 = vmatprep.subr.bf16.mxu0 %v1323
    %2579 = vmatpush1.bf16.msra.mxu0 %v1322
    %2580 = vmatprep.subr.bf16.mxu0 %v1327
    %2581 = vmatpush1.bf16.msra.mxu0 %v1326
    %2582 = vmatprep.subr.bf16.mxu0 %v1331
    %2583 = vmatpush1.bf16.msra.mxu0 %v1330
    %2584 = vmatprep.subr.bf16.mxu0 %v1335
    %2585 = vmatpush1.bf16.msra.mxu0 %v1334
    %2586 = vmatprep.subr.bf16.mxu0 %v1339
    %2587 = vmatpush1.bf16.msra.mxu0 %v1338
    %2588 = vmatprep.subr.bf16.mxu0 %v1343
    %2589 = vmatpush1.bf16.msra.mxu0 %v1342
    %2590 = vmatprep.subr.bf16.mxu0 %v1347
    %2591 = vmatpush1.bf16.msra.mxu0 %v1346
    %2592 = vmatprep.subr.bf16.mxu0 0
    %2593 = vmatpush1.bf16.msra.mxu0 0
    %2594 = vmatprep.subr.bf16.mxu0 0
    %2595 = vmatpush1.bf16.msra.mxu0 0
    %2596 = vmatprep.subr.bf16.mxu0 0
    %2597 = vmatpush1.bf16.msra.mxu0 0
    %2598 = vmatprep.subr.bf16.mxu0 0
    %2599 = vmatpush1.bf16.msra.mxu0 0
    %2600 = vmatprep.subr.bf16.mxu0 0
    %2601 = vmatpush1.bf16.msra.mxu0 0
    %2602 = vmatprep.subr.bf16.mxu0 0
    %2603 = vmatpush1.bf16.msra.mxu0 0
    %2604 = vmatprep.subr.bf16.mxu0 0
    %2605 = vmatpush1.bf16.msra.mxu0 0
    %2606 = vmatprep.subr.bf16.mxu0 0
    %2607 = vmatpush1.bf16.msra.mxu0 0
    %2608 = vmatprep.mubr.bf16.mxu0 0
    %2609 = vmatmul.mubr.bf16.gmra.mrb[0].mxu0 %v2461
    %v2610 = vpop.f32.mrb[0].mxu0
    %v2611 = vadd.f32 0.0, %v2610
    %v2612 = vpop.f32.mrb[0].mxu0
    %v2613 = vadd.f32 0.0, %v2612
    %v2614 = vpop.f32.mrb[0].mxu0
    %v2615 = vadd.f32 0.0, %v2614
    %v2616 = vpop.f32.mrb[0].mxu0
    %v2617 = vadd.f32 0.0, %v2616
    %2618 = vdwg.mxu0
    %2619 = vmatprep.subr.bf16.mxu0 %v1321
    %2620 = vmatpush1.bf16.msra.mxu0 %v1320
    %2621 = vmatprep.subr.bf16.mxu0 %v1325
    %2622 = vmatpush1.bf16.msra.mxu0 %v1324
    %2623 = vmatprep.subr.bf16.mxu0 %v1329
    %2624 = vmatpush1.bf16.msra.mxu0 %v1328
    %2625 = vmatprep.subr.bf16.mxu0 %v1333
    %2626 = vmatpush1.bf16.msra.mxu0 %v1332
    %2627 = vmatprep.subr.bf16.mxu0 %v1337
    %2628 = vmatpush1.bf16.msra.mxu0 %v1336
    %2629 = vmatprep.subr.bf16.mxu0 %v1341
    %2630 = vmatpush1.bf16.msra.mxu0 %v1340
    %2631 = vmatprep.subr.bf16.mxu0 %v1345
    %2632 = vmatpush1.bf16.msra.mxu0 %v1344
    %2633 = vmatprep.subr.bf16.mxu0 %v1349
    %2634 = vmatpush1.bf16.msra.mxu0 %v1348
    %2635 = vmatprep.subr.bf16.mxu0 0
    %2636 = vmatpush1.bf16.msra.mxu0 0
    %2637 = vmatprep.subr.bf16.mxu0 0
    %2638 = vmatpush1.bf16.msra.mxu0 0
    %2639 = vmatprep.subr.bf16.mxu0 0
    %2640 = vmatpush1.bf16.msra.mxu0 0
    %2641 = vmatprep.subr.bf16.mxu0 0
    %2642 = vmatpush1.bf16.msra.mxu0 0
    %2643 = vmatprep.subr.bf16.mxu0 0
    %2644 = vmatpush1.bf16.msra.mxu0 0
    %2645 = vmatprep.subr.bf16.mxu0 0
    %2646 = vmatpush1.bf16.msra.mxu0 0
    %2647 = vmatprep.subr.bf16.mxu0 0
    %2648 = vmatpush1.bf16.msra.mxu0 0
    %2649 = vmatprep.subr.bf16.mxu0 0
    %2650 = vmatpush1.bf16.msra.mxu0 0
    %2651 = vmatprep.mubr.bf16.mxu0 0
    %2652 = vmatmul.mubr.bf16.gmra.mrb[0].mxu0 %v2461
    %v2653 = vpop.f32.mrb[0].mxu0
    %v2654 = vadd.f32 0.0, %v2653
    %v2655 = vpop.f32.mrb[0].mxu0
    %v2656 = vadd.f32 0.0, %v2655
    %v2657 = vpop.f32.mrb[0].mxu0
    %v2658 = vadd.f32 0.0, %v2657
    %v2659 = vpop.f32.mrb[0].mxu0
    %v2660 = vadd.f32 0.0, %v2659
    %2661 = vdwg.mxu0
    %v2662 = vunpack.c.l.bf16 %v2572
    %v2663 = vunpack.c.l.bf16 %v2573
    %v2664 = vunpack.c.l.bf16 %v2574
    %v2665 = vunpack.c.l.bf16 %v2575
    %v2666 = vunpack.c.h.bf16 %v2572
    %v2667 = vunpack.c.h.bf16 %v2573
    %v2668 = vunpack.c.h.bf16 %v2574
    %v2669 = vunpack.c.h.bf16 %v2575
    %v2670 = vadd.f32 %v2662, %v2611
    %v2671 = vadd.f32 %v2663, %v2613
    %v2672 = vadd.f32 %v2664, %v2654
    %v2673 = vadd.f32 %v2665, %v2656
    %v2674 = vadd.f32 %v2666, %v2615
    %v2675 = vadd.f32 %v2667, %v2617
    %v2676 = vadd.f32 %v2668, %v2658
    %v2677 = vadd.f32 %v2669, %v2660
    %v2678 = vmul.f32 %v2564, 0.5
    %v2679 = vmul.f32 %v2568, 0.5
    %v2680 = vtanh.pop %v2678
    %v2681 = vtanh.pop %v2679
    %v2682 = vmul.f32 %v2680, 0.5
    %v2683 = vmul.f32 %v2681, 0.5
    %v2684 = vadd.f32 %v2682, 0.5
    %v2685 = vadd.f32 %v2683, 0.5
    %v2686 = vmul.f32 %v2565, 0.5
    %v2687 = vmul.f32 %v2569, 0.5
    %v2688 = vtanh.pop %v2686
    %v2689 = vtanh.pop %v2687
    %v2690 = vmul.f32 %v2688, 0.5
    %v2691 = vmul.f32 %v2689, 0.5
    %v2692 = vadd.f32 %v2690, 0.5
    %v2693 = vadd.f32 %v2691, 0.5
    %v2694 = vtanh.pop %v2566
    %v2695 = vtanh.pop %v2570
    %v2696 = vmul.f32 %v2567, 0.5
    %v2697 = vmul.f32 %v2571, 0.5
    %v2698 = vtanh.pop %v2696
    %v2699 = vtanh.pop %v2697
    %v2700 = vmul.f32 %v2698, 0.5
    %v2701 = vmul.f32 %v2699, 0.5
    %v2702 = vadd.f32 %v2700, 0.5
    %v2703 = vadd.f32 %v2701, 0.5
    %v2704 = vmul.f32 %v2692, %v2414
    %v2705 = vmul.f32 %v2693, %v2415
    %v2706 = vmul.f32 %v2684, %v2694
    %v2707 = vmul.f32 %v2685, %v2695
    %v2708 = vadd.f32 %v2704, %v2706
    %v2709 = vadd.f32 %v2705, %v2707
    %v2710 = vtanh.pop %v2708
    %v2711 = vtanh.pop %v2709
    %v2712 = vmul.f32 %v2702, %v2710
    %v2713 = vmul.f32 %v2703, %v2711
    %v2714 = vmul.f32 %v2670, 0.5
    %v2715 = vmul.f32 %v2674, 0.5
    %v2716 = vtanh.pop %v2714
    %v2717 = vtanh.pop %v2715
    %v2718 = vmul.f32 %v2716, 0.5
    %v2719 = vmul.f32 %v2717, 0.5
    %v2720 = vadd.f32 %v2718, 0.5
    %v2721 = vadd.f32 %v2719, 0.5
    %v2722 = vmul.f32 %v2671, 0.5
    %v2723 = vmul.f32 %v2675, 0.5
    %v2724 = vtanh.pop %v2722
    %v2725 = vtanh.pop %v2723
    %v2726 = vmul.f32 %v2724, 0.5
    %v2727 = vmul.f32 %v2725, 0.5
    %v2728 = vadd.f32 %v2726, 0.5
    %v2729 = vadd.f32 %v2727, 0.5
    %v2730 = vtanh.pop %v2672
    %v2731 = vtanh.pop %v2676
    %v2732 = vmul.f32 %v2673, 0.5
    %v2733 = vmul.f32 %v2677, 0.5
    %v2734 = vtanh.pop %v2732
    %v2735 = vtanh.pop %v2733
    %v2736 = vmul.f32 %v2734, 0.5
    %v2737 = vmul.f32 %v2735, 0.5
    %v2738 = vadd.f32 %v2736, 0.5
    %v2739 = vadd.f32 %v2737, 0.5
    %v2740 = vmul.f32 %v2728, %v2450
    %v2741 = vmul.f32 %v2729, %v2451
    %v2742 = vmul.f32 %v2720, %v2730
    %v2743 = vmul.f32 %v2721, %v2731
    %v2744 = vadd.f32 %v2740, %v2742
    %v2745 = vadd.f32 %v2741, %v2743
    %v2746 = vtanh.pop %v2744
    %v2747 = vtanh.pop %v2745
    %v2748 = vmul.f32 %v2738, %v2746
    %v2749 = vmul.f32 %v2739, %v2747
    %v2750 = vpack.c.bf16 %v2713, %v2712
    %2751 = vst [vmem:[%s2464] sm:$0xff] %v2750
    %v2752 = vpack.c.bf16 %v2749, %v2748
    %2753 = vst [vmem:[%s2459 + $0x8] sm:$0xff] %v2752
    %v2754 = vld [vmem:[%s1977] sm:$0xff]
    %v2755 = vld [vmem:[%s1977 + $0x8] sm:$0xff]
    %v2756 = vld [vmem:[%s1977 + $0x10] sm:$0xff]
    %v2757 = vld [vmem:[%s1977 + $0x18] sm:$0xff]
    %2758 = vmatprep.subr.bf16.mxu0 %v1050
    %2759 = vmatpush1.bf16.msra.mxu0 %v1049
    %2760 = vmatprep.subr.bf16.mxu0 %v1054
    %2761 = vmatpush1.bf16.msra.mxu0 %v1053
    %2762 = vmatprep.subr.bf16.mxu0 %v1058
    %2763 = vmatpush1.bf16.msra.mxu0 %v1057
    %2764 = vmatprep.subr.bf16.mxu0 %v1062
    %2765 = vmatpush1.bf16.msra.mxu0 %v1061
    %2766 = vmatprep.subr.bf16.mxu0 %v1066
    %2767 = vmatpush1.bf16.msra.mxu0 %v1065
    %2768 = vmatprep.subr.bf16.mxu0 %v1070
    %2769 = vmatpush1.bf16.msra.mxu0 %v1069
    %2770 = vmatprep.subr.bf16.mxu0 %v1074
    %2771 = vmatpush1.bf16.msra.mxu0 %v1073
    %2772 = vmatprep.subr.bf16.mxu0 %v1078
    %2773 = vmatpush1.bf16.msra.mxu0 %v1077
    %2774 = vmatprep.subr.bf16.mxu0 0
    %2775 = vmatpush1.bf16.msra.mxu0 0
    %2776 = vmatprep.subr.bf16.mxu0 0
    %2777 = vmatpush1.bf16.msra.mxu0 0
    %2778 = vmatprep.subr.bf16.mxu0 0
    %2779 = vmatpush1.bf16.msra.mxu0 0
    %2780 = vmatprep.subr.bf16.mxu0 0
    %2781 = vmatpush1.bf16.msra.mxu0 0
    %2782 = vmatprep.subr.bf16.mxu0 0
    %2783 = vmatpush1.bf16.msra.mxu0 0
    %2784 = vmatprep.subr.bf16.mxu0 0
    %2785 = vmatpush1.bf16.msra.mxu0 0
    %2786 = vmatprep.subr.bf16.mxu0 0
    %2787 = vmatpush1.bf16.msra.mxu0 0
    %2788 = vmatprep.subr.bf16.mxu0 0
    %2789 = vmatpush1.bf16.msra.mxu0 0
    %2790 = vmatprep.mubr.bf16.mxu0 0
    %2791 = vmatmul.mubr.bf16.gmra.mrb[0].mxu0 %v2750
    %v2792 = vpop.f32.mrb[0].mxu0
    %v2793 = vadd.f32 0.0, %v2792
    %v2794 = vpop.f32.mrb[0].mxu0
    %v2795 = vadd.f32 0.0, %v2794
    %v2796 = vpop.f32.mrb[0].mxu0
    %v2797 = vadd.f32 0.0, %v2796
    %v2798 = vpop.f32.mrb[0].mxu0
    %v2799 = vadd.f32 0.0, %v2798
    %2800 = vdwg.mxu0
    %2801 = vmatprep.subr.bf16.mxu0 %v1052
    %2802 = vmatpush1.bf16.msra.mxu0 %v1051
    %2803 = vmatprep.subr.bf16.mxu0 %v1056
    %2804 = vmatpush1.bf16.msra.mxu0 %v1055
    %2805 = vmatprep.subr.bf16.mxu0 %v1060
    %2806 = vmatpush1.bf16.msra.mxu0 %v1059
    %2807 = vmatprep.subr.bf16.mxu0 %v1064
    %2808 = vmatpush1.bf16.msra.mxu0 %v1063
    %2809 = vmatprep.subr.bf16.mxu0 %v1068
    %2810 = vmatpush1.bf16.msra.mxu0 %v1067
    %2811 = vmatprep.subr.bf16.mxu0 %v1072
    %2812 = vmatpush1.bf16.msra.mxu0 %v1071
    %2813 = vmatprep.subr.bf16.mxu0 %v1076
    %2814 = vmatpush1.bf16.msra.mxu0 %v1075
    %2815 = vmatprep.subr.bf16.mxu0 %v1080
    %2816 = vmatpush1.bf16.msra.mxu0 %v1079
    %2817 = vmatprep.subr.bf16.mxu0 0
    %2818 = vmatpush1.bf16.msra.mxu0 0
    %2819 = vmatprep.subr.bf16.mxu0 0
    %2820 = vmatpush1.bf16.msra.mxu0 0
    %2821 = vmatprep.subr.bf16.mxu0 0
    %2822 = vmatpush1.bf16.msra.mxu0 0
    %2823 = vmatprep.subr.bf16.mxu0 0
    %2824 = vmatpush1.bf16.msra.mxu0 0
    %2825 = vmatprep.subr.bf16.mxu0 0
    %2826 = vmatpush1.bf16.msra.mxu0 0
    %2827 = vmatprep.subr.bf16.mxu0 0
    %2828 = vmatpush1.bf16.msra.mxu0 0
    %2829 = vmatprep.subr.bf16.mxu0 0
    %2830 = vmatpush1.bf16.msra.mxu0 0
    %2831 = vmatprep.subr.bf16.mxu0 0
    %2832 = vmatpush1.bf16.msra.mxu0 0
    %2833 = vmatprep.mubr.bf16.mxu0 0
    %2834 = vmatmul.mubr.bf16.gmra.mrb[0].mxu0 %v2750
    %v2835 = vpop.f32.mrb[0].mxu0
    %v2836 = vadd.f32 0.0, %v2835
    %v2837 = vpop.f32.mrb[0].mxu0
    %v2838 = vadd.f32 0.0, %v2837
    %v2839 = vpop.f32.mrb[0].mxu0
    %v2840 = vadd.f32 0.0, %v2839
    %v2841 = vpop.f32.mrb[0].mxu0
    %v2842 = vadd.f32 0.0, %v2841
    %2843 = vdwg.mxu0
    %v2844 = vunpack.c.l.bf16 %v2754
    %v2845 = vunpack.c.l.bf16 %v2755
    %v2846 = vunpack.c.l.bf16 %v2756
    %v2847 = vunpack.c.l.bf16 %v2757
    %v2848 = vunpack.c.h.bf16 %v2754
    %v2849 = vunpack.c.h.bf16 %v2755
    %v2850 = vunpack.c.h.bf16 %v2756
    %v2851 = vunpack.c.h.bf16 %v2757
    %v2852 = vadd.f32 %v2844, %v2793
    %v2853 = vadd.f32 %v2845, %v2795
    %v2854 = vadd.f32 %v2846, %v2836
    %v2855 = vadd.f32 %v2847, %v2838
    %v2856 = vadd.f32 %v2848, %v2797
    %v2857 = vadd.f32 %v2849, %v2799
    %v2858 = vadd.f32 %v2850, %v2840
    %v2859 = vadd.f32 %v2851, %v2842
    %v2860 = vld [vmem:[%s1868 + $0x20] sm:$0xff]
    %v2861 = vld [vmem:[%s1868 + $0x28] sm:$0xff]
    %v2862 = vld [vmem:[%s1868 + $0x30] sm:$0xff]
    %v2863 = vld [vmem:[%s1868 + $0x38] sm:$0xff]
    %2864 = vmatprep.subr.bf16.mxu0 %v1319
    %2865 = vmatpush1.bf16.msra.mxu0 %v1318
    %2866 = vmatprep.subr.bf16.mxu0 %v1323
    %2867 = vmatpush1.bf16.msra.mxu0 %v1322
    %2868 = vmatprep.subr.bf16.mxu0 %v1327
    %2869 = vmatpush1.bf16.msra.mxu0 %v1326
    %2870 = vmatprep.subr.bf16.mxu0 %v1331
    %2871 = vmatpush1.bf16.msra.mxu0 %v1330
    %2872 = vmatprep.subr.bf16.mxu0 %v1335
    %2873 = vmatpush1.bf16.msra.mxu0 %v1334
    %2874 = vmatprep.subr.bf16.mxu0 %v1339
    %2875 = vmatpush1.bf16.msra.mxu0 %v1338
    %2876 = vmatprep.subr.bf16.mxu0 %v1343
    %2877 = vmatpush1.bf16.msra.mxu0 %v1342
    %2878 = vmatprep.subr.bf16.mxu0 %v1347
    %2879 = vmatpush1.bf16.msra.mxu0 %v1346
    %2880 = vmatprep.subr.bf16.mxu0 0
    %2881 = vmatpush1.bf16.msra.mxu0 0
    %2882 = vmatprep.subr.bf16.mxu0 0
    %2883 = vmatpush1.bf16.msra.mxu0 0
    %2884 = vmatprep.subr.bf16.mxu0 0
    %2885 = vmatpush1.bf16.msra.mxu0 0
    %2886 = vmatprep.subr.bf16.mxu0 0
    %2887 = vmatpush1.bf16.msra.mxu0 0
    %2888 = vmatprep.subr.bf16.mxu0 0
    %2889 = vmatpush1.bf16.msra.mxu0 0
    %2890 = vmatprep.subr.bf16.mxu0 0
    %2891 = vmatpush1.bf16.msra.mxu0 0
    %2892 = vmatprep.subr.bf16.mxu0 0
    %2893 = vmatpush1.bf16.msra.mxu0 0
    %2894 = vmatprep.subr.bf16.mxu0 0
    %2895 = vmatpush1.bf16.msra.mxu0 0
    %2896 = vmatprep.mubr.bf16.mxu0 0
    %2897 = vmatmul.mubr.bf16.gmra.mrb[0].mxu0 %v2752
    %v2898 = vpop.f32.mrb[0].mxu0
    %v2899 = vadd.f32 0.0, %v2898
    %v2900 = vpop.f32.mrb[0].mxu0
    %v2901 = vadd.f32 0.0, %v2900
    %v2902 = vpop.f32.mrb[0].mxu0
    %v2903 = vadd.f32 0.0, %v2902
    %v2904 = vpop.f32.mrb[0].mxu0
    %v2905 = vadd.f32 0.0, %v2904
    %2906 = vdwg.mxu0
    %2907 = vmatprep.subr.bf16.mxu0 %v1321
    %2908 = vmatpush1.bf16.msra.mxu0 %v1320
    %2909 = vmatprep.subr.bf16.mxu0 %v1325
    %2910 = vmatpush1.bf16.msra.mxu0 %v1324
    %2911 = vmatprep.subr.bf16.mxu0 %v1329
    %2912 = vmatpush1.bf16.msra.mxu0 %v1328
    %2913 = vmatprep.subr.bf16.mxu0 %v1333
    %2914 = vmatpush1.bf16.msra.mxu0 %v1332
    %2915 = vmatprep.subr.bf16.mxu0 %v1337
    %2916 = vmatpush1.bf16.msra.mxu0 %v1336
    %2917 = vmatprep.subr.bf16.mxu0 %v1341
    %2918 = vmatpush1.bf16.msra.mxu0 %v1340
    %2919 = vmatprep.subr.bf16.mxu0 %v1345
    %2920 = vmatpush1.bf16.msra.mxu0 %v1344
    %2921 = vmatprep.subr.bf16.mxu0 %v1349
    %2922 = vmatpush1.bf16.msra.mxu0 %v1348
    %2923 = vmatprep.subr.bf16.mxu0 0
    %2924 = vmatpush1.bf16.msra.mxu0 0
    %2925 = vmatprep.subr.bf16.mxu0 0
    %2926 = vmatpush1.bf16.msra.mxu0 0
    %2927 = vmatprep.subr.bf16.mxu0 0
    %2928 = vmatpush1.bf16.msra.mxu0 0
    %2929 = vmatprep.subr.bf16.mxu0 0
    %2930 = vmatpush1.bf16.msra.mxu0 0
    %2931 = vmatprep.subr.bf16.mxu0 0
    %2932 = vmatpush1.bf16.msra.mxu0 0
    %2933 = vmatprep.subr.bf16.mxu0 0
    %2934 = vmatpush1.bf16.msra.mxu0 0
    %2935 = vmatprep.subr.bf16.mxu0 0
    %2936 = vmatpush1.bf16.msra.mxu0 0
    %2937 = vmatprep.subr.bf16.mxu0 0
    %2938 = vmatpush1.bf16.msra.mxu0 0
    %2939 = vmatprep.mubr.bf16.mxu0 0
    %2940 = vmatmul.mubr.bf16.gmra.mrb[0].mxu0 %v2752
    %v2941 = vpop.f32.mrb[0].mxu0
    %v2942 = vadd.f32 0.0, %v2941
    %v2943 = vpop.f32.mrb[0].mxu0
    %v2944 = vadd.f32 0.0, %v2943
    %v2945 = vpop.f32.mrb[0].mxu0
    %v2946 = vadd.f32 0.0, %v2945
    %v2947 = vpop.f32.mrb[0].mxu0
    %v2948 = vadd.f32 0.0, %v2947
    %2949 = vdwg.mxu0
    %v2950 = vunpack.c.l.bf16 %v2860
    %v2951 = vunpack.c.l.bf16 %v2861
    %v2952 = vunpack.c.l.bf16 %v2862
    %v2953 = vunpack.c.l.bf16 %v2863
    %v2954 = vunpack.c.h.bf16 %v2860
    %v2955 = vunpack.c.h.bf16 %v2861
    %v2956 = vunpack.c.h.bf16 %v2862
    %v2957 = vunpack.c.h.bf16 %v2863
    %v2958 = vadd.f32 %v2950, %v2899
    %v2959 = vadd.f32 %v2951, %v2901
    %v2960 = vadd.f32 %v2952, %v2942
    %v2961 = vadd.f32 %v2953, %v2944
    %v2962 = vadd.f32 %v2954, %v2903
    %v2963 = vadd.f32 %v2955, %v2905
    %v2964 = vadd.f32 %v2956, %v2946
    %v2965 = vadd.f32 %v2957, %v2948
    %v2966 = vmul.f32 %v2852, 0.5
    %v2967 = vmul.f32 %v2856, 0.5
    %v2968 = vtanh.pop %v2966
    %v2969 = vtanh.pop %v2967
    %v2970 = vmul.f32 %v2968, 0.5
    %v2971 = vmul.f32 %v2969, 0.5
    %v2972 = vadd.f32 %v2970, 0.5
    %v2973 = vadd.f32 %v2971, 0.5
    %v2974 = vmul.f32 %v2853, 0.5
    %v2975 = vmul.f32 %v2857, 0.5
    %v2976 = vtanh.pop %v2974
    %v2977 = vtanh.pop %v2975
    %v2978 = vmul.f32 %v2976, 0.5
    %v2979 = vmul.f32 %v2977, 0.5
    %v2980 = vadd.f32 %v2978, 0.5
    %v2981 = vadd.f32 %v2979, 0.5
    %v2982 = vtanh.pop %v2854
    %v2983 = vtanh.pop %v2858
    %v2984 = vmul.f32 %v2855, 0.5
    %v2985 = vmul.f32 %v2859, 0.5
    %v2986 = vtanh.pop %v2984
    %v2987 = vtanh.pop %v2985
    %v2988 = vmul.f32 %v2986, 0.5
    %v2989 = vmul.f32 %v2987, 0.5
    %v2990 = vadd.f32 %v2988, 0.5
    %v2991 = vadd.f32 %v2989, 0.5
    %v2992 = vmul.f32 %v2980, %v2708
    %v2993 = vmul.f32 %v2981, %v2709
    %v2994 = vmul.f32 %v2972, %v2982
    %v2995 = vmul.f32 %v2973, %v2983
    %v2996 = vadd.f32 %v2992, %v2994
    %v2997 = vadd.f32 %v2993, %v2995
    %v2998 = vtanh.pop %v2996
    %v2999 = vtanh.pop %v2997
    %v3000 = vmul.f32 %v2990, %v2998
    %v3001 = vmul.f32 %v2991, %v2999
    %v3002 = vmul.f32 %v2958, 0.5
    %v3003 = vmul.f32 %v2962, 0.5
    %v3004 = vtanh.pop %v3002
    %v3005 = vtanh.pop %v3003
    %v3006 = vmul.f32 %v3004, 0.5
    %v3007 = vmul.f32 %v3005, 0.5
    %v3008 = vadd.f32 %v3006, 0.5
    %v3009 = vadd.f32 %v3007, 0.5
    %v3010 = vmul.f32 %v2959, 0.5
    %v3011 = vmul.f32 %v2963, 0.5
    %v3012 = vtanh.pop %v3010
    %v3013 = vtanh.pop %v3011
    %v3014 = vmul.f32 %v3012, 0.5
    %v3015 = vmul.f32 %v3013, 0.5
    %v3016 = vadd.f32 %v3014, 0.5
    %v3017 = vadd.f32 %v3015, 0.5
    %v3018 = vtanh.pop %v2960
    %v3019 = vtanh.pop %v2964
    %v3020 = vmul.f32 %v2961, 0.5
    %v3021 = vmul.f32 %v2965, 0.5
    %v3022 = vtanh.pop %v3020
    %v3023 = vtanh.pop %v3021
    %v3024 = vmul.f32 %v3022, 0.5
    %v3025 = vmul.f32 %v3023, 0.5
    %v3026 = vadd.f32 %v3024, 0.5
    %v3027 = vadd.f32 %v3025, 0.5
    %v3028 = vmul.f32 %v3016, %v2744
    %v3029 = vmul.f32 %v3017, %v2745
    %v3030 = vmul.f32 %v3008, %v3018
    %v3031 = vmul.f32 %v3009, %v3019
    %v3032 = vadd.f32 %v3028, %v3030
    %v3033 = vadd.f32 %v3029, %v3031
    %v3034 = vtanh.pop %v3032
    %v3035 = vtanh.pop %v3033
    %v3036 = vmul.f32 %v3026, %v3034
    %v3037 = vmul.f32 %v3027, %v3035
    %v3038 = vpack.c.bf16 %v3001, %v3000
    %3039 = vst [vmem:[%s2164] sm:$0xff] %v3038
    %v3040 = vpack.c.bf16 %v3037, %v3036
    %3041 = vst [vmem:[%s2159 + $0x8] sm:$0xff] %v3040
    %v3042 = vld [vmem:[%s1677] sm:$0xff]
    %v3043 = vld [vmem:[%s1677 + $0x8] sm:$0xff]
    %v3044 = vld [vmem:[%s1677 + $0x10] sm:$0xff]
    %v3045 = vld [vmem:[%s1677 + $0x18] sm:$0xff]
    %3046 = vmatprep.subr.bf16.mxu0 %v1050
    %3047 = vmatpush1.bf16.msra.mxu0 %v1049
    %3048 = vmatprep.subr.bf16.mxu0 %v1054
    %3049 = vmatpush1.bf16.msra.mxu0 %v1053
    %3050 = vmatprep.subr.bf16.mxu0 %v1058
    %3051 = vmatpush1.bf16.msra.mxu0 %v1057
    %3052 = vmatprep.subr.bf16.mxu0 %v1062
    %3053 = vmatpush1.bf16.msra.mxu0 %v1061
    %3054 = vmatprep.subr.bf16.mxu0 %v1066
    %3055 = vmatpush1.bf16.msra.mxu0 %v1065
    %3056 = vmatprep.subr.bf16.mxu0 %v1070
    %3057 = vmatpush1.bf16.msra.mxu0 %v1069
    %3058 = vmatprep.subr.bf16.mxu0 %v1074
    %3059 = vmatpush1.bf16.msra.mxu0 %v1073
    %3060 = vmatprep.subr.bf16.mxu0 %v1078
    %3061 = vmatpush1.bf16.msra.mxu0 %v1077
    %3062 = vmatprep.subr.bf16.mxu0 0
    %3063 = vmatpush1.bf16.msra.mxu0 0
    %3064 = vmatprep.subr.bf16.mxu0 0
    %3065 = vmatpush1.bf16.msra.mxu0 0
    %3066 = vmatprep.subr.bf16.mxu0 0
    %3067 = vmatpush1.bf16.msra.mxu0 0
    %3068 = vmatprep.subr.bf16.mxu0 0
    %3069 = vmatpush1.bf16.msra.mxu0 0
    %3070 = vmatprep.subr.bf16.mxu0 0
    %3071 = vmatpush1.bf16.msra.mxu0 0
    %3072 = vmatprep.subr.bf16.mxu0 0
    %3073 = vmatpush1.bf16.msra.mxu0 0
    %3074 = vmatprep.subr.bf16.mxu0 0
    %3075 = vmatpush1.bf16.msra.mxu0 0
    %3076 = vmatprep.subr.bf16.mxu0 0
    %3077 = vmatpush1.bf16.msra.mxu0 0
    %3078 = vmatprep.mubr.bf16.mxu0 0
    %3079 = vmatmul.mubr.bf16.gmra.mrb[0].mxu0 %v3038
    %v3080 = vpop.f32.mrb[0].mxu0
    %v3081 = vadd.f32 0.0, %v3080
    %v3082 = vpop.f32.mrb[0].mxu0
    %v3083 = vadd.f32 0.0, %v3082
    %v3084 = vpop.f32.mrb[0].mxu0
    %v3085 = vadd.f32 0.0, %v3084
    %v3086 = vpop.f32.mrb[0].mxu0
    %v3087 = vadd.f32 0.0, %v3086
    %3088 = vdwg.mxu0
    %3089 = vmatprep.subr.bf16.mxu0 %v1052
    %3090 = vmatpush1.bf16.msra.mxu0 %v1051
    %3091 = vmatprep.subr.bf16.mxu0 %v1056
    %3092 = vmatpush1.bf16.msra.mxu0 %v1055
    %3093 = vmatprep.subr.bf16.mxu0 %v1060
    %3094 = vmatpush1.bf16.msra.mxu0 %v1059
    %3095 = vmatprep.subr.bf16.mxu0 %v1064
    %3096 = vmatpush1.bf16.msra.mxu0 %v1063
    %3097 = vmatprep.subr.bf16.mxu0 %v1068
    %3098 = vmatpush1.bf16.msra.mxu0 %v1067
    %3099 = vmatprep.subr.bf16.mxu0 %v1072
    %3100 = vmatpush1.bf16.msra.mxu0 %v1071
    %3101 = vmatprep.subr.bf16.mxu0 %v1076
    %3102 = vmatpush1.bf16.msra.mxu0 %v1075
    %3103 = vmatprep.subr.bf16.mxu0 %v1080
    %3104 = vmatpush1.bf16.msra.mxu0 %v1079
    %3105 = vmatprep.subr.bf16.mxu0 0
    %3106 = vmatpush1.bf16.msra.mxu0 0
    %3107 = vmatprep.subr.bf16.mxu0 0
    %3108 = vmatpush1.bf16.msra.mxu0 0
    %3109 = vmatprep.subr.bf16.mxu0 0
    %3110 = vmatpush1.bf16.msra.mxu0 0
    %3111 = vmatprep.subr.bf16.mxu0 0
    %3112 = vmatpush1.bf16.msra.mxu0 0
    %3113 = vmatprep.subr.bf16.mxu0 0
    %3114 = vmatpush1.bf16.msra.mxu0 0
    %3115 = vmatprep.subr.bf16.mxu0 0
    %3116 = vmatpush1.bf16.msra.mxu0 0
    %3117 = vmatprep.subr.bf16.mxu0 0
    %3118 = vmatpush1.bf16.msra.mxu0 0
    %3119 = vmatprep.subr.bf16.mxu0 0
    %3120 = vmatpush1.bf16.msra.mxu0 0
    %3121 = vmatprep.mubr.bf16.mxu0 0
    %3122 = vmatmul.mubr.bf16.gmra.mrb[0].mxu0 %v3038
    %v3123 = vpop.f32.mrb[0].mxu0
    %v3124 = vadd.f32 0.0, %v3123
    %v3125 = vpop.f32.mrb[0].mxu0
    %v3126 = vadd.f32 0.0, %v3125
    %v3127 = vpop.f32.mrb[0].mxu0
    %v3128 = vadd.f32 0.0, %v3127
    %v3129 = vpop.f32.mrb[0].mxu0
    %v3130 = vadd.f32 0.0, %v3129
    %3131 = vdwg.mxu0
    %v3132 = vunpack.c.l.bf16 %v3042
    %v3133 = vunpack.c.l.bf16 %v3043
    %v3134 = vunpack.c.l.bf16 %v3044
    %v3135 = vunpack.c.l.bf16 %v3045
    %v3136 = vunpack.c.h.bf16 %v3042
    %v3137 = vunpack.c.h.bf16 %v3043
    %v3138 = vunpack.c.h.bf16 %v3044
    %v3139 = vunpack.c.h.bf16 %v3045
    %v3140 = vadd.f32 %v3132, %v3081
    %v3141 = vadd.f32 %v3133, %v3083
    %v3142 = vadd.f32 %v3134, %v3124
    %v3143 = vadd.f32 %v3135, %v3126
    %v3144 = vadd.f32 %v3136, %v3085
    %v3145 = vadd.f32 %v3137, %v3087
    %v3146 = vadd.f32 %v3138, %v3128
    %v3147 = vadd.f32 %v3139, %v3130
    %v3148 = vld [vmem:[%s1568 + $0x20] sm:$0xff]
    %v3149 = vld [vmem:[%s1568 + $0x28] sm:$0xff]
    %v3150 = vld [vmem:[%s1568 + $0x30] sm:$0xff]
    %v3151 = vld [vmem:[%s1568 + $0x38] sm:$0xff]
    %3152 = vmatprep.subr.bf16.mxu0 %v1319
    %3153 = vmatpush1.bf16.msra.mxu0 %v1318
    %3154 = vmatprep.subr.bf16.mxu0 %v1323
    %3155 = vmatpush1.bf16.msra.mxu0 %v1322
    %3156 = vmatprep.subr.bf16.mxu0 %v1327
    %3157 = vmatpush1.bf16.msra.mxu0 %v1326
    %3158 = vmatprep.subr.bf16.mxu0 %v1331
    %3159 = vmatpush1.bf16.msra.mxu0 %v1330
    %3160 = vmatprep.subr.bf16.mxu0 %v1335
    %3161 = vmatpush1.bf16.msra.mxu0 %v1334
    %3162 = vmatprep.subr.bf16.mxu0 %v1339
    %3163 = vmatpush1.bf16.msra.mxu0 %v1338
    %3164 = vmatprep.subr.bf16.mxu0 %v1343
    %3165 = vmatpush1.bf16.msra.mxu0 %v1342
    %3166 = vmatprep.subr.bf16.mxu0 %v1347
    %3167 = vmatpush1.bf16.msra.mxu0 %v1346
    %3168 = vmatprep.subr.bf16.mxu0 0
    %3169 = vmatpush1.bf16.msra.mxu0 0
    %3170 = vmatprep.subr.bf16.mxu0 0
    %3171 = vmatpush1.bf16.msra.mxu0 0
    %3172 = vmatprep.subr.bf16.mxu0 0
    %3173 = vmatpush1.bf16.msra.mxu0 0
    %3174 = vmatprep.subr.bf16.mxu0 0
    %3175 = vmatpush1.bf16.msra.mxu0 0
    %3176 = vmatprep.subr.bf16.mxu0 0
    %3177 = vmatpush1.bf16.msra.mxu0 0
    %3178 = vmatprep.subr.bf16.mxu0 0
    %3179 = vmatpush1.bf16.msra.mxu0 0
    %3180 = vmatprep.subr.bf16.mxu0 0
    %3181 = vmatpush1.bf16.msra.mxu0 0
    %3182 = vmatprep.subr.bf16.mxu0 0
    %3183 = vmatpush1.bf16.msra.mxu0 0
    %3184 = vmatprep.mubr.bf16.mxu0 0
    %3185 = vmatmul.mubr.bf16.gmra.mrb[0].mxu0 %v3040
    %v3186 = vpop.f32.mrb[0].mxu0
    %v3187 = vadd.f32 0.0, %v3186
    %v3188 = vpop.f32.mrb[0].mxu0
    %v3189 = vadd.f32 0.0, %v3188
    %v3190 = vpop.f32.mrb[0].mxu0
    %v3191 = vadd.f32 0.0, %v3190
    %v3192 = vpop.f32.mrb[0].mxu0
    %v3193 = vadd.f32 0.0, %v3192
    %3194 = vdwg.mxu0
    %3195 = vmatprep.subr.bf16.mxu0 %v1321
    %3196 = vmatpush1.bf16.msra.mxu0 %v1320
    %3197 = vmatprep.subr.bf16.mxu0 %v1325
    %3198 = vmatpush1.bf16.msra.mxu0 %v1324
    %3199 = vmatprep.subr.bf16.mxu0 %v1329
    %3200 = vmatpush1.bf16.msra.mxu0 %v1328
    %3201 = vmatprep.subr.bf16.mxu0 %v1333
    %3202 = vmatpush1.bf16.msra.mxu0 %v1332
    %3203 = vmatprep.subr.bf16.mxu0 %v1337
    %3204 = vmatpush1.bf16.msra.mxu0 %v1336
    %3205 = vmatprep.subr.bf16.mxu0 %v1341
    %3206 = vmatpush1.bf16.msra.mxu0 %v1340
    %3207 = vmatprep.subr.bf16.mxu0 %v1345
    %3208 = vmatpush1.bf16.msra.mxu0 %v1344
    %3209 = vmatprep.subr.bf16.mxu0 %v1349
    %3210 = vmatpush1.bf16.msra.mxu0 %v1348
    %3211 = vmatprep.subr.bf16.mxu0 0
    %3212 = vmatpush1.bf16.msra.mxu0 0
    %3213 = vmatprep.subr.bf16.mxu0 0
    %3214 = vmatpush1.bf16.msra.mxu0 0
    %3215 = vmatprep.subr.bf16.mxu0 0
    %3216 = vmatpush1.bf16.msra.mxu0 0
    %3217 = vmatprep.subr.bf16.mxu0 0
    %3218 = vmatpush1.bf16.msra.mxu0 0
    %3219 = vmatprep.subr.bf16.mxu0 0
    %3220 = vmatpush1.bf16.msra.mxu0 0
    %3221 = vmatprep.subr.bf16.mxu0 0
    %3222 = vmatpush1.bf16.msra.mxu0 0
    %3223 = vmatprep.subr.bf16.mxu0 0
    %3224 = vmatpush1.bf16.msra.mxu0 0
    %3225 = vmatprep.subr.bf16.mxu0 0
    %3226 = vmatpush1.bf16.msra.mxu0 0
    %3227 = vmatprep.mubr.bf16.mxu0 0
    %3228 = vmatmul.mubr.bf16.gmra.mrb[0].mxu0 %v3040
    %v3229 = vpop.f32.mrb[0].mxu0
    %v3230 = vadd.f32 0.0, %v3229
    %v3231 = vpop.f32.mrb[0].mxu0
    %v3232 = vadd.f32 0.0, %v3231
    %v3233 = vpop.f32.mrb[0].mxu0
    %v3234 = vadd.f32 0.0, %v3233
    %v3235 = vpop.f32.mrb[0].mxu0
    %v3236 = vadd.f32 0.0, %v3235
    %3237 = vdwg.mxu0
    %v3238 = vunpack.c.l.bf16 %v3148
    %v3239 = vunpack.c.l.bf16 %v3149
    %v3240 = vunpack.c.l.bf16 %v3150
    %v3241 = vunpack.c.l.bf16 %v3151
    %v3242 = vunpack.c.h.bf16 %v3148
    %v3243 = vunpack.c.h.bf16 %v3149
    %v3244 = vunpack.c.h.bf16 %v3150
    %v3245 = vunpack.c.h.bf16 %v3151
    %v3246 = vadd.f32 %v3238, %v3187
    %v3247 = vadd.f32 %v3239, %v3189
    %v3248 = vadd.f32 %v3240, %v3230
    %v3249 = vadd.f32 %v3241, %v3232
    %v3250 = vadd.f32 %v3242, %v3191
    %v3251 = vadd.f32 %v3243, %v3193
    %v3252 = vadd.f32 %v3244, %v3234
    %v3253 = vadd.f32 %v3245, %v3236
    %v3254 = vmul.f32 %v3140, 0.5
    %v3255 = vmul.f32 %v3144, 0.5
    %v3256 = vtanh.pop %v3254
    %v3257 = vtanh.pop %v3255
    %v3258 = vmul.f32 %v3256, 0.5
    %v3259 = vmul.f32 %v3257, 0.5
    %v3260 = vadd.f32 %v3258, 0.5
    %v3261 = vadd.f32 %v3259, 0.5
    %v3262 = vmul.f32 %v3141, 0.5
    %v3263 = vmul.f32 %v3145, 0.5
    %v3264 = vtanh.pop %v3262
    %v3265 = vtanh.pop %v3263
    %v3266 = vmul.f32 %v3264, 0.5
    %v3267 = vmul.f32 %v3265, 0.5
    %v3268 = vadd.f32 %v3266, 0.5
    %v3269 = vadd.f32 %v3267, 0.5
    %v3270 = vtanh.pop %v3142
    %v3271 = vtanh.pop %v3146
    %v3272 = vmul.f32 %v3143, 0.5
    %v3273 = vmul.f32 %v3147, 0.5
    %v3274 = vtanh.pop %v3272
    %v3275 = vtanh.pop %v3273
    %v3276 = vmul.f32 %v3274, 0.5
    %v3277 = vmul.f32 %v3275, 0.5
    %v3278 = vadd.f32 %v3276, 0.5
    %v3279 = vadd.f32 %v3277, 0.5
    %v3280 = vmul.f32 %v3268, %v2996
    %v3281 = vmul.f32 %v3269, %v2997
    %v3282 = vmul.f32 %v3260, %v3270
    %v3283 = vmul.f32 %v3261, %v3271
    %v3284 = vadd.f32 %v3280, %v3282
    %v3285 = vadd.f32 %v3281, %v3283
    %v3286 = vtanh.pop %v3284
    %v3287 = vtanh.pop %v3285
    %v3288 = vmul.f32 %v3278, %v3286
    %v3289 = vmul.f32 %v3279, %v3287
    %v3290 = vmul.f32 %v3246, 0.5
    %v3291 = vmul.f32 %v3250, 0.5
    %v3292 = vtanh.pop %v3290
    %v3293 = vtanh.pop %v3291
    %v3294 = vmul.f32 %v3292, 0.5
    %v3295 = vmul.f32 %v3293, 0.5
    %v3296 = vadd.f32 %v3294, 0.5
    %v3297 = vadd.f32 %v3295, 0.5
    %v3298 = vmul.f32 %v3247, 0.5
    %v3299 = vmul.f32 %v3251, 0.5
    %v3300 = vtanh.pop %v3298
    %v3301 = vtanh.pop %v3299
    %v3302 = vmul.f32 %v3300, 0.5
    %v3303 = vmul.f32 %v3301, 0.5
    %v3304 = vadd.f32 %v3302, 0.5
    %v3305 = vadd.f32 %v3303, 0.5
    %v3306 = vtanh.pop %v3248
    %v3307 = vtanh.pop %v3252
    %v3308 = vmul.f32 %v3249, 0.5
    %v3309 = vmul.f32 %v3253, 0.5
    %v3310 = vtanh.pop %v3308
    %v3311 = vtanh.pop %v3309
    %v3312 = vmul.f32 %v3310, 0.5
    %v3313 = vmul.f32 %v3311, 0.5
    %v3314 = vadd.f32 %v3312, 0.5
    %v3315 = vadd.f32 %v3313, 0.5
    %v3316 = vmul.f32 %v3304, %v3032
    %v3317 = vmul.f32 %v3305, %v3033
    %v3318 = vmul.f32 %v3296, %v3306
    %v3319 = vmul.f32 %v3297, %v3307
    %v3320 = vadd.f32 %v3316, %v3318
    %v3321 = vadd.f32 %v3317, %v3319
    %v3322 = vtanh.pop %v3320
    %v3323 = vtanh.pop %v3321
    %v3324 = vmul.f32 %v3314, %v3322
    %v3325 = vmul.f32 %v3315, %v3323
    %v3326 = vpack.c.bf16 %v3289, %v3288
    %3327 = vst [vmem:[%s1864] sm:$0xff] %v3326
    %v3328 = vpack.c.bf16 %v3325, %v3324
    %3329 = vst [vmem:[%s1859 + $0x8] sm:$0xff] %v3328
    %v3330 = vld [vmem:[%s1217] sm:$0xff]
    %v3331 = vld [vmem:[%s1217 + $0x8] sm:$0xff]
    %v3332 = vld [vmem:[%s1217 + $0x10] sm:$0xff]
    %v3333 = vld [vmem:[%s1217 + $0x18] sm:$0xff]
    %3334 = vmatprep.subr.bf16.mxu0 %v1050
    %3335 = vmatpush1.bf16.msra.mxu0 %v1049
    %3336 = vmatprep.subr.bf16.mxu0 %v1054
    %3337 = vmatpush1.bf16.msra.mxu0 %v1053
    %3338 = vmatprep.subr.bf16.mxu0 %v1058
    %3339 = vmatpush1.bf16.msra.mxu0 %v1057
    %3340 = vmatprep.subr.bf16.mxu0 %v1062
    %3341 = vmatpush1.bf16.msra.mxu0 %v1061
    %3342 = vmatprep.subr.bf16.mxu0 %v1066
    %3343 = vmatpush1.bf16.msra.mxu0 %v1065
    %3344 = vmatprep.subr.bf16.mxu0 %v1070
    %3345 = vmatpush1.bf16.msra.mxu0 %v1069
    %3346 = vmatprep.subr.bf16.mxu0 %v1074
    %3347 = vmatpush1.bf16.msra.mxu0 %v1073
    %3348 = vmatprep.subr.bf16.mxu0 %v1078
    %3349 = vmatpush1.bf16.msra.mxu0 %v1077
    %3350 = vmatprep.subr.bf16.mxu0 0
    %3351 = vmatpush1.bf16.msra.mxu0 0
    %3352 = vmatprep.subr.bf16.mxu0 0
    %3353 = vmatpush1.bf16.msra.mxu0 0
    %3354 = vmatprep.subr.bf16.mxu0 0
    %3355 = vmatpush1.bf16.msra.mxu0 0
    %3356 = vmatprep.subr.bf16.mxu0 0
    %3357 = vmatpush1.bf16.msra.mxu0 0
    %3358 = vmatprep.subr.bf16.mxu0 0
    %3359 = vmatpush1.bf16.msra.mxu0 0
    %3360 = vmatprep.subr.bf16.mxu0 0
    %3361 = vmatpush1.bf16.msra.mxu0 0
    %3362 = vmatprep.subr.bf16.mxu0 0
    %3363 = vmatpush1.bf16.msra.mxu0 0
    %3364 = vmatprep.subr.bf16.mxu0 0
    %3365 = vmatpush1.bf16.msra.mxu0 0
    %3366 = vmatprep.mubr.bf16.mxu0 0
    %3367 = vmatmul.mubr.bf16.gmra.mrb[0].mxu0 %v3326
    %v3368 = vpop.f32.mrb[0].mxu0
    %v3369 = vadd.f32 0.0, %v3368
    %v3370 = vpop.f32.mrb[0].mxu0
    %v3371 = vadd.f32 0.0, %v3370
    %v3372 = vpop.f32.mrb[0].mxu0
    %v3373 = vadd.f32 0.0, %v3372
    %v3374 = vpop.f32.mrb[0].mxu0
    %v3375 = vadd.f32 0.0, %v3374
    %3376 = vdwg.mxu0
    %3377 = vmatprep.subr.bf16.mxu0 %v1052
    %3378 = vmatpush1.bf16.msra.mxu0 %v1051
    %3379 = vmatprep.subr.bf16.mxu0 %v1056
    %3380 = vmatpush1.bf16.msra.mxu0 %v1055
    %3381 = vmatprep.subr.bf16.mxu0 %v1060
    %3382 = vmatpush1.bf16.msra.mxu0 %v1059
    %3383 = vmatprep.subr.bf16.mxu0 %v1064
    %3384 = vmatpush1.bf16.msra.mxu0 %v1063
    %3385 = vmatprep.subr.bf16.mxu0 %v1068
    %3386 = vmatpush1.bf16.msra.mxu0 %v1067
    %3387 = vmatprep.subr.bf16.mxu0 %v1072
    %3388 = vmatpush1.bf16.msra.mxu0 %v1071
    %3389 = vmatprep.subr.bf16.mxu0 %v1076
    %3390 = vmatpush1.bf16.msra.mxu0 %v1075
    %3391 = vmatprep.subr.bf16.mxu0 %v1080
    %3392 = vmatpush1.bf16.msra.mxu0 %v1079
    %3393 = vmatprep.subr.bf16.mxu0 0
    %3394 = vmatpush1.bf16.msra.mxu0 0
    %3395 = vmatprep.subr.bf16.mxu0 0
    %3396 = vmatpush1.bf16.msra.mxu0 0
    %3397 = vmatprep.subr.bf16.mxu0 0
    %3398 = vmatpush1.bf16.msra.mxu0 0
    %3399 = vmatprep.subr.bf16.mxu0 0
    %3400 = vmatpush1.bf16.msra.mxu0 0
    %3401 = vmatprep.subr.bf16.mxu0 0
    %3402 = vmatpush1.bf16.msra.mxu0 0
    %3403 = vmatprep.subr.bf16.mxu0 0
    %3404 = vmatpush1.bf16.msra.mxu0 0
    %3405 = vmatprep.subr.bf16.mxu0 0
    %3406 = vmatpush1.bf16.msra.mxu0 0
    %3407 = vmatprep.subr.bf16.mxu0 0
    %3408 = vmatpush1.bf16.msra.mxu0 0
    %3409 = vmatprep.mubr.bf16.mxu0 0
    %3410 = vmatmul.mubr.bf16.gmra.mrb[0].mxu0 %v3326
    %v3411 = vpop.f32.mrb[0].mxu0
    %v3412 = vadd.f32 0.0, %v3411
    %v3413 = vpop.f32.mrb[0].mxu0
    %v3414 = vadd.f32 0.0, %v3413
    %v3415 = vpop.f32.mrb[0].mxu0
    %v3416 = vadd.f32 0.0, %v3415
    %v3417 = vpop.f32.mrb[0].mxu0
    %v3418 = vadd.f32 0.0, %v3417
    %3419 = vdwg.mxu0
    %v3420 = vunpack.c.l.bf16 %v3330
    %v3421 = vunpack.c.l.bf16 %v3331
    %v3422 = vunpack.c.l.bf16 %v3332
    %v3423 = vunpack.c.l.bf16 %v3333
    %v3424 = vunpack.c.h.bf16 %v3330
    %v3425 = vunpack.c.h.bf16 %v3331
    %v3426 = vunpack.c.h.bf16 %v3332
    %v3427 = vunpack.c.h.bf16 %v3333
    %v3428 = vadd.f32 %v3420, %v3369
    %v3429 = vadd.f32 %v3421, %v3371
    %v3430 = vadd.f32 %v3422, %v3412
    %v3431 = vadd.f32 %v3423, %v3414
    %v3432 = vadd.f32 %v3424, %v3373
    %v3433 = vadd.f32 %v3425, %v3375
    %v3434 = vadd.f32 %v3426, %v3416
    %v3435 = vadd.f32 %v3427, %v3418
    %v3436 = vld [vmem:[%s948 + $0x20] sm:$0xff]
    %v3437 = vld [vmem:[%s948 + $0x28] sm:$0xff]
    %v3438 = vld [vmem:[%s948 + $0x30] sm:$0xff]
    %v3439 = vld [vmem:[%s948 + $0x38] sm:$0xff]
    %3440 = vmatprep.subr.bf16.mxu0 %v1319
    %3441 = vmatpush1.bf16.msra.mxu0 %v1318
    %3442 = vmatprep.subr.bf16.mxu0 %v1323
    %3443 = vmatpush1.bf16.msra.mxu0 %v1322
    %3444 = vmatprep.subr.bf16.mxu0 %v1327
    %3445 = vmatpush1.bf16.msra.mxu0 %v1326
    %3446 = vmatprep.subr.bf16.mxu0 %v1331
    %3447 = vmatpush1.bf16.msra.mxu0 %v1330
    %3448 = vmatprep.subr.bf16.mxu0 %v1335
    %3449 = vmatpush1.bf16.msra.mxu0 %v1334
    %3450 = vmatprep.subr.bf16.mxu0 %v1339
    %3451 = vmatpush1.bf16.msra.mxu0 %v1338
    %3452 = vmatprep.subr.bf16.mxu0 %v1343
    %3453 = vmatpush1.bf16.msra.mxu0 %v1342
    %3454 = vmatprep.subr.bf16.mxu0 %v1347
    %3455 = vmatpush1.bf16.msra.mxu0 %v1346
    %3456 = vmatprep.subr.bf16.mxu0 0
    %3457 = vmatpush1.bf16.msra.mxu0 0
    %3458 = vmatprep.subr.bf16.mxu0 0
    %3459 = vmatpush1.bf16.msra.mxu0 0
    %3460 = vmatprep.subr.bf16.mxu0 0
    %3461 = vmatpush1.bf16.msra.mxu0 0
    %3462 = vmatprep.subr.bf16.mxu0 0
    %3463 = vmatpush1.bf16.msra.mxu0 0
    %3464 = vmatprep.subr.bf16.mxu0 0
    %3465 = vmatpush1.bf16.msra.mxu0 0
    %3466 = vmatprep.subr.bf16.mxu0 0
    %3467 = vmatpush1.bf16.msra.mxu0 0
    %3468 = vmatprep.subr.bf16.mxu0 0
    %3469 = vmatpush1.bf16.msra.mxu0 0
    %3470 = vmatprep.subr.bf16.mxu0 0
    %3471 = vmatpush1.bf16.msra.mxu0 0
    %3472 = vmatprep.mubr.bf16.mxu0 0
    %3473 = vmatmul.mubr.bf16.gmra.mrb[0].mxu0 %v3328
    %v3474 = vpop.f32.mrb[0].mxu0
    %v3475 = vadd.f32 0.0, %v3474
    %v3476 = vpop.f32.mrb[0].mxu0
    %v3477 = vadd.f32 0.0, %v3476
    %v3478 = vpop.f32.mrb[0].mxu0
    %v3479 = vadd.f32 0.0, %v3478
    %v3480 = vpop.f32.mrb[0].mxu0
    %v3481 = vadd.f32 0.0, %v3480
    %3482 = vdwg.mxu0
    %3483 = vmatprep.subr.bf16.mxu0 %v1321
    %3484 = vmatpush1.bf16.msra.mxu0 %v1320
    %3485 = vmatprep.subr.bf16.mxu0 %v1325
    %3486 = vmatpush1.bf16.msra.mxu0 %v1324
    %3487 = vmatprep.subr.bf16.mxu0 %v1329
    %3488 = vmatpush1.bf16.msra.mxu0 %v1328
    %3489 = vmatprep.subr.bf16.mxu0 %v1333
    %3490 = vmatpush1.bf16.msra.mxu0 %v1332
    %3491 = vmatprep.subr.bf16.mxu0 %v1337
    %3492 = vmatpush1.bf16.msra.mxu0 %v1336
    %3493 = vmatprep.subr.bf16.mxu0 %v1341
    %3494 = vmatpush1.bf16.msra.mxu0 %v1340
    %3495 = vmatprep.subr.bf16.mxu0 %v1345
    %3496 = vmatpush1.bf16.msra.mxu0 %v1344
    %3497 = vmatprep.subr.bf16.mxu0 %v1349
    %3498 = vmatpush1.bf16.msra.mxu0 %v1348
    %3499 = vmatprep.subr.bf16.mxu0 0
    %3500 = vmatpush1.bf16.msra.mxu0 0
    %3501 = vmatprep.subr.bf16.mxu0 0
    %3502 = vmatpush1.bf16.msra.mxu0 0
    %3503 = vmatprep.subr.bf16.mxu0 0
    %3504 = vmatpush1.bf16.msra.mxu0 0
    %3505 = vmatprep.subr.bf16.mxu0 0
    %3506 = vmatpush1.bf16.msra.mxu0 0
    %3507 = vmatprep.subr.bf16.mxu0 0
    %3508 = vmatpush1.bf16.msra.mxu0 0
    %3509 = vmatprep.subr.bf16.mxu0 0
    %3510 = vmatpush1.bf16.msra.mxu0 0
    %3511 = vmatprep.subr.bf16.mxu0 0
    %3512 = vmatpush1.bf16.msra.mxu0 0
    %3513 = vmatprep.subr.bf16.mxu0 0
    %3514 = vmatpush1.bf16.msra.mxu0 0
    %3515 = vmatprep.mubr.bf16.mxu0 0
    %3516 = vmatmul.mubr.bf16.gmra.mrb[0].mxu0 %v3328
    %v3517 = vpop.f32.mrb[0].mxu0
    %v3518 = vadd.f32 0.0, %v3517
    %v3519 = vpop.f32.mrb[0].mxu0
    %v3520 = vadd.f32 0.0, %v3519
    %v3521 = vpop.f32.mrb[0].mxu0
    %v3522 = vadd.f32 0.0, %v3521
    %v3523 = vpop.f32.mrb[0].mxu0
    %v3524 = vadd.f32 0.0, %v3523
    %3525 = vdwg.mxu0
    %v3526 = vunpack.c.l.bf16 %v3436
    %v3527 = vunpack.c.l.bf16 %v3437
    %v3528 = vunpack.c.l.bf16 %v3438
    %v3529 = vunpack.c.l.bf16 %v3439
    %v3530 = vunpack.c.h.bf16 %v3436
    %v3531 = vunpack.c.h.bf16 %v3437
    %v3532 = vunpack.c.h.bf16 %v3438
    %v3533 = vunpack.c.h.bf16 %v3439
    %v3534 = vadd.f32 %v3526, %v3475
    %v3535 = vadd.f32 %v3527, %v3477
    %v3536 = vadd.f32 %v3528, %v3518
    %v3537 = vadd.f32 %v3529, %v3520
    %v3538 = vadd.f32 %v3530, %v3479
    %v3539 = vadd.f32 %v3531, %v3481
    %v3540 = vadd.f32 %v3532, %v3522
    %v3541 = vadd.f32 %v3533, %v3524
    %v3542 = vmul.f32 %v3428, 0.5
    %v3543 = vmul.f32 %v3432, 0.5
    %v3544 = vtanh.pop %v3542
    %v3545 = vtanh.pop %v3543
    %v3546 = vmul.f32 %v3544, 0.5
    %v3547 = vmul.f32 %v3545, 0.5
    %v3548 = vadd.f32 %v3546, 0.5
    %v3549 = vadd.f32 %v3547, 0.5
    %v3550 = vmul.f32 %v3429, 0.5
    %v3551 = vmul.f32 %v3433, 0.5
    %v3552 = vtanh.pop %v3550
    %v3553 = vtanh.pop %v3551
    %v3554 = vmul.f32 %v3552, 0.5
    %v3555 = vmul.f32 %v3553, 0.5
    %v3556 = vadd.f32 %v3554, 0.5
    %v3557 = vadd.f32 %v3555, 0.5
    %v3558 = vtanh.pop %v3430
    %v3559 = vtanh.pop %v3434
    %v3560 = vmul.f32 %v3431, 0.5
    %v3561 = vmul.f32 %v3435, 0.5
    %v3562 = vtanh.pop %v3560
    %v3563 = vtanh.pop %v3561
    %v3564 = vmul.f32 %v3562, 0.5
    %v3565 = vmul.f32 %v3563, 0.5
    %v3566 = vadd.f32 %v3564, 0.5
    %v3567 = vadd.f32 %v3565, 0.5
    %v3568 = vmul.f32 %v3556, %v3284
    %v3569 = vmul.f32 %v3557, %v3285
    %v3570 = vmul.f32 %v3548, %v3558
    %v3571 = vmul.f32 %v3549, %v3559
    %v3572 = vadd.f32 %v3568, %v3570
    %v3573 = vadd.f32 %v3569, %v3571
    %v3574 = vtanh.pop %v3572
    %v3575 = vtanh.pop %v3573
    %v3576 = vmul.f32 %v3566, %v3574
    %v3577 = vmul.f32 %v3567, %v3575
    %v3578 = vmul.f32 %v3534, 0.5
    %v3579 = vmul.f32 %v3538, 0.5
    %v3580 = vtanh.pop %v3578
    %v3581 = vtanh.pop %v3579
    %v3582 = vmul.f32 %v3580, 0.5
    %v3583 = vmul.f32 %v3581, 0.5
    %v3584 = vadd.f32 %v3582, 0.5
    %v3585 = vadd.f32 %v3583, 0.5
    %v3586 = vmul.f32 %v3535, 0.5
    %v3587 = vmul.f32 %v3539, 0.5
    %v3588 = vtanh.pop %v3586
    %v3589 = vtanh.pop %v3587
    %v3590 = vmul.f32 %v3588, 0.5
    %v3591 = vmul.f32 %v3589, 0.5
    %v3592 = vadd.f32 %v3590, 0.5
    %v3593 = vadd.f32 %v3591, 0.5
    %v3594 = vtanh.pop %v3536
    %v3595 = vtanh.pop %v3540
    %v3596 = vmul.f32 %v3537, 0.5
    %v3597 = vmul.f32 %v3541, 0.5
    %v3598 = vtanh.pop %v3596
    %v3599 = vtanh.pop %v3597
    %v3600 = vmul.f32 %v3598, 0.5
    %v3601 = vmul.f32 %v3599, 0.5
    %v3602 = vadd.f32 %v3600, 0.5
    %v3603 = vadd.f32 %v3601, 0.5
    %v3604 = vmul.f32 %v3592, %v3320
    %v3605 = vmul.f32 %v3593, %v3321
    %v3606 = vmul.f32 %v3584, %v3594
    %v3607 = vmul.f32 %v3585, %v3595
    %v3608 = vadd.f32 %v3604, %v3606
    %v3609 = vadd.f32 %v3605, %v3607
    %v3610 = vtanh.pop %v3608
    %v3611 = vtanh.pop %v3609
    %v3612 = vmul.f32 %v3602, %v3610
    %v3613 = vmul.f32 %v3603, %v3611
    %v3614 = vpack.c.bf16 %v3577, %v3576
    %3615 = vst [vmem:[%s1564] sm:$0xff] %v3614
    %v3616 = vpack.c.bf16 %v3613, %v3612
    %3617 = vst [vmem:[%s1559 + $0x8] sm:$0xff] %v3616
    %v3618 = vld [vmem:[#allocation3] sm:$0xff]
    %v3619 = vld [vmem:[#allocation3 + $0x8] sm:$0xff]
    %v3620 = vld [vmem:[#allocation3 + $0x10] sm:$0xff]
    %v3621 = vld [vmem:[#allocation3 + $0x18] sm:$0xff]
    %v3622 = vld [vmem:[#allocation3 + $0x20] sm:$0xff]
    %v3623 = vld [vmem:[#allocation3 + $0x28] sm:$0xff]
    %v3624 = vld [vmem:[#allocation3 + $0x30] sm:$0xff]
    %v3625 = vld [vmem:[#allocation3 + $0x38] sm:$0xff]
    %v3626 = vld [vmem:[#allocation3 + $0x40] sm:$0xff]
    %v3627 = vld [vmem:[#allocation3 + $0x48] sm:$0xff]
    %v3628 = vld [vmem:[#allocation3 + $0x50] sm:$0xff]
    %v3629 = vld [vmem:[#allocation3 + $0x58] sm:$0xff]
    %v3630 = vld [vmem:[#allocation3 + $0x60] sm:$0xff]
    %v3631 = vld [vmem:[#allocation3 + $0x68] sm:$0xff]
    %v3632 = vld [vmem:[#allocation3 + $0x70] sm:$0xff]
    %v3633 = vld [vmem:[#allocation3 + $0x78] sm:$0xff]
    %v3634 = vld [vmem:[#allocation10] sm:$0xf]
    %v3635 = vld [vmem:[#allocation10 + $0x4] sm:$0xf]
    %v3636 = vld [vmem:[#allocation10 + $0x8] sm:$0xf]
    %v3637 = vld [vmem:[#allocation10 + $0xc] sm:$0xf]
    %v3638 = vld [vmem:[#allocation10 + $0x10] sm:$0xf]
    %v3639 = vld [vmem:[#allocation10 + $0x14] sm:$0xf]
    %v3640 = vld [vmem:[#allocation10 + $0x18] sm:$0xf]
    %v3641 = vld [vmem:[#allocation10 + $0x1c] sm:$0xf]
    %v3642 = vld [vmem:[#allocation10 + $0x20] sm:$0xf]
    %v3643 = vld [vmem:[#allocation10 + $0x24] sm:$0xf]
    %v3644 = vld [vmem:[#allocation10 + $0x28] sm:$0xf]
    %v3645 = vld [vmem:[#allocation10 + $0x2c] sm:$0xf]
    %v3646 = vld [vmem:[#allocation10 + $0x30] sm:$0xf]
    %v3647 = vld [vmem:[#allocation10 + $0x34] sm:$0xf]
    %v3648 = vld [vmem:[#allocation10 + $0x38] sm:$0xf]
    %v3649 = vld [vmem:[#allocation10 + $0x3c] sm:$0xf]
    %v3650 = vld [vmem:[#allocation10 + $0x40] sm:$0xf]
    %v3651 = vld [vmem:[#allocation10 + $0x44] sm:$0xf]
    %v3652 = vld [vmem:[#allocation10 + $0x48] sm:$0xf]
    %v3653 = vld [vmem:[#allocation10 + $0x4c] sm:$0xf]
    %v3654 = vld [vmem:[#allocation10 + $0x50] sm:$0xf]
    %v3655 = vld [vmem:[#allocation10 + $0x54] sm:$0xf]
    %v3656 = vld [vmem:[#allocation10 + $0x58] sm:$0xf]
    %v3657 = vld [vmem:[#allocation10 + $0x5c] sm:$0xf]
    %v3658 = vld [vmem:[#allocation10 + $0x60] sm:$0xf]
    %v3659 = vld [vmem:[#allocation10 + $0x64] sm:$0xf]
    %v3660 = vld [vmem:[#allocation10 + $0x68] sm:$0xf]
    %v3661 = vld [vmem:[#allocation10 + $0x6c] sm:$0xf]
    %v3662 = vld [vmem:[#allocation10 + $0x70] sm:$0xf]
    %v3663 = vld [vmem:[#allocation10 + $0x74] sm:$0xf]
    %v3664 = vld [vmem:[#allocation10 + $0x78] sm:$0xf]
    %v3665 = vld [vmem:[#allocation10 + $0x7c] sm:$0xf]
    %v3666 = vld [vmem:[%s6] sm:$0x1]
    %v3668 = vlaneseq
    %v3669 = vshrl.u32 %v3668, 7
    %v3670 = vsub.s32 0, %v3669
    %v3671 = vrot.slane %v3666, %v3670
    %v3705 = vunpack.c.l.b16 %v3634
    %v3706 = vunpack.c.l.b16 %v3635
    %v3707 = vunpack.c.l.b16 %v3636
    %v3708 = vunpack.c.l.b16 %v3637
    %v3709 = vunpack.c.l.b16 %v3638
    %v3710 = vunpack.c.l.b16 %v3639
    %v3711 = vunpack.c.l.b16 %v3640
    %v3712 = vunpack.c.l.b16 %v3641
    %v3713 = vunpack.c.l.b16 %v3642
    %v3714 = vunpack.c.l.b16 %v3643
    %v3715 = vunpack.c.l.b16 %v3644
    %v3716 = vunpack.c.l.b16 %v3645
    %v3717 = vunpack.c.l.b16 %v3646
    %v3718 = vunpack.c.l.b16 %v3647
    %v3719 = vunpack.c.l.b16 %v3648
    %v3720 = vunpack.c.l.b16 %v3649
    %v3721 = vunpack.c.l.b16 %v3650
    %v3722 = vunpack.c.l.b16 %v3651
    %v3723 = vunpack.c.l.b16 %v3652
    %v3724 = vunpack.c.l.b16 %v3653
    %v3725 = vunpack.c.l.b16 %v3654
    %v3726 = vunpack.c.l.b16 %v3655
    %v3727 = vunpack.c.l.b16 %v3656
    %v3728 = vunpack.c.l.b16 %v3657
    %v3729 = vunpack.c.l.b16 %v3658
    %v3730 = vunpack.c.l.b16 %v3659
    %v3731 = vunpack.c.l.b16 %v3660
    %v3732 = vunpack.c.l.b16 %v3661
    %v3733 = vunpack.c.l.b16 %v3662
    %v3734 = vunpack.c.l.b16 %v3663
    %v3735 = vunpack.c.l.b16 %v3664
    %v3736 = vunpack.c.l.b16 %v3665
    %v3737 = vpack.c.b16 %v3706, %v3705
    %v3738 = vpack.c.b16 %v3708, %v3707
    %v3739 = vpack.c.b16 %v3710, %v3709
    %v3740 = vpack.c.b16 %v3712, %v3711
    %v3741 = vpack.c.b16 %v3714, %v3713
    %v3742 = vpack.c.b16 %v3716, %v3715
    %v3743 = vpack.c.b16 %v3718, %v3717
    %v3744 = vpack.c.b16 %v3720, %v3719
    %v3745 = vpack.c.b16 %v3722, %v3721
    %v3746 = vpack.c.b16 %v3724, %v3723
    %v3747 = vpack.c.b16 %v3726, %v3725
    %v3748 = vpack.c.b16 %v3728, %v3727
    %v3749 = vpack.c.b16 %v3730, %v3729
    %v3750 = vpack.c.b16 %v3732, %v3731
    %v3751 = vpack.c.b16 %v3734, %v3733
    %v3752 = vpack.c.b16 %v3736, %v3735
    %3769 = vmatprep.subr.bf16.mxu0 0
    %3770 = vmatpush1.bf16.msra.mxu0 %v3737
    %3771 = vmatprep.subr.bf16.mxu0 0
    %3772 = vmatpush1.bf16.msra.mxu0 %v3738
    %3773 = vmatprep.subr.bf16.mxu0 0
    %3774 = vmatpush1.bf16.msra.mxu0 %v3739
    %3775 = vmatprep.subr.bf16.mxu0 0
    %3776 = vmatpush1.bf16.msra.mxu0 %v3740
    %3777 = vmatprep.subr.bf16.mxu0 0
    %3778 = vmatpush1.bf16.msra.mxu0 %v3741
    %3779 = vmatprep.subr.bf16.mxu0 0
    %3780 = vmatpush1.bf16.msra.mxu0 %v3742
    %3781 = vmatprep.subr.bf16.mxu0 0
    %3782 = vmatpush1.bf16.msra.mxu0 %v3743
    %3783 = vmatprep.subr.bf16.mxu0 0
    %3784 = vmatpush1.bf16.msra.mxu0 %v3744
    %3785 = vmatprep.subr.bf16.mxu0 0
    %3786 = vmatpush1.bf16.msra.mxu0 %v3745
    %3787 = vmatprep.subr.bf16.mxu0 0
    %3788 = vmatpush1.bf16.msra.mxu0 %v3746
    %3789 = vmatprep.subr.bf16.mxu0 0
    %3790 = vmatpush1.bf16.msra.mxu0 %v3747
    %3791 = vmatprep.subr.bf16.mxu0 0
    %3792 = vmatpush1.bf16.msra.mxu0 %v3748
    %3793 = vmatprep.subr.bf16.mxu0 0
    %3794 = vmatpush1.bf16.msra.mxu0 %v3749
    %3795 = vmatprep.subr.bf16.mxu0 0
    %3796 = vmatpush1.bf16.msra.mxu0 %v3750
    %3797 = vmatprep.subr.bf16.mxu0 0
    %3798 = vmatpush1.bf16.msra.mxu0 %v3751
    %3799 = vmatprep.subr.bf16.mxu0 0
    %3800 = vmatpush1.bf16.msra.mxu0 %v3752
    %3801 = vmatprep.mubr.bf16.mxu0 %v3619
    %3802 = vmatmul.mubr.bf16.gmra.mrb[0].mxu0 %v3618
    %v3803 = vpop.f32.mrb[0].mxu0
    %v3804 = vadd.f32 %v3671, %v3803
    %v3805 = vpop.f32.mrb[0].mxu0
    %v3806 = vpop.f32.mrb[0].mxu0
    %v3807 = vadd.f32 %v3671, %v3806
    %v3808 = vpop.f32.mrb[0].mxu0
    %3809 = vmatprep.mubr.bf16.mxu0 %v3621
    %3810 = vmatmul.mubr.bf16.gmra.mrb[0].mxu0 %v3620
    %v3811 = vpop.f32.mrb[0].mxu0
    %v3812 = vadd.f32 %v3671, %v3811
    %v3813 = vpop.f32.mrb[0].mxu0
    %v3814 = vpop.f32.mrb[0].mxu0
    %v3815 = vadd.f32 %v3671, %v3814
    %v3816 = vpop.f32.mrb[0].mxu0
    %3817 = vmatprep.mubr.bf16.mxu0 %v3623
    %3818 = vmatmul.mubr.bf16.gmra.mrb[0].mxu0 %v3622
    %v3819 = vpop.f32.mrb[0].mxu0
    %v3820 = vadd.f32 %v3671, %v3819
    %v3821 = vpop.f32.mrb[0].mxu0
    %v3822 = vpop.f32.mrb[0].mxu0
    %v3823 = vadd.f32 %v3671, %v3822
    %v3824 = vpop.f32.mrb[0].mxu0
    %3825 = vmatprep.mubr.bf16.mxu0 %v3625
    %3826 = vmatmul.mubr.bf16.gmra.mrb[0].mxu0 %v3624
    %v3827 = vpop.f32.mrb[0].mxu0
    %v3828 = vadd.f32 %v3671, %v3827
    %v3829 = vpop.f32.mrb[0].mxu0
    %v3830 = vpop.f32.mrb[0].mxu0
    %v3831 = vadd.f32 %v3671, %v3830
    %v3832 = vpop.f32.mrb[0].mxu0
    %3833 = vmatprep.mubr.bf16.mxu0 %v3627
    %3834 = vmatmul.mubr.bf16.gmra.mrb[0].mxu0 %v3626
    %v3835 = vpop.f32.mrb[0].mxu0
    %v3836 = vadd.f32 %v3671, %v3835
    %v3837 = vpop.f32.mrb[0].mxu0
    %v3838 = vpop.f32.mrb[0].mxu0
    %v3839 = vadd.f32 %v3671, %v3838
    %v3840 = vpop.f32.mrb[0].mxu0
    %3841 = vmatprep.mubr.bf16.mxu0 %v3629
    %3842 = vmatmul.mubr.bf16.gmra.mrb[0].mxu0 %v3628
    %v3843 = vpop.f32.mrb[0].mxu0
    %v3844 = vadd.f32 %v3671, %v3843
    %v3845 = vpop.f32.mrb[0].mxu0
    %v3846 = vpop.f32.mrb[0].mxu0
    %v3847 = vadd.f32 %v3671, %v3846
    %v3848 = vpop.f32.mrb[0].mxu0
    %3849 = vmatprep.mubr.bf16.mxu0 %v3631
    %3850 = vmatmul.mubr.bf16.gmra.mrb[0].mxu0 %v3630
    %v3851 = vpop.f32.mrb[0].mxu0
    %v3852 = vadd.f32 %v3671, %v3851
    %v3853 = vpop.f32.mrb[0].mxu0
    %v3854 = vpop.f32.mrb[0].mxu0
    %v3855 = vadd.f32 %v3671, %v3854
    %v3856 = vpop.f32.mrb[0].mxu0
    %3857 = vmatprep.mubr.bf16.mxu0 %v3633
    %3858 = vmatmul.mubr.bf16.gmra.mrb[0].mxu0 %v3632
    %v3859 = vpop.f32.mrb[0].mxu0
    %v3860 = vadd.f32 %v3671, %v3859
    %v3861 = vpop.f32.mrb[0].mxu0
    %v3862 = vpop.f32.mrb[0].mxu0
    %v3863 = vadd.f32 %v3671, %v3862
    %v3864 = vpop.f32.mrb[0].mxu0
    %3865 = vdwg.mxu0
    %3866 = vst [vmem:[#allocation12] sm:$0xff] %v3804
    %3867 = vst [vmem:[#allocation12 + $0x8] sm:$0xff] %v3807
    %3868 = vst [vmem:[#allocation12 + $0x10] sm:$0xff] %v3812
    %3869 = vst [vmem:[#allocation12 + $0x18] sm:$0xff] %v3815
    %3870 = vst [vmem:[#allocation12 + $0x20] sm:$0xff] %v3820
    %3871 = vst [vmem:[#allocation12 + $0x28] sm:$0xff] %v3823
    %3872 = vst [vmem:[#allocation12 + $0x30] sm:$0xff] %v3828
    %3873 = vst [vmem:[#allocation12 + $0x38] sm:$0xff] %v3831
    %3874 = vst [vmem:[#allocation12 + $0x40] sm:$0xff] %v3836
    %3875 = vst [vmem:[#allocation12 + $0x48] sm:$0xff] %v3839
    %3876 = vst [vmem:[#allocation12 + $0x50] sm:$0xff] %v3844
    %3877 = vst [vmem:[#allocation12 + $0x58] sm:$0xff] %v3847
    %3878 = vst [vmem:[#allocation12 + $0x60] sm:$0xff] %v3852
    %3879 = vst [vmem:[#allocation12 + $0x68] sm:$0xff] %v3855
    %3880 = vst [vmem:[#allocation12 + $0x70] sm:$0xff] %v3860
    %3881 = vst [vmem:[#allocation12 + $0x78] sm:$0xff] %v3863
    // Predicated region
    $region46: #{tpu_custom_call.1} parent=1 // pred_check
      _
    $region47: #{tpu_custom_call.1} parent=1 // pred_check_branch
      %3883 = sbr.rel (0) target = $region49
    $region48: #{tpu_custom_call.1} parent=1 // pred_region
      %s3885 = ssub.s32 2048, 2048
      %3886 = vsyncadd [#allocation6], %s3885
      %s3887 = sshll.u32 [#allocation12], 4
      %s3888 = int_to_ptr.vmem [resolvable:$true] %s3887
      %3893 = dma.vmem_to_hbm [thread:$0]  %s3888, 2048, %s7, [#allocation6], 128, 128, 8
    $region49: #{tpu_custom_call.1} parent=1 // pred_fallthru
      _
    // Predicated region
    $region50: #{tpu_custom_call.1} parent=1 // pred_check
      _
    $region51: #{tpu_custom_call.1} parent=1 // pred_check_branch
      %3895 = sbr.rel (0) target = $region53
    $region52: #{tpu_custom_call.1} parent=1 // pred_region
      %3896 = dma.done [#allocation6], 2048
    $region53: #{tpu_custom_call.1} parent=1 // pred_fallthru
      _
    %3897 = vsyncpa [#allocation5], 1
    %3898 = vsyncpa [#allocation8], 1
    %3899 = vsyncpa [#allocation11], 1
    %3900 = vsyncpa [#allocation6], 1

</llo_original>
